<compile_context>
chip_gen: v6e
topology: v6e:2x2x1
jax: 0.10.0
libtpu: 0.0.40
codegen_flags: <defaults>
</compile_context>

<pallas_src>
import functools

import jax
import jax.numpy as jnp
from jax import lax
from jax.experimental import pallas as pl
from jax.experimental.pallas import tpu as pltpu

PAD_IDX = 0


# ----------------------------------------------------------------------------
# Pallas kernel: one bidirectional LSTM layer, both directions fused per step.
# ----------------------------------------------------------------------------
def _bilstm_fused_kernel(gx_ref, whh_ref, lens_ref, out_ref, c_ref):
    """gx_ref  : (T, B, 8H) bf16  precomputed x@W_ih^T + b, gate-major /
                 direction-minor lanes; backward half already time-reversed,
                 so step s only needs gx_ref[s].
       whh_ref : (2H, 8H) f32    block-diagonal recurrence weight, same layout.
       lens_ref: (B, 1)  int32   per-row valid lengths.
       out_ref : (T, B, 2H) f32  [h_fwd | h_bwd] per timestep (torch layout).
       c_ref   : (B, 2H) f32     final cell state [c_fwd | c_bwd].
    """
    T, B, G = gx_ref.shape
    H = G // 8
    H2 = 2 * H

    whh = whh_ref[...]                         # (2H, 8H) f32, resident
    lens = lens_ref[...]                       # (B, 1) int32, loaded once
    # lane-half indicator: lanes [0,H) = forward, [H,2H) = backward
    is_bwd = lax.broadcasted_iota(jnp.int32, (B, H2), 1) >= H

    def step(s, carry):
        h, c = carry                                            # (B, 2H) f32
        # gate pre-activations for fwd time t=s and bwd time t=T-1-s
        z = gx_ref[s].astype(jnp.float32) + jnp.dot(
            h, whh, preferred_element_type=jnp.float32)         # (B, 8H)

        # whole-vreg activations (2 EUP pushes), contiguous 2H-lane gate slices
        sg = jax.nn.sigmoid(z)
        th = jnp.tanh(z)
        i_g = sg[:, 0 * H2:1 * H2]
        f_g = sg[:, 1 * H2:2 * H2]
        g_g = th[:, 2 * H2:3 * H2]
        o_g = sg[:, 3 * H2:4 * H2]

        c_new = f_g * c + i_g * g_g
        h_new = o_g * jnp.tanh(c_new)

        # packed-sequence mask: fwd half valid if s < len, bwd if T-1-s < len
        t_vec = jnp.where(is_bwd, T - 1 - s, s)                 # (B, 2H) int32
        m = t_vec < lens                                        # (B, 2H) bool
        c = jnp.where(m, c_new, c)
        h = jnp.where(m, h_new, h)

        out_val = jnp.where(m, h_new, 0.0)                      # PAD -> 0
        out_ref[s, :, pl.ds(0, H)] = out_val[:, :H]             # fwd @ t = s
        out_ref[T - 1 - s, :, pl.ds(H, H)] = out_val[:, H:]     # bwd @ t = T-1-s
        return h, c

    h0 = jnp.zeros((B, H2), jnp.float32)
    c0 = jnp.zeros((B, H2), jnp.float32)
    _, c_fin = lax.fori_loop(0, T, step, (h0, c0), unroll=min(T, 8))
    c_ref[...] = c_fin                                          # single write


def bilstm_layer(x_tbd, lens_col, wih_t, whh_t, bias):
    """One bidirectional LSTM layer.

    x_tbd   : (T, Bp, Din) f32  time-major, batch padded to a sublane multiple
    lens_col: (Bp, 1) int32     per-row valid lengths (padded rows = 0)
    wih_t   : (2, Din, 4H) f32, whh_t : (2, H, 4H) f32, bias : (2, 4H) f32
    Returns out (T, Bp, 2H) f32 ([h_fwd|h_bwd]) and final cell (Bp, 2H) f32.
    """
    T, B, _ = x_tbd.shape
    H = whh_t.shape[-1] // 4

    # Input projection for all timesteps & both directions: one MXU-shaped
    # f32 GEMM (hoisted out of the recurrence), bias folded in.
    gx = jnp.einsum('tbd,ndg->ntbg', x_tbd, wih_t,
                    preferred_element_type=jnp.float32)
    gx = gx + bias[:, None, None, :]                            # (2, T, Bp, 4H)

    # Pack fwd gates (time s) with bwd gates (time T-1-s), gate-major /
    # direction-minor lanes -> (T, Bp, 8H).  bf16 storage halves DMA bytes.
    gx_f = gx[0].reshape(T, B, 4, H)
    gx_b = gx[1][::-1].reshape(T, B, 4, H)                      # time-reversed
    gx_packed = jnp.stack([gx_f, gx_b], axis=3).reshape(
        T, B, 8 * H).astype(jnp.bfloat16)

    # Block-diagonal recurrence weight, same interleaved lane layout, f32.
    whh_f = whh_t[0].reshape(H, 4, H)
    whh_b = whh_t[1].reshape(H, 4, H)
    zero = jnp.zeros_like(whh_f)
    whh_big = jnp.concatenate(
        [jnp.stack([whh_f, zero], axis=2),      # rows 0:H  (h_fwd)
         jnp.stack([zero, whh_b], axis=2)],     # rows H:2H (h_bwd)
        axis=0).reshape(2 * H, 8 * H)

    # Explicit VMEM budget from the actual footprint (single block, no grid).
    footprint = (gx_packed.size * 2 + whh_big.size * 4 + lens_col.size * 4
                 + T * B * 2 * H * 4 + B * 2 * H * 4)
    vmem_limit = min(int(footprint * 2) + (2 << 20), 64 << 20)

    out, c_fin = pl.pallas_call(
        _bilstm_fused_kernel,
        out_shape=(jax.ShapeDtypeStruct((T, B, 2 * H), jnp.float32),
                   jax.ShapeDtypeStruct((B, 2 * H), jnp.float32)),
        in_specs=[pl.BlockSpec(memory_space=pltpu.MemorySpace.VMEM),
                  pl.BlockSpec(memory_space=pltpu.MemorySpace.VMEM),
                  pl.BlockSpec(memory_space=pltpu.MemorySpace.VMEM)],
        out_specs=(pl.BlockSpec(memory_space=pltpu.MemorySpace.VMEM),
                   pl.BlockSpec(memory_space=pltpu.MemorySpace.VMEM)),
        compiler_params=pltpu.CompilerParams(vmem_limit_bytes=vmem_limit),
    )(gx_packed, whh_big, lens_col)

    return out, c_fin


# ----------------------------------------------------------------------------
# Full EncoderRNN forward (lstm path).  max_len is a static Python int.
# ----------------------------------------------------------------------------
@functools.partial(jax.jit, static_argnames=("max_len",))
def encoder_rnn_forward(enc_inp, src_len, params, *, max_len):
    emb = jnp.take(params["embedding"], enc_inp, axis=0)        # (B, T, E)
    # dropout_in (p=0.1): eval-mode identity
    B, T, _ = emb.shape
    n_layers = len(params["layers"])
    H = params["layers"][0]["whh_t"].shape[-1] // 4

    Bp = max(8, ((B + 7) // 8) * 8)                             # sublane pad
    x = jnp.pad(jnp.transpose(emb, (1, 0, 2)).astype(jnp.float32),
                ((0, 0), (0, Bp - B), (0, 0)))                  # (T, Bp, E)
    lens_col = jnp.pad(src_len.astype(jnp.int32),
                       (0, Bp - B))[:, None]                    # (Bp, 1), pads=0

    c_list = []
    for lp in params["layers"]:
        x, c_fin = bilstm_layer(x, lens_col, lp["wih_t"], lp["whh_t"],
                                lp["bias"])                     # x: (T, Bp, 2H)
        # inter-layer LSTM dropout (p=0.2): eval-mode identity
        c_list.append(c_fin)

    # pad_packed_sequence: truncate to max(src_len); padded positions already 0.
    output = jnp.transpose(x, (1, 0, 2))[:B, :max_len, :]       # (B, max_len, 2H)

    # Reference code bug (`hiddden` typo): returned hidden is the initial zeros,
    # reshaped to (rnn_layers, B, 2H). Reproduced exactly.
    hidden = jnp.zeros((n_layers, B, 2 * H), jnp.float32)

    # c: per layer the kernel already produces [c_fwd | c_bwd] along the last
    # dim, matching torch's view(L,2,B,H).transpose(1,2).view(L,B,2H).
    c = jnp.stack(c_list, axis=0)[:, :B, :]                     # (L, B, 2H)

    return output, hidden, c


# ----------------------------------------------------------------------------
# Deterministic parameter construction (uniform(-0.1, 0.1), padding row zeroed).
# ----------------------------------------------------------------------------
def init_params(key, vocab_size, embed_dim, hidden_size, rnn_layers):
    assert embed_dim == hidden_size, "module uses embedding dim == hidden_size"
    keys = jax.random.split(key, 1 + rnn_layers * 2 * 4)
    kit = iter(keys)

    def u(k, shape):
        return jax.random.uniform(k, shape, jnp.float32, -0.1, 0.1)

    emb = u(next(kit), (vocab_size, hidden_size)).at[PAD_IDX].set(0.0)

    layers = []
    for layer in range(rnn_layers):
        din = embed_dim if layer == 0 else 2 * hidden_size
        wih_t, whh_t, bias = [], [], []
        for _ in range(2):                                      # fwd, bwd
            w_ih = u(next(kit), (4 * hidden_size, din))
            w_hh = u(next(kit), (4 * hidden_size, hidden_size))
            b_ih = u(next(kit), (4 * hidden_size,))
            b_hh = u(next(kit), (4 * hidden_size,))
            wih_t.append(w_ih.T)
            whh_t.append(w_hh.T)
            bias.append(b_ih + b_hh)
        layers.append({"wih_t": jnp.stack(wih_t),               # (2, Din, 4H)
                       "whh_t": jnp.stack(whh_t),               # (2, H, 4H)
                       "bias": jnp.stack(bias)})                # (2, 4H)

    return {"embedding": emb, "layers": layers}


if __name__ == "__main__":
    VOCAB, EMBED, HIDDEN, LAYERS = 20, 32, 32, 2
    B, T = 2, 8

    root = jax.random.PRNGKey(0)
    k_inp, k_par = jax.random.split(root)

    src_len_list = [T, 5]
    max_len = max(src_len_list)          # static Python int -> jit-safe slicing
    src_len = jnp.array(src_len_list, dtype=jnp.int32)

    enc_inp = jax.random.randint(k_inp, (B, T), 1, VOCAB, dtype=jnp.int32)
    pos = jnp.arange(T, dtype=jnp.int32)[None, :]
    enc_inp = jnp.where(pos < src_len[:, None], enc_inp, PAD_IDX)

    params = init_params(k_par, VOCAB, EMBED, HIDDEN, LAYERS)

    output, hidden, c = encoder_rnn_forward(enc_inp, src_len, params,
                                            max_len=max_len)
    jax.block_until_ready((output, hidden, c))

    assert output.shape == (B, max_len, 2 * HIDDEN)
    assert hidden.shape == (LAYERS, B, 2 * HIDDEN)
    assert c.shape == (LAYERS, B, 2 * HIDDEN)
    assert bool(jnp.all(jnp.isfinite(output)))
    # padded positions of the shorter sequence must be PAD_IDX (= 0)
    assert bool(jnp.all(output[1, src_len_list[1]:, :] == 0.0))
    print("KERNEL_OK")
</pallas_src>

<mosaic_0001>
module attributes {stable_mosaic.version = 11 : i64} {
  func.func @_bilstm_fused_kernel(%arg0: memref<8x8x256xbf16, #tpu.memory_space<vmem>>, %arg1: memref<64x256xf32, #tpu.memory_space<vmem>>, %arg2: memref<8x1xi32, #tpu.memory_space<vmem>>, %arg3: memref<8x8x64xf32, #tpu.memory_space<vmem>>, %arg4: memref<8x64xf32, #tpu.memory_space<vmem>>) attributes {dimension_semantics = [], scalar_prefetch = 0 : i64, scratch_operands = 0 : i64, tpu.core_type = #tpu.core_type<tc>} {
    %c0 = arith.constant 0 : index
    %c0_0 = arith.constant 0 : index
    %0 = vector.load %arg1[%c0, %c0_0] : memref<64x256xf32, #tpu.memory_space<vmem>>, vector<64x256xf32>
    %c0_1 = arith.constant 0 : index
    %c0_2 = arith.constant 0 : index
    %1 = vector.load %arg2[%c0_1, %c0_2] : memref<8x1xi32, #tpu.memory_space<vmem>>, vector<8x1xi32>
    %2 = tpu.iota {dimensions = array<i32: 1>} : vector<8x64xi32>
    %c32_i32 = arith.constant 32 : i32
    %3 = vector.broadcast %c32_i32 : i32 to vector<8x64xi32>
    %4 = arith.cmpi sge, %2, %3 : vector<8x64xi32>
    %cst = arith.constant 0.000000e+00 : f32
    %5 = vector.broadcast %cst : f32 to vector<8x64xf32>
    %cst_3 = arith.constant 0.000000e+00 : f32
    %6 = vector.broadcast %cst_3 : f32 to vector<8x64xf32>
    %c0_i32 = arith.constant 0 : i32
    %7 = arith.index_cast %c0_i32 : i32 to index
    %c0_4 = arith.constant 0 : index
    %c0_5 = arith.constant 0 : index
    %8 = vector.load %arg0[%7, %c0_4, %c0_5] : memref<8x8x256xbf16, #tpu.memory_space<vmem>>, vector<1x8x256xbf16>
    %9 = vector.shape_cast %8 : vector<1x8x256xbf16> to vector<8x256xbf16>
    %10 = arith.extf %9 : vector<8x256xbf16> to vector<8x256xf32>
    %cst_6 = arith.constant dense<0.000000e+00> : vector<8x256xf32>
    %11 = tpu.matmul %5, %0, %cst_6 {dimension_numbers = #tpu.dot_dimension_numbers<[1], [0], [0], [1], [0, 0, 1, 1], [], []>} : vector<8x64xf32>, vector<64x256xf32>, vector<8x256xf32> -> vector<8x256xf32>
    %12 = arith.addf %10, %11 : vector<8x256xf32>
    %13 = arith.negf %12 : vector<8x256xf32>
    %14 = math.exp %13 : vector<8x256xf32>
    %cst_7 = arith.constant 1.000000e+00 : f32
    %15 = vector.broadcast %cst_7 : f32 to vector<8x256xf32>
    %16 = arith.addf %15, %14 : vector<8x256xf32>
    %17 = arith.divf %15, %16 : vector<8x256xf32>
    %18 = math.tanh %12 : vector<8x256xf32>
    %19 = vector.extract_strided_slice %17 {offsets = [0, 0], sizes = [8, 64], strides = [1, 1]} : vector<8x256xf32> to vector<8x64xf32>
    %20 = vector.extract_strided_slice %17 {offsets = [0, 64], sizes = [8, 64], strides = [1, 1]} : vector<8x256xf32> to vector<8x64xf32>
    %21 = vector.extract_strided_slice %18 {offsets = [0, 128], sizes = [8, 64], strides = [1, 1]} : vector<8x256xf32> to vector<8x64xf32>
    %22 = vector.extract_strided_slice %17 {offsets = [0, 192], sizes = [8, 64], strides = [1, 1]} : vector<8x256xf32> to vector<8x64xf32>
    %23 = arith.mulf %20, %6 : vector<8x64xf32>
    %24 = arith.mulf %19, %21 : vector<8x64xf32>
    %25 = arith.addf %23, %24 : vector<8x64xf32>
    %26 = math.tanh %25 : vector<8x64xf32>
    %27 = arith.mulf %22, %26 : vector<8x64xf32>
    %c7_i32 = arith.constant 7 : i32
    %28 = arith.subi %c7_i32, %c0_i32 : i32
    %29 = vector.broadcast %28 : i32 to vector<8x64xi32>
    %30 = vector.broadcast %c0_i32 : i32 to vector<8x64xi32>
    %31 = arith.select %4, %29, %30 : vector<8x64xi1>, vector<8x64xi32>
    %32 = vector.broadcast %1 : vector<8x1xi32> to vector<8x64xi32>
    %33 = arith.cmpi slt, %31, %32 : vector<8x64xi32>
    %34 = arith.select %33, %25, %6 : vector<8x64xi1>, vector<8x64xf32>
    %35 = arith.select %33, %27, %5 : vector<8x64xi1>, vector<8x64xf32>
    %cst_8 = arith.constant 0.000000e+00 : f32
    %36 = vector.broadcast %cst_8 : f32 to vector<8x64xf32>
    %37 = arith.select %33, %27, %36 : vector<8x64xi1>, vector<8x64xf32>
    %38 = vector.extract_strided_slice %37 {offsets = [0, 0], sizes = [8, 32], strides = [1, 1]} : vector<8x64xf32> to vector<8x32xf32>
    %39 = arith.index_cast %c0_i32 : i32 to index
    %c0_9 = arith.constant 0 : index
    %c0_10 = arith.constant 0 : index
    %40 = vector.load %arg3[%39, %c0_9, %c0_10] : memref<8x8x64xf32, #tpu.memory_space<vmem>>, vector<1x8x32xf32>
    %41 = vector.shape_cast %40 : vector<1x8x32xf32> to vector<8x32xf32>
    %42 = vector.shape_cast %38 : vector<8x32xf32> to vector<1x8x32xf32>
    tpu.vector_store %arg3[%39, %c0_9, %c0_10], %42 {strides = array<i32>} : memref<8x8x64xf32, #tpu.memory_space<vmem>>, vector<1x8x32xf32>,
    %43 = vector.extract_strided_slice %37 {offsets = [0, 32], sizes = [8, 32], strides = [1, 1]} : vector<8x64xf32> to vector<8x32xf32>
    %c7_i32_11 = arith.constant 7 : i32
    %44 = arith.subi %c7_i32_11, %c0_i32 : i32
    %45 = arith.index_cast %44 : i32 to index
    %c0_12 = arith.constant 0 : index
    %c32 = arith.constant 32 : index
    %46 = vector.load %arg3[%45, %c0_12, %c32] : memref<8x8x64xf32, #tpu.memory_space<vmem>>, vector<1x8x32xf32>
    %47 = vector.shape_cast %46 : vector<1x8x32xf32> to vector<8x32xf32>
    %48 = vector.shape_cast %43 : vector<8x32xf32> to vector<1x8x32xf32>
    tpu.vector_store %arg3[%45, %c0_12, %c32], %48 {strides = array<i32>} : memref<8x8x64xf32, #tpu.memory_space<vmem>>, vector<1x8x32xf32>,
    %c1_i32 = arith.constant 1 : i32
    %49 = arith.index_cast %c1_i32 : i32 to index
    %c0_13 = arith.constant 0 : index
    %c0_14 = arith.constant 0 : index
    %50 = vector.load %arg0[%49, %c0_13, %c0_14] : memref<8x8x256xbf16, #tpu.memory_space<vmem>>, vector<1x8x256xbf16>
    %51 = vector.shape_cast %50 : vector<1x8x256xbf16> to vector<8x256xbf16>
    %52 = arith.extf %51 : vector<8x256xbf16> to vector<8x256xf32>
    %cst_15 = arith.constant dense<0.000000e+00> : vector<8x256xf32>
    %53 = tpu.matmul %35, %0, %cst_15 {dimension_numbers = #tpu.dot_dimension_numbers<[1], [0], [0], [1], [0, 0, 1, 1], [], []>} : vector<8x64xf32>, vector<64x256xf32>, vector<8x256xf32> -> vector<8x256xf32>
    %54 = arith.addf %52, %53 : vector<8x256xf32>
    %55 = arith.negf %54 : vector<8x256xf32>
    %56 = math.exp %55 : vector<8x256xf32>
    %cst_16 = arith.constant 1.000000e+00 : f32
    %57 = vector.broadcast %cst_16 : f32 to vector<8x256xf32>
    %58 = arith.addf %57, %56 : vector<8x256xf32>
    %59 = arith.divf %57, %58 : vector<8x256xf32>
    %60 = math.tanh %54 : vector<8x256xf32>
    %61 = vector.extract_strided_slice %59 {offsets = [0, 0], sizes = [8, 64], strides = [1, 1]} : vector<8x256xf32> to vector<8x64xf32>
    %62 = vector.extract_strided_slice %59 {offsets = [0, 64], sizes = [8, 64], strides = [1, 1]} : vector<8x256xf32> to vector<8x64xf32>
    %63 = vector.extract_strided_slice %60 {offsets = [0, 128], sizes = [8, 64], strides = [1, 1]} : vector<8x256xf32> to vector<8x64xf32>
    %64 = vector.extract_strided_slice %59 {offsets = [0, 192], sizes = [8, 64], strides = [1, 1]} : vector<8x256xf32> to vector<8x64xf32>
    %65 = arith.mulf %62, %34 : vector<8x64xf32>
    %66 = arith.mulf %61, %63 : vector<8x64xf32>
    %67 = arith.addf %65, %66 : vector<8x64xf32>
    %68 = math.tanh %67 : vector<8x64xf32>
    %69 = arith.mulf %64, %68 : vector<8x64xf32>
    %c7_i32_17 = arith.constant 7 : i32
    %70 = arith.subi %c7_i32_17, %c1_i32 : i32
    %71 = vector.broadcast %70 : i32 to vector<8x64xi32>
    %72 = vector.broadcast %c1_i32 : i32 to vector<8x64xi32>
    %73 = arith.select %4, %71, %72 : vector<8x64xi1>, vector<8x64xi32>
    %74 = vector.broadcast %1 : vector<8x1xi32> to vector<8x64xi32>
    %75 = arith.cmpi slt, %73, %74 : vector<8x64xi32>
    %76 = arith.select %75, %67, %34 : vector<8x64xi1>, vector<8x64xf32>
    %77 = arith.select %75, %69, %35 : vector<8x64xi1>, vector<8x64xf32>
    %cst_18 = arith.constant 0.000000e+00 : f32
    %78 = vector.broadcast %cst_18 : f32 to vector<8x64xf32>
    %79 = arith.select %75, %69, %78 : vector<8x64xi1>, vector<8x64xf32>
    %80 = vector.extract_strided_slice %79 {offsets = [0, 0], sizes = [8, 32], strides = [1, 1]} : vector<8x64xf32> to vector<8x32xf32>
    %81 = arith.index_cast %c1_i32 : i32 to index
    %c0_19 = arith.constant 0 : index
    %c0_20 = arith.constant 0 : index
    %82 = vector.load %arg3[%81, %c0_19, %c0_20] : memref<8x8x64xf32, #tpu.memory_space<vmem>>, vector<1x8x32xf32>
    %83 = vector.shape_cast %82 : vector<1x8x32xf32> to vector<8x32xf32>
    %84 = vector.shape_cast %80 : vector<8x32xf32> to vector<1x8x32xf32>
    tpu.vector_store %arg3[%81, %c0_19, %c0_20], %84 {strides = array<i32>} : memref<8x8x64xf32, #tpu.memory_space<vmem>>, vector<1x8x32xf32>,
    %85 = vector.extract_strided_slice %79 {offsets = [0, 32], sizes = [8, 32], strides = [1, 1]} : vector<8x64xf32> to vector<8x32xf32>
    %c7_i32_21 = arith.constant 7 : i32
    %86 = arith.subi %c7_i32_21, %c1_i32 : i32
    %87 = arith.index_cast %86 : i32 to index
    %c0_22 = arith.constant 0 : index
    %c32_23 = arith.constant 32 : index
    %88 = vector.load %arg3[%87, %c0_22, %c32_23] : memref<8x8x64xf32, #tpu.memory_space<vmem>>, vector<1x8x32xf32>
    %89 = vector.shape_cast %88 : vector<1x8x32xf32> to vector<8x32xf32>
    %90 = vector.shape_cast %85 : vector<8x32xf32> to vector<1x8x32xf32>
    tpu.vector_store %arg3[%87, %c0_22, %c32_23], %90 {strides = array<i32>} : memref<8x8x64xf32, #tpu.memory_space<vmem>>, vector<1x8x32xf32>,
    %c2_i32 = arith.constant 2 : i32
    %91 = arith.index_cast %c2_i32 : i32 to index
    %c0_24 = arith.constant 0 : index
    %c0_25 = arith.constant 0 : index
    %92 = vector.load %arg0[%91, %c0_24, %c0_25] : memref<8x8x256xbf16, #tpu.memory_space<vmem>>, vector<1x8x256xbf16>
    %93 = vector.shape_cast %92 : vector<1x8x256xbf16> to vector<8x256xbf16>
    %94 = arith.extf %93 : vector<8x256xbf16> to vector<8x256xf32>
    %cst_26 = arith.constant dense<0.000000e+00> : vector<8x256xf32>
    %95 = tpu.matmul %77, %0, %cst_26 {dimension_numbers = #tpu.dot_dimension_numbers<[1], [0], [0], [1], [0, 0, 1, 1], [], []>} : vector<8x64xf32>, vector<64x256xf32>, vector<8x256xf32> -> vector<8x256xf32>
    %96 = arith.addf %94, %95 : vector<8x256xf32>
    %97 = arith.negf %96 : vector<8x256xf32>
    %98 = math.exp %97 : vector<8x256xf32>
    %cst_27 = arith.constant 1.000000e+00 : f32
    %99 = vector.broadcast %cst_27 : f32 to vector<8x256xf32>
    %100 = arith.addf %99, %98 : vector<8x256xf32>
    %101 = arith.divf %99, %100 : vector<8x256xf32>
    %102 = math.tanh %96 : vector<8x256xf32>
    %103 = vector.extract_strided_slice %101 {offsets = [0, 0], sizes = [8, 64], strides = [1, 1]} : vector<8x256xf32> to vector<8x64xf32>
    %104 = vector.extract_strided_slice %101 {offsets = [0, 64], sizes = [8, 64], strides = [1, 1]} : vector<8x256xf32> to vector<8x64xf32>
    %105 = vector.extract_strided_slice %102 {offsets = [0, 128], sizes = [8, 64], strides = [1, 1]} : vector<8x256xf32> to vector<8x64xf32>
    %106 = vector.extract_strided_slice %101 {offsets = [0, 192], sizes = [8, 64], strides = [1, 1]} : vector<8x256xf32> to vector<8x64xf32>
    %107 = arith.mulf %104, %76 : vector<8x64xf32>
    %108 = arith.mulf %103, %105 : vector<8x64xf32>
    %109 = arith.addf %107, %108 : vector<8x64xf32>
    %110 = math.tanh %109 : vector<8x64xf32>
    %111 = arith.mulf %106, %110 : vector<8x64xf32>
    %c7_i32_28 = arith.constant 7 : i32
    %112 = arith.subi %c7_i32_28, %c2_i32 : i32
    %113 = vector.broadcast %112 : i32 to vector<8x64xi32>
    %114 = vector.broadcast %c2_i32 : i32 to vector<8x64xi32>
    %115 = arith.select %4, %113, %114 : vector<8x64xi1>, vector<8x64xi32>
    %116 = vector.broadcast %1 : vector<8x1xi32> to vector<8x64xi32>
    %117 = arith.cmpi slt, %115, %116 : vector<8x64xi32>
    %118 = arith.select %117, %109, %76 : vector<8x64xi1>, vector<8x64xf32>
    %119 = arith.select %117, %111, %77 : vector<8x64xi1>, vector<8x64xf32>
    %cst_29 = arith.constant 0.000000e+00 : f32
    %120 = vector.broadcast %cst_29 : f32 to vector<8x64xf32>
    %121 = arith.select %117, %111, %120 : vector<8x64xi1>, vector<8x64xf32>
    %122 = vector.extract_strided_slice %121 {offsets = [0, 0], sizes = [8, 32], strides = [1, 1]} : vector<8x64xf32> to vector<8x32xf32>
    %123 = arith.index_cast %c2_i32 : i32 to index
    %c0_30 = arith.constant 0 : index
    %c0_31 = arith.constant 0 : index
    %124 = vector.load %arg3[%123, %c0_30, %c0_31] : memref<8x8x64xf32, #tpu.memory_space<vmem>>, vector<1x8x32xf32>
    %125 = vector.shape_cast %124 : vector<1x8x32xf32> to vector<8x32xf32>
    %126 = vector.shape_cast %122 : vector<8x32xf32> to vector<1x8x32xf32>
    tpu.vector_store %arg3[%123, %c0_30, %c0_31], %126 {strides = array<i32>} : memref<8x8x64xf32, #tpu.memory_space<vmem>>, vector<1x8x32xf32>,
    %127 = vector.extract_strided_slice %121 {offsets = [0, 32], sizes = [8, 32], strides = [1, 1]} : vector<8x64xf32> to vector<8x32xf32>
    %c7_i32_32 = arith.constant 7 : i32
    %128 = arith.subi %c7_i32_32, %c2_i32 : i32
    %129 = arith.index_cast %128 : i32 to index
    %c0_33 = arith.constant 0 : index
    %c32_34 = arith.constant 32 : index
    %130 = vector.load %arg3[%129, %c0_33, %c32_34] : memref<8x8x64xf32, #tpu.memory_space<vmem>>, vector<1x8x32xf32>
    %131 = vector.shape_cast %130 : vector<1x8x32xf32> to vector<8x32xf32>
    %132 = vector.shape_cast %127 : vector<8x32xf32> to vector<1x8x32xf32>
    tpu.vector_store %arg3[%129, %c0_33, %c32_34], %132 {strides = array<i32>} : memref<8x8x64xf32, #tpu.memory_space<vmem>>, vector<1x8x32xf32>,
    %c3_i32 = arith.constant 3 : i32
    %133 = arith.index_cast %c3_i32 : i32 to index
    %c0_35 = arith.constant 0 : index
    %c0_36 = arith.constant 0 : index
    %134 = vector.load %arg0[%133, %c0_35, %c0_36] : memref<8x8x256xbf16, #tpu.memory_space<vmem>>, vector<1x8x256xbf16>
    %135 = vector.shape_cast %134 : vector<1x8x256xbf16> to vector<8x256xbf16>
    %136 = arith.extf %135 : vector<8x256xbf16> to vector<8x256xf32>
    %cst_37 = arith.constant dense<0.000000e+00> : vector<8x256xf32>
    %137 = tpu.matmul %119, %0, %cst_37 {dimension_numbers = #tpu.dot_dimension_numbers<[1], [0], [0], [1], [0, 0, 1, 1], [], []>} : vector<8x64xf32>, vector<64x256xf32>, vector<8x256xf32> -> vector<8x256xf32>
    %138 = arith.addf %136, %137 : vector<8x256xf32>
    %139 = arith.negf %138 : vector<8x256xf32>
    %140 = math.exp %139 : vector<8x256xf32>
    %cst_38 = arith.constant 1.000000e+00 : f32
    %141 = vector.broadcast %cst_38 : f32 to vector<8x256xf32>
    %142 = arith.addf %141, %140 : vector<8x256xf32>
    %143 = arith.divf %141, %142 : vector<8x256xf32>
    %144 = math.tanh %138 : vector<8x256xf32>
    %145 = vector.extract_strided_slice %143 {offsets = [0, 0], sizes = [8, 64], strides = [1, 1]} : vector<8x256xf32> to vector<8x64xf32>
    %146 = vector.extract_strided_slice %143 {offsets = [0, 64], sizes = [8, 64], strides = [1, 1]} : vector<8x256xf32> to vector<8x64xf32>
    %147 = vector.extract_strided_slice %144 {offsets = [0, 128], sizes = [8, 64], strides = [1, 1]} : vector<8x256xf32> to vector<8x64xf32>
    %148 = vector.extract_strided_slice %143 {offsets = [0, 192], sizes = [8, 64], strides = [1, 1]} : vector<8x256xf32> to vector<8x64xf32>
    %149 = arith.mulf %146, %118 : vector<8x64xf32>
    %150 = arith.mulf %145, %147 : vector<8x64xf32>
    %151 = arith.addf %149, %150 : vector<8x64xf32>
    %152 = math.tanh %151 : vector<8x64xf32>
    %153 = arith.mulf %148, %152 : vector<8x64xf32>
    %c7_i32_39 = arith.constant 7 : i32
    %154 = arith.subi %c7_i32_39, %c3_i32 : i32
    %155 = vector.broadcast %154 : i32 to vector<8x64xi32>
    %156 = vector.broadcast %c3_i32 : i32 to vector<8x64xi32>
    %157 = arith.select %4, %155, %156 : vector<8x64xi1>, vector<8x64xi32>
    %158 = vector.broadcast %1 : vector<8x1xi32> to vector<8x64xi32>
    %159 = arith.cmpi slt, %157, %158 : vector<8x64xi32>
    %160 = arith.select %159, %151, %118 : vector<8x64xi1>, vector<8x64xf32>
    %161 = arith.select %159, %153, %119 : vector<8x64xi1>, vector<8x64xf32>
    %cst_40 = arith.constant 0.000000e+00 : f32
    %162 = vector.broadcast %cst_40 : f32 to vector<8x64xf32>
    %163 = arith.select %159, %153, %162 : vector<8x64xi1>, vector<8x64xf32>
    %164 = vector.extract_strided_slice %163 {offsets = [0, 0], sizes = [8, 32], strides = [1, 1]} : vector<8x64xf32> to vector<8x32xf32>
    %165 = arith.index_cast %c3_i32 : i32 to index
    %c0_41 = arith.constant 0 : index
    %c0_42 = arith.constant 0 : index
    %166 = vector.load %arg3[%165, %c0_41, %c0_42] : memref<8x8x64xf32, #tpu.memory_space<vmem>>, vector<1x8x32xf32>
    %167 = vector.shape_cast %166 : vector<1x8x32xf32> to vector<8x32xf32>
    %168 = vector.shape_cast %164 : vector<8x32xf32> to vector<1x8x32xf32>
    tpu.vector_store %arg3[%165, %c0_41, %c0_42], %168 {strides = array<i32>} : memref<8x8x64xf32, #tpu.memory_space<vmem>>, vector<1x8x32xf32>,
    %169 = vector.extract_strided_slice %163 {offsets = [0, 32], sizes = [8, 32], strides = [1, 1]} : vector<8x64xf32> to vector<8x32xf32>
    %c7_i32_43 = arith.constant 7 : i32
    %170 = arith.subi %c7_i32_43, %c3_i32 : i32
    %171 = arith.index_cast %170 : i32 to index
    %c0_44 = arith.constant 0 : index
    %c32_45 = arith.constant 32 : index
    %172 = vector.load %arg3[%171, %c0_44, %c32_45] : memref<8x8x64xf32, #tpu.memory_space<vmem>>, vector<1x8x32xf32>
    %173 = vector.shape_cast %172 : vector<1x8x32xf32> to vector<8x32xf32>
    %174 = vector.shape_cast %169 : vector<8x32xf32> to vector<1x8x32xf32>
    tpu.vector_store %arg3[%171, %c0_44, %c32_45], %174 {strides = array<i32>} : memref<8x8x64xf32, #tpu.memory_space<vmem>>, vector<1x8x32xf32>,
    %c4_i32 = arith.constant 4 : i32
    %175 = arith.index_cast %c4_i32 : i32 to index
    %c0_46 = arith.constant 0 : index
    %c0_47 = arith.constant 0 : index
    %176 = vector.load %arg0[%175, %c0_46, %c0_47] : memref<8x8x256xbf16, #tpu.memory_space<vmem>>, vector<1x8x256xbf16>
    %177 = vector.shape_cast %176 : vector<1x8x256xbf16> to vector<8x256xbf16>
    %178 = arith.extf %177 : vector<8x256xbf16> to vector<8x256xf32>
    %cst_48 = arith.constant dense<0.000000e+00> : vector<8x256xf32>
    %179 = tpu.matmul %161, %0, %cst_48 {dimension_numbers = #tpu.dot_dimension_numbers<[1], [0], [0], [1], [0, 0, 1, 1], [], []>} : vector<8x64xf32>, vector<64x256xf32>, vector<8x256xf32> -> vector<8x256xf32>
    %180 = arith.addf %178, %179 : vector<8x256xf32>
    %181 = arith.negf %180 : vector<8x256xf32>
    %182 = math.exp %181 : vector<8x256xf32>
    %cst_49 = arith.constant 1.000000e+00 : f32
    %183 = vector.broadcast %cst_49 : f32 to vector<8x256xf32>
    %184 = arith.addf %183, %182 : vector<8x256xf32>
    %185 = arith.divf %183, %184 : vector<8x256xf32>
    %186 = math.tanh %180 : vector<8x256xf32>
    %187 = vector.extract_strided_slice %185 {offsets = [0, 0], sizes = [8, 64], strides = [1, 1]} : vector<8x256xf32> to vector<8x64xf32>
    %188 = vector.extract_strided_slice %185 {offsets = [0, 64], sizes = [8, 64], strides = [1, 1]} : vector<8x256xf32> to vector<8x64xf32>
    %189 = vector.extract_strided_slice %186 {offsets = [0, 128], sizes = [8, 64], strides = [1, 1]} : vector<8x256xf32> to vector<8x64xf32>
    %190 = vector.extract_strided_slice %185 {offsets = [0, 192], sizes = [8, 64], strides = [1, 1]} : vector<8x256xf32> to vector<8x64xf32>
    %191 = arith.mulf %188, %160 : vector<8x64xf32>
    %192 = arith.mulf %187, %189 : vector<8x64xf32>
    %193 = arith.addf %191, %192 : vector<8x64xf32>
    %194 = math.tanh %193 : vector<8x64xf32>
    %195 = arith.mulf %190, %194 : vector<8x64xf32>
    %c7_i32_50 = arith.constant 7 : i32
    %196 = arith.subi %c7_i32_50, %c4_i32 : i32
    %197 = vector.broadcast %196 : i32 to vector<8x64xi32>
    %198 = vector.broadcast %c4_i32 : i32 to vector<8x64xi32>
    %199 = arith.select %4, %197, %198 : vector<8x64xi1>, vector<8x64xi32>
    %200 = vector.broadcast %1 : vector<8x1xi32> to vector<8x64xi32>
    %201 = arith.cmpi slt, %199, %200 : vector<8x64xi32>
    %202 = arith.select %201, %193, %160 : vector<8x64xi1>, vector<8x64xf32>
    %203 = arith.select %201, %195, %161 : vector<8x64xi1>, vector<8x64xf32>
    %cst_51 = arith.constant 0.000000e+00 : f32
    %204 = vector.broadcast %cst_51 : f32 to vector<8x64xf32>
    %205 = arith.select %201, %195, %204 : vector<8x64xi1>, vector<8x64xf32>
    %206 = vector.extract_strided_slice %205 {offsets = [0, 0], sizes = [8, 32], strides = [1, 1]} : vector<8x64xf32> to vector<8x32xf32>
    %207 = arith.index_cast %c4_i32 : i32 to index
    %c0_52 = arith.constant 0 : index
    %c0_53 = arith.constant 0 : index
    %208 = vector.load %arg3[%207, %c0_52, %c0_53] : memref<8x8x64xf32, #tpu.memory_space<vmem>>, vector<1x8x32xf32>
    %209 = vector.shape_cast %208 : vector<1x8x32xf32> to vector<8x32xf32>
    %210 = vector.shape_cast %206 : vector<8x32xf32> to vector<1x8x32xf32>
    tpu.vector_store %arg3[%207, %c0_52, %c0_53], %210 {strides = array<i32>} : memref<8x8x64xf32, #tpu.memory_space<vmem>>, vector<1x8x32xf32>,
    %211 = vector.extract_strided_slice %205 {offsets = [0, 32], sizes = [8, 32], strides = [1, 1]} : vector<8x64xf32> to vector<8x32xf32>
    %c7_i32_54 = arith.constant 7 : i32
    %212 = arith.subi %c7_i32_54, %c4_i32 : i32
    %213 = arith.index_cast %212 : i32 to index
    %c0_55 = arith.constant 0 : index
    %c32_56 = arith.constant 32 : index
    %214 = vector.load %arg3[%213, %c0_55, %c32_56] : memref<8x8x64xf32, #tpu.memory_space<vmem>>, vector<1x8x32xf32>
    %215 = vector.shape_cast %214 : vector<1x8x32xf32> to vector<8x32xf32>
    %216 = vector.shape_cast %211 : vector<8x32xf32> to vector<1x8x32xf32>
    tpu.vector_store %arg3[%213, %c0_55, %c32_56], %216 {strides = array<i32>} : memref<8x8x64xf32, #tpu.memory_space<vmem>>, vector<1x8x32xf32>,
    %c5_i32 = arith.constant 5 : i32
    %217 = arith.index_cast %c5_i32 : i32 to index
    %c0_57 = arith.constant 0 : index
    %c0_58 = arith.constant 0 : index
    %218 = vector.load %arg0[%217, %c0_57, %c0_58] : memref<8x8x256xbf16, #tpu.memory_space<vmem>>, vector<1x8x256xbf16>
    %219 = vector.shape_cast %218 : vector<1x8x256xbf16> to vector<8x256xbf16>
    %220 = arith.extf %219 : vector<8x256xbf16> to vector<8x256xf32>
    %cst_59 = arith.constant dense<0.000000e+00> : vector<8x256xf32>
    %221 = tpu.matmul %203, %0, %cst_59 {dimension_numbers = #tpu.dot_dimension_numbers<[1], [0], [0], [1], [0, 0, 1, 1], [], []>} : vector<8x64xf32>, vector<64x256xf32>, vector<8x256xf32> -> vector<8x256xf32>
    %222 = arith.addf %220, %221 : vector<8x256xf32>
    %223 = arith.negf %222 : vector<8x256xf32>
    %224 = math.exp %223 : vector<8x256xf32>
    %cst_60 = arith.constant 1.000000e+00 : f32
    %225 = vector.broadcast %cst_60 : f32 to vector<8x256xf32>
    %226 = arith.addf %225, %224 : vector<8x256xf32>
    %227 = arith.divf %225, %226 : vector<8x256xf32>
    %228 = math.tanh %222 : vector<8x256xf32>
    %229 = vector.extract_strided_slice %227 {offsets = [0, 0], sizes = [8, 64], strides = [1, 1]} : vector<8x256xf32> to vector<8x64xf32>
    %230 = vector.extract_strided_slice %227 {offsets = [0, 64], sizes = [8, 64], strides = [1, 1]} : vector<8x256xf32> to vector<8x64xf32>
    %231 = vector.extract_strided_slice %228 {offsets = [0, 128], sizes = [8, 64], strides = [1, 1]} : vector<8x256xf32> to vector<8x64xf32>
    %232 = vector.extract_strided_slice %227 {offsets = [0, 192], sizes = [8, 64], strides = [1, 1]} : vector<8x256xf32> to vector<8x64xf32>
    %233 = arith.mulf %230, %202 : vector<8x64xf32>
    %234 = arith.mulf %229, %231 : vector<8x64xf32>
    %235 = arith.addf %233, %234 : vector<8x64xf32>
    %236 = math.tanh %235 : vector<8x64xf32>
    %237 = arith.mulf %232, %236 : vector<8x64xf32>
    %c7_i32_61 = arith.constant 7 : i32
    %238 = arith.subi %c7_i32_61, %c5_i32 : i32
    %239 = vector.broadcast %238 : i32 to vector<8x64xi32>
    %240 = vector.broadcast %c5_i32 : i32 to vector<8x64xi32>
    %241 = arith.select %4, %239, %240 : vector<8x64xi1>, vector<8x64xi32>
    %242 = vector.broadcast %1 : vector<8x1xi32> to vector<8x64xi32>
    %243 = arith.cmpi slt, %241, %242 : vector<8x64xi32>
    %244 = arith.select %243, %235, %202 : vector<8x64xi1>, vector<8x64xf32>
    %245 = arith.select %243, %237, %203 : vector<8x64xi1>, vector<8x64xf32>
    %cst_62 = arith.constant 0.000000e+00 : f32
    %246 = vector.broadcast %cst_62 : f32 to vector<8x64xf32>
    %247 = arith.select %243, %237, %246 : vector<8x64xi1>, vector<8x64xf32>
    %248 = vector.extract_strided_slice %247 {offsets = [0, 0], sizes = [8, 32], strides = [1, 1]} : vector<8x64xf32> to vector<8x32xf32>
    %249 = arith.index_cast %c5_i32 : i32 to index
    %c0_63 = arith.constant 0 : index
    %c0_64 = arith.constant 0 : index
    %250 = vector.load %arg3[%249, %c0_63, %c0_64] : memref<8x8x64xf32, #tpu.memory_space<vmem>>, vector<1x8x32xf32>
    %251 = vector.shape_cast %250 : vector<1x8x32xf32> to vector<8x32xf32>
    %252 = vector.shape_cast %248 : vector<8x32xf32> to vector<1x8x32xf32>
    tpu.vector_store %arg3[%249, %c0_63, %c0_64], %252 {strides = array<i32>} : memref<8x8x64xf32, #tpu.memory_space<vmem>>, vector<1x8x32xf32>,
    %253 = vector.extract_strided_slice %247 {offsets = [0, 32], sizes = [8, 32], strides = [1, 1]} : vector<8x64xf32> to vector<8x32xf32>
    %c7_i32_65 = arith.constant 7 : i32
    %254 = arith.subi %c7_i32_65, %c5_i32 : i32
    %255 = arith.index_cast %254 : i32 to index
    %c0_66 = arith.constant 0 : index
    %c32_67 = arith.constant 32 : index
    %256 = vector.load %arg3[%255, %c0_66, %c32_67] : memref<8x8x64xf32, #tpu.memory_space<vmem>>, vector<1x8x32xf32>
    %257 = vector.shape_cast %256 : vector<1x8x32xf32> to vector<8x32xf32>
    %258 = vector.shape_cast %253 : vector<8x32xf32> to vector<1x8x32xf32>
    tpu.vector_store %arg3[%255, %c0_66, %c32_67], %258 {strides = array<i32>} : memref<8x8x64xf32, #tpu.memory_space<vmem>>, vector<1x8x32xf32>,
    %c6_i32 = arith.constant 6 : i32
    %259 = arith.index_cast %c6_i32 : i32 to index
    %c0_68 = arith.constant 0 : index
    %c0_69 = arith.constant 0 : index
    %260 = vector.load %arg0[%259, %c0_68, %c0_69] : memref<8x8x256xbf16, #tpu.memory_space<vmem>>, vector<1x8x256xbf16>
    %261 = vector.shape_cast %260 : vector<1x8x256xbf16> to vector<8x256xbf16>
    %262 = arith.extf %261 : vector<8x256xbf16> to vector<8x256xf32>
    %cst_70 = arith.constant dense<0.000000e+00> : vector<8x256xf32>
    %263 = tpu.matmul %245, %0, %cst_70 {dimension_numbers = #tpu.dot_dimension_numbers<[1], [0], [0], [1], [0, 0, 1, 1], [], []>} : vector<8x64xf32>, vector<64x256xf32>, vector<8x256xf32> -> vector<8x256xf32>
    %264 = arith.addf %262, %263 : vector<8x256xf32>
    %265 = arith.negf %264 : vector<8x256xf32>
    %266 = math.exp %265 : vector<8x256xf32>
    %cst_71 = arith.constant 1.000000e+00 : f32
    %267 = vector.broadcast %cst_71 : f32 to vector<8x256xf32>
    %268 = arith.addf %267, %266 : vector<8x256xf32>
    %269 = arith.divf %267, %268 : vector<8x256xf32>
    %270 = math.tanh %264 : vector<8x256xf32>
    %271 = vector.extract_strided_slice %269 {offsets = [0, 0], sizes = [8, 64], strides = [1, 1]} : vector<8x256xf32> to vector<8x64xf32>
    %272 = vector.extract_strided_slice %269 {offsets = [0, 64], sizes = [8, 64], strides = [1, 1]} : vector<8x256xf32> to vector<8x64xf32>
    %273 = vector.extract_strided_slice %270 {offsets = [0, 128], sizes = [8, 64], strides = [1, 1]} : vector<8x256xf32> to vector<8x64xf32>
    %274 = vector.extract_strided_slice %269 {offsets = [0, 192], sizes = [8, 64], strides = [1, 1]} : vector<8x256xf32> to vector<8x64xf32>
    %275 = arith.mulf %272, %244 : vector<8x64xf32>
    %276 = arith.mulf %271, %273 : vector<8x64xf32>
    %277 = arith.addf %275, %276 : vector<8x64xf32>
    %278 = math.tanh %277 : vector<8x64xf32>
    %279 = arith.mulf %274, %278 : vector<8x64xf32>
    %c7_i32_72 = arith.constant 7 : i32
    %280 = arith.subi %c7_i32_72, %c6_i32 : i32
    %281 = vector.broadcast %280 : i32 to vector<8x64xi32>
    %282 = vector.broadcast %c6_i32 : i32 to vector<8x64xi32>
    %283 = arith.select %4, %281, %282 : vector<8x64xi1>, vector<8x64xi32>
    %284 = vector.broadcast %1 : vector<8x1xi32> to vector<8x64xi32>
    %285 = arith.cmpi slt, %283, %284 : vector<8x64xi32>
    %286 = arith.select %285, %277, %244 : vector<8x64xi1>, vector<8x64xf32>
    %287 = arith.select %285, %279, %245 : vector<8x64xi1>, vector<8x64xf32>
    %cst_73 = arith.constant 0.000000e+00 : f32
    %288 = vector.broadcast %cst_73 : f32 to vector<8x64xf32>
    %289 = arith.select %285, %279, %288 : vector<8x64xi1>, vector<8x64xf32>
    %290 = vector.extract_strided_slice %289 {offsets = [0, 0], sizes = [8, 32], strides = [1, 1]} : vector<8x64xf32> to vector<8x32xf32>
    %291 = arith.index_cast %c6_i32 : i32 to index
    %c0_74 = arith.constant 0 : index
    %c0_75 = arith.constant 0 : index
    %292 = vector.load %arg3[%291, %c0_74, %c0_75] : memref<8x8x64xf32, #tpu.memory_space<vmem>>, vector<1x8x32xf32>
    %293 = vector.shape_cast %292 : vector<1x8x32xf32> to vector<8x32xf32>
    %294 = vector.shape_cast %290 : vector<8x32xf32> to vector<1x8x32xf32>
    tpu.vector_store %arg3[%291, %c0_74, %c0_75], %294 {strides = array<i32>} : memref<8x8x64xf32, #tpu.memory_space<vmem>>, vector<1x8x32xf32>,
    %295 = vector.extract_strided_slice %289 {offsets = [0, 32], sizes = [8, 32], strides = [1, 1]} : vector<8x64xf32> to vector<8x32xf32>
    %c7_i32_76 = arith.constant 7 : i32
    %296 = arith.subi %c7_i32_76, %c6_i32 : i32
    %297 = arith.index_cast %296 : i32 to index
    %c0_77 = arith.constant 0 : index
    %c32_78 = arith.constant 32 : index
    %298 = vector.load %arg3[%297, %c0_77, %c32_78] : memref<8x8x64xf32, #tpu.memory_space<vmem>>, vector<1x8x32xf32>
    %299 = vector.shape_cast %298 : vector<1x8x32xf32> to vector<8x32xf32>
    %300 = vector.shape_cast %295 : vector<8x32xf32> to vector<1x8x32xf32>
    tpu.vector_store %arg3[%297, %c0_77, %c32_78], %300 {strides = array<i32>} : memref<8x8x64xf32, #tpu.memory_space<vmem>>, vector<1x8x32xf32>,
    %c7_i32_79 = arith.constant 7 : i32
    %301 = arith.index_cast %c7_i32_79 : i32 to index
    %c0_80 = arith.constant 0 : index
    %c0_81 = arith.constant 0 : index
    %302 = vector.load %arg0[%301, %c0_80, %c0_81] : memref<8x8x256xbf16, #tpu.memory_space<vmem>>, vector<1x8x256xbf16>
    %303 = vector.shape_cast %302 : vector<1x8x256xbf16> to vector<8x256xbf16>
    %304 = arith.extf %303 : vector<8x256xbf16> to vector<8x256xf32>
    %cst_82 = arith.constant dense<0.000000e+00> : vector<8x256xf32>
    %305 = tpu.matmul %287, %0, %cst_82 {dimension_numbers = #tpu.dot_dimension_numbers<[1], [0], [0], [1], [0, 0, 1, 1], [], []>} : vector<8x64xf32>, vector<64x256xf32>, vector<8x256xf32> -> vector<8x256xf32>
    %306 = arith.addf %304, %305 : vector<8x256xf32>
    %307 = arith.negf %306 : vector<8x256xf32>
    %308 = math.exp %307 : vector<8x256xf32>
    %cst_83 = arith.constant 1.000000e+00 : f32
    %309 = vector.broadcast %cst_83 : f32 to vector<8x256xf32>
    %310 = arith.addf %309, %308 : vector<8x256xf32>
    %311 = arith.divf %309, %310 : vector<8x256xf32>
    %312 = math.tanh %306 : vector<8x256xf32>
    %313 = vector.extract_strided_slice %311 {offsets = [0, 0], sizes = [8, 64], strides = [1, 1]} : vector<8x256xf32> to vector<8x64xf32>
    %314 = vector.extract_strided_slice %311 {offsets = [0, 64], sizes = [8, 64], strides = [1, 1]} : vector<8x256xf32> to vector<8x64xf32>
    %315 = vector.extract_strided_slice %312 {offsets = [0, 128], sizes = [8, 64], strides = [1, 1]} : vector<8x256xf32> to vector<8x64xf32>
    %316 = vector.extract_strided_slice %311 {offsets = [0, 192], sizes = [8, 64], strides = [1, 1]} : vector<8x256xf32> to vector<8x64xf32>
    %317 = arith.mulf %314, %286 : vector<8x64xf32>
    %318 = arith.mulf %313, %315 : vector<8x64xf32>
    %319 = arith.addf %317, %318 : vector<8x64xf32>
    %320 = math.tanh %319 : vector<8x64xf32>
    %321 = arith.mulf %316, %320 : vector<8x64xf32>
    %c7_i32_84 = arith.constant 7 : i32
    %322 = arith.subi %c7_i32_84, %c7_i32_79 : i32
    %323 = vector.broadcast %322 : i32 to vector<8x64xi32>
    %324 = vector.broadcast %c7_i32_79 : i32 to vector<8x64xi32>
    %325 = arith.select %4, %323, %324 : vector<8x64xi1>, vector<8x64xi32>
    %326 = vector.broadcast %1 : vector<8x1xi32> to vector<8x64xi32>
    %327 = arith.cmpi slt, %325, %326 : vector<8x64xi32>
    %328 = arith.select %327, %319, %286 : vector<8x64xi1>, vector<8x64xf32>
    %329 = arith.select %327, %321, %287 : vector<8x64xi1>, vector<8x64xf32>
    %cst_85 = arith.constant 0.000000e+00 : f32
    %330 = vector.broadcast %cst_85 : f32 to vector<8x64xf32>
    %331 = arith.select %327, %321, %330 : vector<8x64xi1>, vector<8x64xf32>
    %332 = vector.extract_strided_slice %331 {offsets = [0, 0], sizes = [8, 32], strides = [1, 1]} : vector<8x64xf32> to vector<8x32xf32>
    %333 = arith.index_cast %c7_i32_79 : i32 to index
    %c0_86 = arith.constant 0 : index
    %c0_87 = arith.constant 0 : index
    %334 = vector.load %arg3[%333, %c0_86, %c0_87] : memref<8x8x64xf32, #tpu.memory_space<vmem>>, vector<1x8x32xf32>
    %335 = vector.shape_cast %334 : vector<1x8x32xf32> to vector<8x32xf32>
    %336 = vector.shape_cast %332 : vector<8x32xf32> to vector<1x8x32xf32>
    tpu.vector_store %arg3[%333, %c0_86, %c0_87], %336 {strides = array<i32>} : memref<8x8x64xf32, #tpu.memory_space<vmem>>, vector<1x8x32xf32>,
    %337 = vector.extract_strided_slice %331 {offsets = [0, 32], sizes = [8, 32], strides = [1, 1]} : vector<8x64xf32> to vector<8x32xf32>
    %c7_i32_88 = arith.constant 7 : i32
    %338 = arith.subi %c7_i32_88, %c7_i32_79 : i32
    %339 = arith.index_cast %338 : i32 to index
    %c0_89 = arith.constant 0 : index
    %c32_90 = arith.constant 32 : index
    %340 = vector.load %arg3[%339, %c0_89, %c32_90] : memref<8x8x64xf32, #tpu.memory_space<vmem>>, vector<1x8x32xf32>
    %341 = vector.shape_cast %340 : vector<1x8x32xf32> to vector<8x32xf32>
    %342 = vector.shape_cast %337 : vector<8x32xf32> to vector<1x8x32xf32>
    tpu.vector_store %arg3[%339, %c0_89, %c32_90], %342 {strides = array<i32>} : memref<8x8x64xf32, #tpu.memory_space<vmem>>, vector<1x8x32xf32>,
    %c8_i32 = arith.constant 8 : i32
    %c0_91 = arith.constant 0 : index
    %c0_92 = arith.constant 0 : index
    %343 = vector.load %arg4[%c0_91, %c0_92] : memref<8x64xf32, #tpu.memory_space<vmem>>, vector<8x64xf32>
    tpu.vector_store %arg4[%c0_91, %c0_92], %328 {strides = array<i32>} : memref<8x64xf32, #tpu.memory_space<vmem>>, vector<8x64xf32>,
    return
  }
}

</mosaic_0001>

<llo_original>
// kernel: squeeze.2
$region0: #{squeeze.2}
  %s0 = inlined_call_operand.vmem [shape: bf16[1,8,8,128], index: 0, kind: input, shape index: {}]
  %s1 = inlined_call_operand.vmem [shape: bf16[8,8,4,1,32], index: 1, kind: output, shape index: {}]
  $region1: #{squeeze.2} parent=0
    #allocation0 [shape = 'u8[1048576]{0}', space=vmem, size = 0x100000, scoped, tag = 'scoped mem for output reshape']
    #allocation1 [shape = 'u8[32768]{0}', space=vmem, size = 0x8000, scoped, tag = 'scoped mem for input reshape']
    %s3 = smul.u32 4, 2
    %s4 = sshll.u32 1, %s3
    %s5 = ssub.s32 %s4, 1
    %s6 = smul.addr 4, 7
    %s7 = scalar_lea.vmem %s0, %s6
    %s8 = sshrl.u32 %s5, 1
    %s9 = sor.u32 %s5, %s8
    %s10 = sand.u32 %s9, 85
    %s11 = sshrl.u32 %s10, 1
    %s12 = sor.u32 %s10, %s11
    %s13 = sand.u32 51, %s12
    %s14 = sshrl.u32 %s13, 2
    %s15 = sor.u32 %s13, %s14
    %s16 = sand.u32 15, %s15
    %v17 = vld [vmem:[%s7] sm:%s16]
    %v18 = vunpack.c.l.bf16 %v17
    %v19 = vunpack.c.h.bf16 %v17
    %s20 = scalar_lea.vmem [#allocation1], 56
    %21 = vst [vmem:[%s20] sm:%s5] %v18
    %s22 = smul.addr 4, 6
    %s23 = scalar_lea.vmem %s0, %s22
    %s24 = sshrl.u32 %s5, 1
    %s25 = sor.u32 %s5, %s24
    %s26 = sand.u32 %s25, 85
    %s27 = sshrl.u32 %s26, 1
    %s28 = sor.u32 %s26, %s27
    %s29 = sand.u32 51, %s28
    %s30 = sshrl.u32 %s29, 2
    %s31 = sor.u32 %s29, %s30
    %s32 = sand.u32 15, %s31
    %v33 = vld [vmem:[%s23] sm:%s32]
    %v34 = vunpack.c.l.bf16 %v33
    %v35 = vunpack.c.h.bf16 %v33
    %s36 = scalar_lea.vmem [#allocation1], 48
    %37 = vst [vmem:[%s36] sm:%s5] %v34
    %s38 = smul.addr 4, 5
    %s39 = scalar_lea.vmem %s0, %s38
    %s40 = sshrl.u32 %s5, 1
    %s41 = sor.u32 %s5, %s40
    %s42 = sand.u32 %s41, 85
    %s43 = sshrl.u32 %s42, 1
    %s44 = sor.u32 %s42, %s43
    %s45 = sand.u32 51, %s44
    %s46 = sshrl.u32 %s45, 2
    %s47 = sor.u32 %s45, %s46
    %s48 = sand.u32 15, %s47
    %v49 = vld [vmem:[%s39] sm:%s48]
    %v50 = vunpack.c.l.bf16 %v49
    %v51 = vunpack.c.h.bf16 %v49
    %s52 = scalar_lea.vmem [#allocation1], 40
    %53 = vst [vmem:[%s52] sm:%s5] %v50
    %s54 = smul.addr 4, 4
    %s55 = scalar_lea.vmem %s0, %s54
    %s56 = sshrl.u32 %s5, 1
    %s57 = sor.u32 %s5, %s56
    %s58 = sand.u32 %s57, 85
    %s59 = sshrl.u32 %s58, 1
    %s60 = sor.u32 %s58, %s59
    %s61 = sand.u32 51, %s60
    %s62 = sshrl.u32 %s61, 2
    %s63 = sor.u32 %s61, %s62
    %s64 = sand.u32 15, %s63
    %v65 = vld [vmem:[%s55] sm:%s64]
    %v66 = vunpack.c.l.bf16 %v65
    %v67 = vunpack.c.h.bf16 %v65
    %s68 = scalar_lea.vmem [#allocation1], 32
    %69 = vst [vmem:[%s68] sm:%s5] %v66
    %s70 = smul.addr 4, 3
    %s71 = scalar_lea.vmem %s0, %s70
    %s72 = sshrl.u32 %s5, 1
    %s73 = sor.u32 %s5, %s72
    %s74 = sand.u32 %s73, 85
    %s75 = sshrl.u32 %s74, 1
    %s76 = sor.u32 %s74, %s75
    %s77 = sand.u32 51, %s76
    %s78 = sshrl.u32 %s77, 2
    %s79 = sor.u32 %s77, %s78
    %s80 = sand.u32 15, %s79
    %v81 = vld [vmem:[%s71] sm:%s80]
    %v82 = vunpack.c.l.bf16 %v81
    %v83 = vunpack.c.h.bf16 %v81
    %s84 = scalar_lea.vmem [#allocation1], 24
    %85 = vst [vmem:[%s84] sm:%s5] %v82
    %s86 = smul.addr 4, 2
    %s87 = scalar_lea.vmem %s0, %s86
    %s88 = sshrl.u32 %s5, 1
    %s89 = sor.u32 %s5, %s88
    %s90 = sand.u32 %s89, 85
    %s91 = sshrl.u32 %s90, 1
    %s92 = sor.u32 %s90, %s91
    %s93 = sand.u32 51, %s92
    %s94 = sshrl.u32 %s93, 2
    %s95 = sor.u32 %s93, %s94
    %s96 = sand.u32 15, %s95
    %v97 = vld [vmem:[%s87] sm:%s96]
    %v98 = vunpack.c.l.bf16 %v97
    %v99 = vunpack.c.h.bf16 %v97
    %s100 = scalar_lea.vmem [#allocation1], 16
    %101 = vst [vmem:[%s100] sm:%s5] %v98
    %s102 = scalar_lea.vmem %s0, 4
    %s103 = sshrl.u32 %s5, 1
    %s104 = sor.u32 %s5, %s103
    %s105 = sand.u32 %s104, 85
    %s106 = sshrl.u32 %s105, 1
    %s107 = sor.u32 %s105, %s106
    %s108 = sand.u32 51, %s107
    %s109 = sshrl.u32 %s108, 2
    %s110 = sor.u32 %s108, %s109
    %s111 = sand.u32 15, %s110
    %v112 = vld [vmem:[%s102] sm:%s111]
    %v113 = vunpack.c.l.bf16 %v112
    %v114 = vunpack.c.h.bf16 %v112
    %s115 = scalar_lea.vmem [#allocation1], 8
    %116 = vst [vmem:[%s115] sm:%s5] %v113
    %s117 = sshrl.u32 %s5, 1
    %s118 = sor.u32 %s5, %s117
    %s119 = sand.u32 %s118, 85
    %s120 = sshrl.u32 %s119, 1
    %s121 = sor.u32 %s119, %s120
    %s122 = sand.u32 51, %s121
    %s123 = sshrl.u32 %s122, 2
    %s124 = sor.u32 %s122, %s123
    %s125 = sand.u32 15, %s124
    %v126 = vld [vmem:[%s0] sm:%s125]
    %v127 = vunpack.c.l.bf16 %v126
    %v128 = vunpack.c.h.bf16 %v126
    %129 = vst [vmem:[#allocation1] sm:%s5] %v127
    %v130 = vld [vmem:[#allocation1] sm:$0xff]
    %vm131 = vcmask 261120
    %132 = vst.msk [vmem:[#allocation0] sm:$0x1] %vm131, %v130
    %s133 = scalar_lea.vmem [#allocation0], 31
    %134 = vst.msk [vmem:[%s133] sm:$0x2] %vm131, %v130
    %s135 = scalar_lea.vmem [#allocation0], 62
    %136 = vst.msk [vmem:[%s135] sm:$0x4] %vm131, %v130
    %s137 = scalar_lea.vmem [#allocation0], 93
    %138 = vst.msk [vmem:[%s137] sm:$0x8] %vm131, %v130
    %s139 = scalar_lea.vmem [#allocation0], 124
    %140 = vst.msk [vmem:[%s139] sm:$0x10] %vm131, %v130
    %s141 = scalar_lea.vmem [#allocation0], 155
    %142 = vst.msk [vmem:[%s141] sm:$0x20] %vm131, %v130
    %s143 = scalar_lea.vmem [#allocation0], 186
    %144 = vst.msk [vmem:[%s143] sm:$0x40] %vm131, %v130
    %s145 = scalar_lea.vmem [#allocation0], 217
    %146 = vst.msk [vmem:[%s145] sm:$0x80] %vm131, %v130
    %s147 = scalar_lea.vmem [#allocation1], 8
    %v148 = vld [vmem:[%s147] sm:$0xff]
    %vm149 = vcmask 261120
    %s150 = scalar_lea.vmem [#allocation0], 256
    %151 = vst.msk [vmem:[%s150] sm:$0x1] %vm149, %v148
    %s152 = scalar_lea.vmem [#allocation0], 287
    %153 = vst.msk [vmem:[%s152] sm:$0x2] %vm149, %v148
    %s154 = scalar_lea.vmem [#allocation0], 318
    %155 = vst.msk [vmem:[%s154] sm:$0x4] %vm149, %v148
    %s156 = scalar_lea.vmem [#allocation0], 349
    %157 = vst.msk [vmem:[%s156] sm:$0x8] %vm149, %v148
    %s158 = scalar_lea.vmem [#allocation0], 380
    %159 = vst.msk [vmem:[%s158] sm:$0x10] %vm149, %v148
    %s160 = scalar_lea.vmem [#allocation0], 411
    %161 = vst.msk [vmem:[%s160] sm:$0x20] %vm149, %v148
    %s162 = scalar_lea.vmem [#allocation0], 442
    %163 = vst.msk [vmem:[%s162] sm:$0x40] %vm149, %v148
    %s164 = scalar_lea.vmem [#allocation0], 473
    %165 = vst.msk [vmem:[%s164] sm:$0x80] %vm149, %v148
    %s166 = scalar_lea.vmem [#allocation1], 16
    %v167 = vld [vmem:[%s166] sm:$0xff]
    %vm168 = vcmask 261120
    %s169 = scalar_lea.vmem [#allocation0], 512
    %170 = vst.msk [vmem:[%s169] sm:$0x1] %vm168, %v167
    %s171 = scalar_lea.vmem [#allocation0], 543
    %172 = vst.msk [vmem:[%s171] sm:$0x2] %vm168, %v167
    %s173 = scalar_lea.vmem [#allocation0], 574
    %174 = vst.msk [vmem:[%s173] sm:$0x4] %vm168, %v167
    %s175 = scalar_lea.vmem [#allocation0], 605
    %176 = vst.msk [vmem:[%s175] sm:$0x8] %vm168, %v167
    %s177 = scalar_lea.vmem [#allocation0], 636
    %178 = vst.msk [vmem:[%s177] sm:$0x10] %vm168, %v167
    %s179 = scalar_lea.vmem [#allocation0], 667
    %180 = vst.msk [vmem:[%s179] sm:$0x20] %vm168, %v167
    %s181 = scalar_lea.vmem [#allocation0], 698
    %182 = vst.msk [vmem:[%s181] sm:$0x40] %vm168, %v167
    %s183 = scalar_lea.vmem [#allocation0], 729
    %184 = vst.msk [vmem:[%s183] sm:$0x80] %vm168, %v167
    %s185 = scalar_lea.vmem [#allocation1], 24
    %v186 = vld [vmem:[%s185] sm:$0xff]
    %vm187 = vcmask 261120
    %s188 = scalar_lea.vmem [#allocation0], 768
    %189 = vst.msk [vmem:[%s188] sm:$0x1] %vm187, %v186
    %s190 = scalar_lea.vmem [#allocation0], 799
    %191 = vst.msk [vmem:[%s190] sm:$0x2] %vm187, %v186
    %s192 = scalar_lea.vmem [#allocation0], 830
    %193 = vst.msk [vmem:[%s192] sm:$0x4] %vm187, %v186
    %s194 = scalar_lea.vmem [#allocation0], 861
    %195 = vst.msk [vmem:[%s194] sm:$0x8] %vm187, %v186
    %s196 = scalar_lea.vmem [#allocation0], 892
    %197 = vst.msk [vmem:[%s196] sm:$0x10] %vm187, %v186
    %s198 = scalar_lea.vmem [#allocation0], 923
    %199 = vst.msk [vmem:[%s198] sm:$0x20] %vm187, %v186
    %s200 = scalar_lea.vmem [#allocation0], 954
    %201 = vst.msk [vmem:[%s200] sm:$0x40] %vm187, %v186
    %s202 = scalar_lea.vmem [#allocation0], 985
    %203 = vst.msk [vmem:[%s202] sm:$0x80] %vm187, %v186
    %s204 = scalar_lea.vmem [#allocation1], 32
    %v205 = vld [vmem:[%s204] sm:$0xff]
    %vm206 = vcmask 261120
    %s207 = scalar_lea.vmem [#allocation0], 1024
    %208 = vst.msk [vmem:[%s207] sm:$0x1] %vm206, %v205
    %s209 = scalar_lea.vmem [#allocation0], 1055
    %210 = vst.msk [vmem:[%s209] sm:$0x2] %vm206, %v205
    %s211 = scalar_lea.vmem [#allocation0], 1086
    %212 = vst.msk [vmem:[%s211] sm:$0x4] %vm206, %v205
    %s213 = scalar_lea.vmem [#allocation0], 1117
    %214 = vst.msk [vmem:[%s213] sm:$0x8] %vm206, %v205
    %s215 = scalar_lea.vmem [#allocation0], 1148
    %216 = vst.msk [vmem:[%s215] sm:$0x10] %vm206, %v205
    %s217 = scalar_lea.vmem [#allocation0], 1179
    %218 = vst.msk [vmem:[%s217] sm:$0x20] %vm206, %v205
    %s219 = scalar_lea.vmem [#allocation0], 1210
    %220 = vst.msk [vmem:[%s219] sm:$0x40] %vm206, %v205
    %s221 = scalar_lea.vmem [#allocation0], 1241
    %222 = vst.msk [vmem:[%s221] sm:$0x80] %vm206, %v205
    %s223 = scalar_lea.vmem [#allocation1], 40
    %v224 = vld [vmem:[%s223] sm:$0xff]
    %vm225 = vcmask 261120
    %s226 = scalar_lea.vmem [#allocation0], 1280
    %227 = vst.msk [vmem:[%s226] sm:$0x1] %vm225, %v224
    %s228 = scalar_lea.vmem [#allocation0], 1311
    %229 = vst.msk [vmem:[%s228] sm:$0x2] %vm225, %v224
    %s230 = scalar_lea.vmem [#allocation0], 1342
    %231 = vst.msk [vmem:[%s230] sm:$0x4] %vm225, %v224
    %s232 = scalar_lea.vmem [#allocation0], 1373
    %233 = vst.msk [vmem:[%s232] sm:$0x8] %vm225, %v224
    %s234 = scalar_lea.vmem [#allocation0], 1404
    %235 = vst.msk [vmem:[%s234] sm:$0x10] %vm225, %v224
    %s236 = scalar_lea.vmem [#allocation0], 1435
    %237 = vst.msk [vmem:[%s236] sm:$0x20] %vm225, %v224
    %s238 = scalar_lea.vmem [#allocation0], 1466
    %239 = vst.msk [vmem:[%s238] sm:$0x40] %vm225, %v224
    %s240 = scalar_lea.vmem [#allocation0], 1497
    %241 = vst.msk [vmem:[%s240] sm:$0x80] %vm225, %v224
    %s242 = scalar_lea.vmem [#allocation1], 48
    %v243 = vld [vmem:[%s242] sm:$0xff]
    %vm244 = vcmask 261120
    %s245 = scalar_lea.vmem [#allocation0], 1536
    %246 = vst.msk [vmem:[%s245] sm:$0x1] %vm244, %v243
    %s247 = scalar_lea.vmem [#allocation0], 1567
    %248 = vst.msk [vmem:[%s247] sm:$0x2] %vm244, %v243
    %s249 = scalar_lea.vmem [#allocation0], 1598
    %250 = vst.msk [vmem:[%s249] sm:$0x4] %vm244, %v243
    %s251 = scalar_lea.vmem [#allocation0], 1629
    %252 = vst.msk [vmem:[%s251] sm:$0x8] %vm244, %v243
    %s253 = scalar_lea.vmem [#allocation0], 1660
    %254 = vst.msk [vmem:[%s253] sm:$0x10] %vm244, %v243
    %s255 = scalar_lea.vmem [#allocation0], 1691
    %256 = vst.msk [vmem:[%s255] sm:$0x20] %vm244, %v243
    %s257 = scalar_lea.vmem [#allocation0], 1722
    %258 = vst.msk [vmem:[%s257] sm:$0x40] %vm244, %v243
    %s259 = scalar_lea.vmem [#allocation0], 1753
    %260 = vst.msk [vmem:[%s259] sm:$0x80] %vm244, %v243
    %s261 = scalar_lea.vmem [#allocation1], 56
    %v262 = vld [vmem:[%s261] sm:$0xff]
    %vm263 = vcmask 261120
    %s264 = scalar_lea.vmem [#allocation0], 1792
    %265 = vst.msk [vmem:[%s264] sm:$0x1] %vm263, %v262
    %s266 = scalar_lea.vmem [#allocation0], 1823
    %267 = vst.msk [vmem:[%s266] sm:$0x2] %vm263, %v262
    %s268 = scalar_lea.vmem [#allocation0], 1854
    %269 = vst.msk [vmem:[%s268] sm:$0x4] %vm263, %v262
    %s270 = scalar_lea.vmem [#allocation0], 1885
    %271 = vst.msk [vmem:[%s270] sm:$0x8] %vm263, %v262
    %s272 = scalar_lea.vmem [#allocation0], 1916
    %273 = vst.msk [vmem:[%s272] sm:$0x10] %vm263, %v262
    %s274 = scalar_lea.vmem [#allocation0], 1947
    %275 = vst.msk [vmem:[%s274] sm:$0x20] %vm263, %v262
    %s276 = scalar_lea.vmem [#allocation0], 1978
    %277 = vst.msk [vmem:[%s276] sm:$0x40] %vm263, %v262
    %s278 = scalar_lea.vmem [#allocation0], 2009
    %279 = vst.msk [vmem:[%s278] sm:$0x80] %vm263, %v262
    %v280 = vld [vmem:[#allocation1] sm:$0xff]
    %281 = vrot.lane.b32.xlu0 %v280, 96
    %v282 = vpop.permute.xlu0 %281
    %vm283 = vcmask 261120
    %s284 = scalar_lea.vmem [#allocation0], 8
    %285 = vst.msk [vmem:[%s284] sm:$0x1] %vm283, %v282
    %s286 = scalar_lea.vmem [#allocation0], 39
    %287 = vst.msk [vmem:[%s286] sm:$0x2] %vm283, %v282
    %s288 = scalar_lea.vmem [#allocation0], 70
    %289 = vst.msk [vmem:[%s288] sm:$0x4] %vm283, %v282
    %s290 = scalar_lea.vmem [#allocation0], 101
    %291 = vst.msk [vmem:[%s290] sm:$0x8] %vm283, %v282
    %s292 = scalar_lea.vmem [#allocation0], 132
    %293 = vst.msk [vmem:[%s292] sm:$0x10] %vm283, %v282
    %s294 = scalar_lea.vmem [#allocation0], 163
    %295 = vst.msk [vmem:[%s294] sm:$0x20] %vm283, %v282
    %s296 = scalar_lea.vmem [#allocation0], 194
    %297 = vst.msk [vmem:[%s296] sm:$0x40] %vm283, %v282
    %s298 = scalar_lea.vmem [#allocation0], 225
    %299 = vst.msk [vmem:[%s298] sm:$0x80] %vm283, %v282
    %s300 = scalar_lea.vmem [#allocation1], 8
    %v301 = vld [vmem:[%s300] sm:$0xff]
    %302 = vrot.lane.b32.xlu0 %v301, 96
    %v303 = vpop.permute.xlu0 %302
    %vm304 = vcmask 261120
    %s305 = scalar_lea.vmem [#allocation0], 264
    %306 = vst.msk [vmem:[%s305] sm:$0x1] %vm304, %v303
    %s307 = scalar_lea.vmem [#allocation0], 295
    %308 = vst.msk [vmem:[%s307] sm:$0x2] %vm304, %v303
    %s309 = scalar_lea.vmem [#allocation0], 326
    %310 = vst.msk [vmem:[%s309] sm:$0x4] %vm304, %v303
    %s311 = scalar_lea.vmem [#allocation0], 357
    %312 = vst.msk [vmem:[%s311] sm:$0x8] %vm304, %v303
    %s313 = scalar_lea.vmem [#allocation0], 388
    %314 = vst.msk [vmem:[%s313] sm:$0x10] %vm304, %v303
    %s315 = scalar_lea.vmem [#allocation0], 419
    %316 = vst.msk [vmem:[%s315] sm:$0x20] %vm304, %v303
    %s317 = scalar_lea.vmem [#allocation0], 450
    %318 = vst.msk [vmem:[%s317] sm:$0x40] %vm304, %v303
    %s319 = scalar_lea.vmem [#allocation0], 481
    %320 = vst.msk [vmem:[%s319] sm:$0x80] %vm304, %v303
    %s321 = scalar_lea.vmem [#allocation1], 16
    %v322 = vld [vmem:[%s321] sm:$0xff]
    %323 = vrot.lane.b32.xlu0 %v322, 96
    %v324 = vpop.permute.xlu0 %323
    %vm325 = vcmask 261120
    %s326 = scalar_lea.vmem [#allocation0], 520
    %327 = vst.msk [vmem:[%s326] sm:$0x1] %vm325, %v324
    %s328 = scalar_lea.vmem [#allocation0], 551
    %329 = vst.msk [vmem:[%s328] sm:$0x2] %vm325, %v324
    %s330 = scalar_lea.vmem [#allocation0], 582
    %331 = vst.msk [vmem:[%s330] sm:$0x4] %vm325, %v324
    %s332 = scalar_lea.vmem [#allocation0], 613
    %333 = vst.msk [vmem:[%s332] sm:$0x8] %vm325, %v324
    %s334 = scalar_lea.vmem [#allocation0], 644
    %335 = vst.msk [vmem:[%s334] sm:$0x10] %vm325, %v324
    %s336 = scalar_lea.vmem [#allocation0], 675
    %337 = vst.msk [vmem:[%s336] sm:$0x20] %vm325, %v324
    %s338 = scalar_lea.vmem [#allocation0], 706
    %339 = vst.msk [vmem:[%s338] sm:$0x40] %vm325, %v324
    %s340 = scalar_lea.vmem [#allocation0], 737
    %341 = vst.msk [vmem:[%s340] sm:$0x80] %vm325, %v324
    %s342 = scalar_lea.vmem [#allocation1], 24
    %v343 = vld [vmem:[%s342] sm:$0xff]
    %344 = vrot.lane.b32.xlu0 %v343, 96
    %v345 = vpop.permute.xlu0 %344
    %vm346 = vcmask 261120
    %s347 = scalar_lea.vmem [#allocation0], 776
    %348 = vst.msk [vmem:[%s347] sm:$0x1] %vm346, %v345
    %s349 = scalar_lea.vmem [#allocation0], 807
    %350 = vst.msk [vmem:[%s349] sm:$0x2] %vm346, %v345
    %s351 = scalar_lea.vmem [#allocation0], 838
    %352 = vst.msk [vmem:[%s351] sm:$0x4] %vm346, %v345
    %s353 = scalar_lea.vmem [#allocation0], 869
    %354 = vst.msk [vmem:[%s353] sm:$0x8] %vm346, %v345
    %s355 = scalar_lea.vmem [#allocation0], 900
    %356 = vst.msk [vmem:[%s355] sm:$0x10] %vm346, %v345
    %s357 = scalar_lea.vmem [#allocation0], 931
    %358 = vst.msk [vmem:[%s357] sm:$0x20] %vm346, %v345
    %s359 = scalar_lea.vmem [#allocation0], 962
    %360 = vst.msk [vmem:[%s359] sm:$0x40] %vm346, %v345
    %s361 = scalar_lea.vmem [#allocation0], 993
    %362 = vst.msk [vmem:[%s361] sm:$0x80] %vm346, %v345
    %s363 = scalar_lea.vmem [#allocation1], 32
    %v364 = vld [vmem:[%s363] sm:$0xff]
    %365 = vrot.lane.b32.xlu0 %v364, 96
    %v366 = vpop.permute.xlu0 %365
    %vm367 = vcmask 261120
    %s368 = scalar_lea.vmem [#allocation0], 1032
    %369 = vst.msk [vmem:[%s368] sm:$0x1] %vm367, %v366
    %s370 = scalar_lea.vmem [#allocation0], 1063
    %371 = vst.msk [vmem:[%s370] sm:$0x2] %vm367, %v366
    %s372 = scalar_lea.vmem [#allocation0], 1094
    %373 = vst.msk [vmem:[%s372] sm:$0x4] %vm367, %v366
    %s374 = scalar_lea.vmem [#allocation0], 1125
    %375 = vst.msk [vmem:[%s374] sm:$0x8] %vm367, %v366
    %s376 = scalar_lea.vmem [#allocation0], 1156
    %377 = vst.msk [vmem:[%s376] sm:$0x10] %vm367, %v366
    %s378 = scalar_lea.vmem [#allocation0], 1187
    %379 = vst.msk [vmem:[%s378] sm:$0x20] %vm367, %v366
    %s380 = scalar_lea.vmem [#allocation0], 1218
    %381 = vst.msk [vmem:[%s380] sm:$0x40] %vm367, %v366
    %s382 = scalar_lea.vmem [#allocation0], 1249
    %383 = vst.msk [vmem:[%s382] sm:$0x80] %vm367, %v366
    %s384 = scalar_lea.vmem [#allocation1], 40
    %v385 = vld [vmem:[%s384] sm:$0xff]
    %386 = vrot.lane.b32.xlu0 %v385, 96
    %v387 = vpop.permute.xlu0 %386
    %vm388 = vcmask 261120
    %s389 = scalar_lea.vmem [#allocation0], 1288
    %390 = vst.msk [vmem:[%s389] sm:$0x1] %vm388, %v387
    %s391 = scalar_lea.vmem [#allocation0], 1319
    %392 = vst.msk [vmem:[%s391] sm:$0x2] %vm388, %v387
    %s393 = scalar_lea.vmem [#allocation0], 1350
    %394 = vst.msk [vmem:[%s393] sm:$0x4] %vm388, %v387
    %s395 = scalar_lea.vmem [#allocation0], 1381
    %396 = vst.msk [vmem:[%s395] sm:$0x8] %vm388, %v387
    %s397 = scalar_lea.vmem [#allocation0], 1412
    %398 = vst.msk [vmem:[%s397] sm:$0x10] %vm388, %v387
    %s399 = scalar_lea.vmem [#allocation0], 1443
    %400 = vst.msk [vmem:[%s399] sm:$0x20] %vm388, %v387
    %s401 = scalar_lea.vmem [#allocation0], 1474
    %402 = vst.msk [vmem:[%s401] sm:$0x40] %vm388, %v387
    %s403 = scalar_lea.vmem [#allocation0], 1505
    %404 = vst.msk [vmem:[%s403] sm:$0x80] %vm388, %v387
    %s405 = scalar_lea.vmem [#allocation1], 48
    %v406 = vld [vmem:[%s405] sm:$0xff]
    %407 = vrot.lane.b32.xlu0 %v406, 96
    %v408 = vpop.permute.xlu0 %407
    %vm409 = vcmask 261120
    %s410 = scalar_lea.vmem [#allocation0], 1544
    %411 = vst.msk [vmem:[%s410] sm:$0x1] %vm409, %v408
    %s412 = scalar_lea.vmem [#allocation0], 1575
    %413 = vst.msk [vmem:[%s412] sm:$0x2] %vm409, %v408
    %s414 = scalar_lea.vmem [#allocation0], 1606
    %415 = vst.msk [vmem:[%s414] sm:$0x4] %vm409, %v408
    %s416 = scalar_lea.vmem [#allocation0], 1637
    %417 = vst.msk [vmem:[%s416] sm:$0x8] %vm409, %v408
    %s418 = scalar_lea.vmem [#allocation0], 1668
    %419 = vst.msk [vmem:[%s418] sm:$0x10] %vm409, %v408
    %s420 = scalar_lea.vmem [#allocation0], 1699
    %421 = vst.msk [vmem:[%s420] sm:$0x20] %vm409, %v408
    %s422 = scalar_lea.vmem [#allocation0], 1730
    %423 = vst.msk [vmem:[%s422] sm:$0x40] %vm409, %v408
    %s424 = scalar_lea.vmem [#allocation0], 1761
    %425 = vst.msk [vmem:[%s424] sm:$0x80] %vm409, %v408
    %s426 = scalar_lea.vmem [#allocation1], 56
    %v427 = vld [vmem:[%s426] sm:$0xff]
    %428 = vrot.lane.b32.xlu0 %v427, 96
    %v429 = vpop.permute.xlu0 %428
    %vm430 = vcmask 261120
    %s431 = scalar_lea.vmem [#allocation0], 1800
    %432 = vst.msk [vmem:[%s431] sm:$0x1] %vm430, %v429
    %s433 = scalar_lea.vmem [#allocation0], 1831
    %434 = vst.msk [vmem:[%s433] sm:$0x2] %vm430, %v429
    %s435 = scalar_lea.vmem [#allocation0], 1862
    %436 = vst.msk [vmem:[%s435] sm:$0x4] %vm430, %v429
    %s437 = scalar_lea.vmem [#allocation0], 1893
    %438 = vst.msk [vmem:[%s437] sm:$0x8] %vm430, %v429
    %s439 = scalar_lea.vmem [#allocation0], 1924
    %440 = vst.msk [vmem:[%s439] sm:$0x10] %vm430, %v429
    %s441 = scalar_lea.vmem [#allocation0], 1955
    %442 = vst.msk [vmem:[%s441] sm:$0x20] %vm430, %v429
    %s443 = scalar_lea.vmem [#allocation0], 1986
    %444 = vst.msk [vmem:[%s443] sm:$0x40] %vm430, %v429
    %s445 = scalar_lea.vmem [#allocation0], 2017
    %446 = vst.msk [vmem:[%s445] sm:$0x80] %vm430, %v429
    %v447 = vld [vmem:[#allocation1] sm:$0xff]
    %448 = vrot.lane.b32.xlu0 %v447, 64
    %v449 = vpop.permute.xlu0 %448
    %vm450 = vcmask 261120
    %s451 = scalar_lea.vmem [#allocation0], 16
    %452 = vst.msk [vmem:[%s451] sm:$0x1] %vm450, %v449
    %s453 = scalar_lea.vmem [#allocation0], 47
    %454 = vst.msk [vmem:[%s453] sm:$0x2] %vm450, %v449
    %s455 = scalar_lea.vmem [#allocation0], 78
    %456 = vst.msk [vmem:[%s455] sm:$0x4] %vm450, %v449
    %s457 = scalar_lea.vmem [#allocation0], 109
    %458 = vst.msk [vmem:[%s457] sm:$0x8] %vm450, %v449
    %s459 = scalar_lea.vmem [#allocation0], 140
    %460 = vst.msk [vmem:[%s459] sm:$0x10] %vm450, %v449
    %s461 = scalar_lea.vmem [#allocation0], 171
    %462 = vst.msk [vmem:[%s461] sm:$0x20] %vm450, %v449
    %s463 = scalar_lea.vmem [#allocation0], 202
    %464 = vst.msk [vmem:[%s463] sm:$0x40] %vm450, %v449
    %s465 = scalar_lea.vmem [#allocation0], 233
    %466 = vst.msk [vmem:[%s465] sm:$0x80] %vm450, %v449
    %s467 = scalar_lea.vmem [#allocation1], 8
    %v468 = vld [vmem:[%s467] sm:$0xff]
    %469 = vrot.lane.b32.xlu0 %v468, 64
    %v470 = vpop.permute.xlu0 %469
    %vm471 = vcmask 261120
    %s472 = scalar_lea.vmem [#allocation0], 272
    %473 = vst.msk [vmem:[%s472] sm:$0x1] %vm471, %v470
    %s474 = scalar_lea.vmem [#allocation0], 303
    %475 = vst.msk [vmem:[%s474] sm:$0x2] %vm471, %v470
    %s476 = scalar_lea.vmem [#allocation0], 334
    %477 = vst.msk [vmem:[%s476] sm:$0x4] %vm471, %v470
    %s478 = scalar_lea.vmem [#allocation0], 365
    %479 = vst.msk [vmem:[%s478] sm:$0x8] %vm471, %v470
    %s480 = scalar_lea.vmem [#allocation0], 396
    %481 = vst.msk [vmem:[%s480] sm:$0x10] %vm471, %v470
    %s482 = scalar_lea.vmem [#allocation0], 427
    %483 = vst.msk [vmem:[%s482] sm:$0x20] %vm471, %v470
    %s484 = scalar_lea.vmem [#allocation0], 458
    %485 = vst.msk [vmem:[%s484] sm:$0x40] %vm471, %v470
    %s486 = scalar_lea.vmem [#allocation0], 489
    %487 = vst.msk [vmem:[%s486] sm:$0x80] %vm471, %v470
    %s488 = scalar_lea.vmem [#allocation1], 16
    %v489 = vld [vmem:[%s488] sm:$0xff]
    %490 = vrot.lane.b32.xlu0 %v489, 64
    %v491 = vpop.permute.xlu0 %490
    %vm492 = vcmask 261120
    %s493 = scalar_lea.vmem [#allocation0], 528
    %494 = vst.msk [vmem:[%s493] sm:$0x1] %vm492, %v491
    %s495 = scalar_lea.vmem [#allocation0], 559
    %496 = vst.msk [vmem:[%s495] sm:$0x2] %vm492, %v491
    %s497 = scalar_lea.vmem [#allocation0], 590
    %498 = vst.msk [vmem:[%s497] sm:$0x4] %vm492, %v491
    %s499 = scalar_lea.vmem [#allocation0], 621
    %500 = vst.msk [vmem:[%s499] sm:$0x8] %vm492, %v491
    %s501 = scalar_lea.vmem [#allocation0], 652
    %502 = vst.msk [vmem:[%s501] sm:$0x10] %vm492, %v491
    %s503 = scalar_lea.vmem [#allocation0], 683
    %504 = vst.msk [vmem:[%s503] sm:$0x20] %vm492, %v491
    %s505 = scalar_lea.vmem [#allocation0], 714
    %506 = vst.msk [vmem:[%s505] sm:$0x40] %vm492, %v491
    %s507 = scalar_lea.vmem [#allocation0], 745
    %508 = vst.msk [vmem:[%s507] sm:$0x80] %vm492, %v491
    %s509 = scalar_lea.vmem [#allocation1], 24
    %v510 = vld [vmem:[%s509] sm:$0xff]
    %511 = vrot.lane.b32.xlu0 %v510, 64
    %v512 = vpop.permute.xlu0 %511
    %vm513 = vcmask 261120
    %s514 = scalar_lea.vmem [#allocation0], 784
    %515 = vst.msk [vmem:[%s514] sm:$0x1] %vm513, %v512
    %s516 = scalar_lea.vmem [#allocation0], 815
    %517 = vst.msk [vmem:[%s516] sm:$0x2] %vm513, %v512
    %s518 = scalar_lea.vmem [#allocation0], 846
    %519 = vst.msk [vmem:[%s518] sm:$0x4] %vm513, %v512
    %s520 = scalar_lea.vmem [#allocation0], 877
    %521 = vst.msk [vmem:[%s520] sm:$0x8] %vm513, %v512
    %s522 = scalar_lea.vmem [#allocation0], 908
    %523 = vst.msk [vmem:[%s522] sm:$0x10] %vm513, %v512
    %s524 = scalar_lea.vmem [#allocation0], 939
    %525 = vst.msk [vmem:[%s524] sm:$0x20] %vm513, %v512
    %s526 = scalar_lea.vmem [#allocation0], 970
    %527 = vst.msk [vmem:[%s526] sm:$0x40] %vm513, %v512
    %s528 = scalar_lea.vmem [#allocation0], 1001
    %529 = vst.msk [vmem:[%s528] sm:$0x80] %vm513, %v512
    %s530 = scalar_lea.vmem [#allocation1], 32
    %v531 = vld [vmem:[%s530] sm:$0xff]
    %532 = vrot.lane.b32.xlu0 %v531, 64
    %v533 = vpop.permute.xlu0 %532
    %vm534 = vcmask 261120
    %s535 = scalar_lea.vmem [#allocation0], 1040
    %536 = vst.msk [vmem:[%s535] sm:$0x1] %vm534, %v533
    %s537 = scalar_lea.vmem [#allocation0], 1071
    %538 = vst.msk [vmem:[%s537] sm:$0x2] %vm534, %v533
    %s539 = scalar_lea.vmem [#allocation0], 1102
    %540 = vst.msk [vmem:[%s539] sm:$0x4] %vm534, %v533
    %s541 = scalar_lea.vmem [#allocation0], 1133
    %542 = vst.msk [vmem:[%s541] sm:$0x8] %vm534, %v533
    %s543 = scalar_lea.vmem [#allocation0], 1164
    %544 = vst.msk [vmem:[%s543] sm:$0x10] %vm534, %v533
    %s545 = scalar_lea.vmem [#allocation0], 1195
    %546 = vst.msk [vmem:[%s545] sm:$0x20] %vm534, %v533
    %s547 = scalar_lea.vmem [#allocation0], 1226
    %548 = vst.msk [vmem:[%s547] sm:$0x40] %vm534, %v533
    %s549 = scalar_lea.vmem [#allocation0], 1257
    %550 = vst.msk [vmem:[%s549] sm:$0x80] %vm534, %v533
    %s551 = scalar_lea.vmem [#allocation1], 40
    %v552 = vld [vmem:[%s551] sm:$0xff]
    %553 = vrot.lane.b32.xlu0 %v552, 64
    %v554 = vpop.permute.xlu0 %553
    %vm555 = vcmask 261120
    %s556 = scalar_lea.vmem [#allocation0], 1296
    %557 = vst.msk [vmem:[%s556] sm:$0x1] %vm555, %v554
    %s558 = scalar_lea.vmem [#allocation0], 1327
    %559 = vst.msk [vmem:[%s558] sm:$0x2] %vm555, %v554
    %s560 = scalar_lea.vmem [#allocation0], 1358
    %561 = vst.msk [vmem:[%s560] sm:$0x4] %vm555, %v554
    %s562 = scalar_lea.vmem [#allocation0], 1389
    %563 = vst.msk [vmem:[%s562] sm:$0x8] %vm555, %v554
    %s564 = scalar_lea.vmem [#allocation0], 1420
    %565 = vst.msk [vmem:[%s564] sm:$0x10] %vm555, %v554
    %s566 = scalar_lea.vmem [#allocation0], 1451
    %567 = vst.msk [vmem:[%s566] sm:$0x20] %vm555, %v554
    %s568 = scalar_lea.vmem [#allocation0], 1482
    %569 = vst.msk [vmem:[%s568] sm:$0x40] %vm555, %v554
    %s570 = scalar_lea.vmem [#allocation0], 1513
    %571 = vst.msk [vmem:[%s570] sm:$0x80] %vm555, %v554
    %s572 = scalar_lea.vmem [#allocation1], 48
    %v573 = vld [vmem:[%s572] sm:$0xff]
    %574 = vrot.lane.b32.xlu0 %v573, 64
    %v575 = vpop.permute.xlu0 %574
    %vm576 = vcmask 261120
    %s577 = scalar_lea.vmem [#allocation0], 1552
    %578 = vst.msk [vmem:[%s577] sm:$0x1] %vm576, %v575
    %s579 = scalar_lea.vmem [#allocation0], 1583
    %580 = vst.msk [vmem:[%s579] sm:$0x2] %vm576, %v575
    %s581 = scalar_lea.vmem [#allocation0], 1614
    %582 = vst.msk [vmem:[%s581] sm:$0x4] %vm576, %v575
    %s583 = scalar_lea.vmem [#allocation0], 1645
    %584 = vst.msk [vmem:[%s583] sm:$0x8] %vm576, %v575
    %s585 = scalar_lea.vmem [#allocation0], 1676
    %586 = vst.msk [vmem:[%s585] sm:$0x10] %vm576, %v575
    %s587 = scalar_lea.vmem [#allocation0], 1707
    %588 = vst.msk [vmem:[%s587] sm:$0x20] %vm576, %v575
    %s589 = scalar_lea.vmem [#allocation0], 1738
    %590 = vst.msk [vmem:[%s589] sm:$0x40] %vm576, %v575
    %s591 = scalar_lea.vmem [#allocation0], 1769
    %592 = vst.msk [vmem:[%s591] sm:$0x80] %vm576, %v575
    %s593 = scalar_lea.vmem [#allocation1], 56
    %v594 = vld [vmem:[%s593] sm:$0xff]
    %595 = vrot.lane.b32.xlu0 %v594, 64
    %v596 = vpop.permute.xlu0 %595
    %vm597 = vcmask 261120
    %s598 = scalar_lea.vmem [#allocation0], 1808
    %599 = vst.msk [vmem:[%s598] sm:$0x1] %vm597, %v596
    %s600 = scalar_lea.vmem [#allocation0], 1839
    %601 = vst.msk [vmem:[%s600] sm:$0x2] %vm597, %v596
    %s602 = scalar_lea.vmem [#allocation0], 1870
    %603 = vst.msk [vmem:[%s602] sm:$0x4] %vm597, %v596
    %s604 = scalar_lea.vmem [#allocation0], 1901
    %605 = vst.msk [vmem:[%s604] sm:$0x8] %vm597, %v596
    %s606 = scalar_lea.vmem [#allocation0], 1932
    %607 = vst.msk [vmem:[%s606] sm:$0x10] %vm597, %v596
    %s608 = scalar_lea.vmem [#allocation0], 1963
    %609 = vst.msk [vmem:[%s608] sm:$0x20] %vm597, %v596
    %s610 = scalar_lea.vmem [#allocation0], 1994
    %611 = vst.msk [vmem:[%s610] sm:$0x40] %vm597, %v596
    %s612 = scalar_lea.vmem [#allocation0], 2025
    %613 = vst.msk [vmem:[%s612] sm:$0x80] %vm597, %v596
    %v614 = vld [vmem:[#allocation1] sm:$0xff]
    %615 = vrot.lane.b32.xlu0 %v614, 32
    %v616 = vpop.permute.xlu0 %615
    %vm617 = vcmask 261120
    %s618 = scalar_lea.vmem [#allocation0], 24
    %619 = vst.msk [vmem:[%s618] sm:$0x1] %vm617, %v616
    %s620 = scalar_lea.vmem [#allocation0], 55
    %621 = vst.msk [vmem:[%s620] sm:$0x2] %vm617, %v616
    %s622 = scalar_lea.vmem [#allocation0], 86
    %623 = vst.msk [vmem:[%s622] sm:$0x4] %vm617, %v616
    %s624 = scalar_lea.vmem [#allocation0], 117
    %625 = vst.msk [vmem:[%s624] sm:$0x8] %vm617, %v616
    %s626 = scalar_lea.vmem [#allocation0], 148
    %627 = vst.msk [vmem:[%s626] sm:$0x10] %vm617, %v616
    %s628 = scalar_lea.vmem [#allocation0], 179
    %629 = vst.msk [vmem:[%s628] sm:$0x20] %vm617, %v616
    %s630 = scalar_lea.vmem [#allocation0], 210
    %631 = vst.msk [vmem:[%s630] sm:$0x40] %vm617, %v616
    %s632 = scalar_lea.vmem [#allocation0], 241
    %633 = vst.msk [vmem:[%s632] sm:$0x80] %vm617, %v616
    %s634 = scalar_lea.vmem [#allocation1], 8
    %v635 = vld [vmem:[%s634] sm:$0xff]
    %636 = vrot.lane.b32.xlu0 %v635, 32
    %v637 = vpop.permute.xlu0 %636
    %vm638 = vcmask 261120
    %s639 = scalar_lea.vmem [#allocation0], 280
    %640 = vst.msk [vmem:[%s639] sm:$0x1] %vm638, %v637
    %s641 = scalar_lea.vmem [#allocation0], 311
    %642 = vst.msk [vmem:[%s641] sm:$0x2] %vm638, %v637
    %s643 = scalar_lea.vmem [#allocation0], 342
    %644 = vst.msk [vmem:[%s643] sm:$0x4] %vm638, %v637
    %s645 = scalar_lea.vmem [#allocation0], 373
    %646 = vst.msk [vmem:[%s645] sm:$0x8] %vm638, %v637
    %s647 = scalar_lea.vmem [#allocation0], 404
    %648 = vst.msk [vmem:[%s647] sm:$0x10] %vm638, %v637
    %s649 = scalar_lea.vmem [#allocation0], 435
    %650 = vst.msk [vmem:[%s649] sm:$0x20] %vm638, %v637
    %s651 = scalar_lea.vmem [#allocation0], 466
    %652 = vst.msk [vmem:[%s651] sm:$0x40] %vm638, %v637
    %s653 = scalar_lea.vmem [#allocation0], 497
    %654 = vst.msk [vmem:[%s653] sm:$0x80] %vm638, %v637
    %s655 = scalar_lea.vmem [#allocation1], 16
    %v656 = vld [vmem:[%s655] sm:$0xff]
    %657 = vrot.lane.b32.xlu0 %v656, 32
    %v658 = vpop.permute.xlu0 %657
    %vm659 = vcmask 261120
    %s660 = scalar_lea.vmem [#allocation0], 536
    %661 = vst.msk [vmem:[%s660] sm:$0x1] %vm659, %v658
    %s662 = scalar_lea.vmem [#allocation0], 567
    %663 = vst.msk [vmem:[%s662] sm:$0x2] %vm659, %v658
    %s664 = scalar_lea.vmem [#allocation0], 598
    %665 = vst.msk [vmem:[%s664] sm:$0x4] %vm659, %v658
    %s666 = scalar_lea.vmem [#allocation0], 629
    %667 = vst.msk [vmem:[%s666] sm:$0x8] %vm659, %v658
    %s668 = scalar_lea.vmem [#allocation0], 660
    %669 = vst.msk [vmem:[%s668] sm:$0x10] %vm659, %v658
    %s670 = scalar_lea.vmem [#allocation0], 691
    %671 = vst.msk [vmem:[%s670] sm:$0x20] %vm659, %v658
    %s672 = scalar_lea.vmem [#allocation0], 722
    %673 = vst.msk [vmem:[%s672] sm:$0x40] %vm659, %v658
    %s674 = scalar_lea.vmem [#allocation0], 753
    %675 = vst.msk [vmem:[%s674] sm:$0x80] %vm659, %v658
    %s676 = scalar_lea.vmem [#allocation1], 24
    %v677 = vld [vmem:[%s676] sm:$0xff]
    %678 = vrot.lane.b32.xlu0 %v677, 32
    %v679 = vpop.permute.xlu0 %678
    %vm680 = vcmask 261120
    %s681 = scalar_lea.vmem [#allocation0], 792
    %682 = vst.msk [vmem:[%s681] sm:$0x1] %vm680, %v679
    %s683 = scalar_lea.vmem [#allocation0], 823
    %684 = vst.msk [vmem:[%s683] sm:$0x2] %vm680, %v679
    %s685 = scalar_lea.vmem [#allocation0], 854
    %686 = vst.msk [vmem:[%s685] sm:$0x4] %vm680, %v679
    %s687 = scalar_lea.vmem [#allocation0], 885
    %688 = vst.msk [vmem:[%s687] sm:$0x8] %vm680, %v679
    %s689 = scalar_lea.vmem [#allocation0], 916
    %690 = vst.msk [vmem:[%s689] sm:$0x10] %vm680, %v679
    %s691 = scalar_lea.vmem [#allocation0], 947
    %692 = vst.msk [vmem:[%s691] sm:$0x20] %vm680, %v679
    %s693 = scalar_lea.vmem [#allocation0], 978
    %694 = vst.msk [vmem:[%s693] sm:$0x40] %vm680, %v679
    %s695 = scalar_lea.vmem [#allocation0], 1009
    %696 = vst.msk [vmem:[%s695] sm:$0x80] %vm680, %v679
    %s697 = scalar_lea.vmem [#allocation1], 32
    %v698 = vld [vmem:[%s697] sm:$0xff]
    %699 = vrot.lane.b32.xlu0 %v698, 32
    %v700 = vpop.permute.xlu0 %699
    %vm701 = vcmask 261120
    %s702 = scalar_lea.vmem [#allocation0], 1048
    %703 = vst.msk [vmem:[%s702] sm:$0x1] %vm701, %v700
    %s704 = scalar_lea.vmem [#allocation0], 1079
    %705 = vst.msk [vmem:[%s704] sm:$0x2] %vm701, %v700
    %s706 = scalar_lea.vmem [#allocation0], 1110
    %707 = vst.msk [vmem:[%s706] sm:$0x4] %vm701, %v700
    %s708 = scalar_lea.vmem [#allocation0], 1141
    %709 = vst.msk [vmem:[%s708] sm:$0x8] %vm701, %v700
    %s710 = scalar_lea.vmem [#allocation0], 1172
    %711 = vst.msk [vmem:[%s710] sm:$0x10] %vm701, %v700
    %s712 = scalar_lea.vmem [#allocation0], 1203
    %713 = vst.msk [vmem:[%s712] sm:$0x20] %vm701, %v700
    %s714 = scalar_lea.vmem [#allocation0], 1234
    %715 = vst.msk [vmem:[%s714] sm:$0x40] %vm701, %v700
    %s716 = scalar_lea.vmem [#allocation0], 1265
    %717 = vst.msk [vmem:[%s716] sm:$0x80] %vm701, %v700
    %s718 = scalar_lea.vmem [#allocation1], 40
    %v719 = vld [vmem:[%s718] sm:$0xff]
    %720 = vrot.lane.b32.xlu0 %v719, 32
    %v721 = vpop.permute.xlu0 %720
    %vm722 = vcmask 261120
    %s723 = scalar_lea.vmem [#allocation0], 1304
    %724 = vst.msk [vmem:[%s723] sm:$0x1] %vm722, %v721
    %s725 = scalar_lea.vmem [#allocation0], 1335
    %726 = vst.msk [vmem:[%s725] sm:$0x2] %vm722, %v721
    %s727 = scalar_lea.vmem [#allocation0], 1366
    %728 = vst.msk [vmem:[%s727] sm:$0x4] %vm722, %v721
    %s729 = scalar_lea.vmem [#allocation0], 1397
    %730 = vst.msk [vmem:[%s729] sm:$0x8] %vm722, %v721
    %s731 = scalar_lea.vmem [#allocation0], 1428
    %732 = vst.msk [vmem:[%s731] sm:$0x10] %vm722, %v721
    %s733 = scalar_lea.vmem [#allocation0], 1459
    %734 = vst.msk [vmem:[%s733] sm:$0x20] %vm722, %v721
    %s735 = scalar_lea.vmem [#allocation0], 1490
    %736 = vst.msk [vmem:[%s735] sm:$0x40] %vm722, %v721
    %s737 = scalar_lea.vmem [#allocation0], 1521
    %738 = vst.msk [vmem:[%s737] sm:$0x80] %vm722, %v721
    %s739 = scalar_lea.vmem [#allocation1], 48
    %v740 = vld [vmem:[%s739] sm:$0xff]
    %741 = vrot.lane.b32.xlu0 %v740, 32
    %v742 = vpop.permute.xlu0 %741
    %vm743 = vcmask 261120
    %s744 = scalar_lea.vmem [#allocation0], 1560
    %745 = vst.msk [vmem:[%s744] sm:$0x1] %vm743, %v742
    %s746 = scalar_lea.vmem [#allocation0], 1591
    %747 = vst.msk [vmem:[%s746] sm:$0x2] %vm743, %v742
    %s748 = scalar_lea.vmem [#allocation0], 1622
    %749 = vst.msk [vmem:[%s748] sm:$0x4] %vm743, %v742
    %s750 = scalar_lea.vmem [#allocation0], 1653
    %751 = vst.msk [vmem:[%s750] sm:$0x8] %vm743, %v742
    %s752 = scalar_lea.vmem [#allocation0], 1684
    %753 = vst.msk [vmem:[%s752] sm:$0x10] %vm743, %v742
    %s754 = scalar_lea.vmem [#allocation0], 1715
    %755 = vst.msk [vmem:[%s754] sm:$0x20] %vm743, %v742
    %s756 = scalar_lea.vmem [#allocation0], 1746
    %757 = vst.msk [vmem:[%s756] sm:$0x40] %vm743, %v742
    %s758 = scalar_lea.vmem [#allocation0], 1777
    %759 = vst.msk [vmem:[%s758] sm:$0x80] %vm743, %v742
    %s760 = scalar_lea.vmem [#allocation1], 56
    %v761 = vld [vmem:[%s760] sm:$0xff]
    %762 = vrot.lane.b32.xlu0 %v761, 32
    %v763 = vpop.permute.xlu0 %762
    %vm764 = vcmask 261120
    %s765 = scalar_lea.vmem [#allocation0], 1816
    %766 = vst.msk [vmem:[%s765] sm:$0x1] %vm764, %v763
    %s767 = scalar_lea.vmem [#allocation0], 1847
    %768 = vst.msk [vmem:[%s767] sm:$0x2] %vm764, %v763
    %s769 = scalar_lea.vmem [#allocation0], 1878
    %770 = vst.msk [vmem:[%s769] sm:$0x4] %vm764, %v763
    %s771 = scalar_lea.vmem [#allocation0], 1909
    %772 = vst.msk [vmem:[%s771] sm:$0x8] %vm764, %v763
    %s773 = scalar_lea.vmem [#allocation0], 1940
    %774 = vst.msk [vmem:[%s773] sm:$0x10] %vm764, %v763
    %s775 = scalar_lea.vmem [#allocation0], 1971
    %776 = vst.msk [vmem:[%s775] sm:$0x20] %vm764, %v763
    %s777 = scalar_lea.vmem [#allocation0], 2002
    %778 = vst.msk [vmem:[%s777] sm:$0x40] %vm764, %v763
    %s779 = scalar_lea.vmem [#allocation0], 2033
    %780 = vst.msk [vmem:[%s779] sm:$0x80] %vm764, %v763
    %s782 = smul.u32 1, 2
    %s783 = sshll.u32 1, %s782
    %s784 = ssub.s32 %s783, 1
    %s785 = sshrl.u32 %s782, 1
    %v786 = vld [vmem:[#allocation0] sm:%s784]
    %v787 = vpack.c.bf16 0.0, %v786
    %s788 = sshll.u32 1, %s785
    %s789 = ssub.s32 %s788, 1
    %790 = vst [vmem:[%s1] sm:%s789] %v787
    %s791 = scalar_lea.vmem [#allocation0], 8
    %v792 = vld [vmem:[%s791] sm:%s784]
    %v793 = vpack.c.bf16 0.0, %v792
    %s794 = sshll.u32 1, %s785
    %s795 = ssub.s32 %s794, 1
    %s796 = scalar_lea.vmem %s1, 1
    %797 = vst [vmem:[%s796] sm:%s795] %v793
    %s798 = scalar_lea.vmem [#allocation0], 16
    %v799 = vld [vmem:[%s798] sm:%s784]
    %v800 = vpack.c.bf16 0.0, %v799
    %s801 = sshll.u32 1, %s785
    %s802 = ssub.s32 %s801, 1
    %s803 = smul.addr 1, 2
    %s804 = scalar_lea.vmem %s1, %s803
    %805 = vst [vmem:[%s804] sm:%s802] %v800
    %s806 = scalar_lea.vmem [#allocation0], 24
    %v807 = vld [vmem:[%s806] sm:%s784]
    %v808 = vpack.c.bf16 0.0, %v807
    %s809 = sshll.u32 1, %s785
    %s810 = ssub.s32 %s809, 1
    %s811 = smul.addr 1, 3
    %s812 = scalar_lea.vmem %s1, %s811
    %813 = vst [vmem:[%s812] sm:%s810] %v808
    %s814 = scalar_lea.vmem [#allocation0], 32
    %v815 = vld [vmem:[%s814] sm:%s784]
    %v816 = vpack.c.bf16 0.0, %v815
    %s817 = sshll.u32 1, %s785
    %s818 = ssub.s32 %s817, 1
    %s819 = smul.addr 1, 4
    %s820 = scalar_lea.vmem %s1, %s819
    %821 = vst [vmem:[%s820] sm:%s818] %v816
    %s822 = scalar_lea.vmem [#allocation0], 40
    %v823 = vld [vmem:[%s822] sm:%s784]
    %v824 = vpack.c.bf16 0.0, %v823
    %s825 = sshll.u32 1, %s785
    %s826 = ssub.s32 %s825, 1
    %s827 = smul.addr 1, 5
    %s828 = scalar_lea.vmem %s1, %s827
    %829 = vst [vmem:[%s828] sm:%s826] %v824
    %s830 = scalar_lea.vmem [#allocation0], 48
    %v831 = vld [vmem:[%s830] sm:%s784]
    %v832 = vpack.c.bf16 0.0, %v831
    %s833 = sshll.u32 1, %s785
    %s834 = ssub.s32 %s833, 1
    %s835 = smul.addr 1, 6
    %s836 = scalar_lea.vmem %s1, %s835
    %837 = vst [vmem:[%s836] sm:%s834] %v832
    %s838 = scalar_lea.vmem [#allocation0], 56
    %v839 = vld [vmem:[%s838] sm:%s784]
    %v840 = vpack.c.bf16 0.0, %v839
    %s841 = sshll.u32 1, %s785
    %s842 = ssub.s32 %s841, 1
    %s843 = smul.addr 1, 7
    %s844 = scalar_lea.vmem %s1, %s843
    %845 = vst [vmem:[%s844] sm:%s842] %v840
    %s846 = scalar_lea.vmem [#allocation0], 64
    %v847 = vld [vmem:[%s846] sm:%s784]
    %v848 = vpack.c.bf16 0.0, %v847
    %s849 = sshll.u32 1, %s785
    %s850 = ssub.s32 %s849, 1
    %s851 = smul.addr 1, 8
    %s852 = scalar_lea.vmem %s1, %s851
    %853 = vst [vmem:[%s852] sm:%s850] %v848
    %s854 = scalar_lea.vmem [#allocation0], 72
    %v855 = vld [vmem:[%s854] sm:%s784]
    %v856 = vpack.c.bf16 0.0, %v855
    %s857 = sshll.u32 1, %s785
    %s858 = ssub.s32 %s857, 1
    %s859 = smul.addr 1, 9
    %s860 = scalar_lea.vmem %s1, %s859
    %861 = vst [vmem:[%s860] sm:%s858] %v856
    %s862 = scalar_lea.vmem [#allocation0], 80
    %v863 = vld [vmem:[%s862] sm:%s784]
    %v864 = vpack.c.bf16 0.0, %v863
    %s865 = sshll.u32 1, %s785
    %s866 = ssub.s32 %s865, 1
    %s867 = smul.addr 1, 10
    %s868 = scalar_lea.vmem %s1, %s867
    %869 = vst [vmem:[%s868] sm:%s866] %v864
    %s870 = scalar_lea.vmem [#allocation0], 88
    %v871 = vld [vmem:[%s870] sm:%s784]
    %v872 = vpack.c.bf16 0.0, %v871
    %s873 = sshll.u32 1, %s785
    %s874 = ssub.s32 %s873, 1
    %s875 = smul.addr 1, 11
    %s876 = scalar_lea.vmem %s1, %s875
    %877 = vst [vmem:[%s876] sm:%s874] %v872
    %s878 = scalar_lea.vmem [#allocation0], 96
    %v879 = vld [vmem:[%s878] sm:%s784]
    %v880 = vpack.c.bf16 0.0, %v879
    %s881 = sshll.u32 1, %s785
    %s882 = ssub.s32 %s881, 1
    %s883 = smul.addr 1, 12
    %s884 = scalar_lea.vmem %s1, %s883
    %885 = vst [vmem:[%s884] sm:%s882] %v880
    %s886 = scalar_lea.vmem [#allocation0], 104
    %v887 = vld [vmem:[%s886] sm:%s784]
    %v888 = vpack.c.bf16 0.0, %v887
    %s889 = sshll.u32 1, %s785
    %s890 = ssub.s32 %s889, 1
    %s891 = smul.addr 1, 13
    %s892 = scalar_lea.vmem %s1, %s891
    %893 = vst [vmem:[%s892] sm:%s890] %v888
    %s894 = scalar_lea.vmem [#allocation0], 112
    %v895 = vld [vmem:[%s894] sm:%s784]
    %v896 = vpack.c.bf16 0.0, %v895
    %s897 = sshll.u32 1, %s785
    %s898 = ssub.s32 %s897, 1
    %s899 = smul.addr 1, 14
    %s900 = scalar_lea.vmem %s1, %s899
    %901 = vst [vmem:[%s900] sm:%s898] %v896
    %s902 = scalar_lea.vmem [#allocation0], 120
    %v903 = vld [vmem:[%s902] sm:%s784]
    %v904 = vpack.c.bf16 0.0, %v903
    %s905 = sshll.u32 1, %s785
    %s906 = ssub.s32 %s905, 1
    %s907 = smul.addr 1, 15
    %s908 = scalar_lea.vmem %s1, %s907
    %909 = vst [vmem:[%s908] sm:%s906] %v904
    %s910 = scalar_lea.vmem [#allocation0], 128
    %v911 = vld [vmem:[%s910] sm:%s784]
    %v912 = vpack.c.bf16 0.0, %v911
    %s913 = sshll.u32 1, %s785
    %s914 = ssub.s32 %s913, 1
    %s915 = smul.addr 1, 16
    %s916 = scalar_lea.vmem %s1, %s915
    %917 = vst [vmem:[%s916] sm:%s914] %v912
    %s918 = scalar_lea.vmem [#allocation0], 136
    %v919 = vld [vmem:[%s918] sm:%s784]
    %v920 = vpack.c.bf16 0.0, %v919
    %s921 = sshll.u32 1, %s785
    %s922 = ssub.s32 %s921, 1
    %s923 = smul.addr 1, 17
    %s924 = scalar_lea.vmem %s1, %s923
    %925 = vst [vmem:[%s924] sm:%s922] %v920
    %s926 = scalar_lea.vmem [#allocation0], 144
    %v927 = vld [vmem:[%s926] sm:%s784]
    %v928 = vpack.c.bf16 0.0, %v927
    %s929 = sshll.u32 1, %s785
    %s930 = ssub.s32 %s929, 1
    %s931 = smul.addr 1, 18
    %s932 = scalar_lea.vmem %s1, %s931
    %933 = vst [vmem:[%s932] sm:%s930] %v928
    %s934 = scalar_lea.vmem [#allocation0], 152
    %v935 = vld [vmem:[%s934] sm:%s784]
    %v936 = vpack.c.bf16 0.0, %v935
    %s937 = sshll.u32 1, %s785
    %s938 = ssub.s32 %s937, 1
    %s939 = smul.addr 1, 19
    %s940 = scalar_lea.vmem %s1, %s939
    %941 = vst [vmem:[%s940] sm:%s938] %v936
    %s942 = scalar_lea.vmem [#allocation0], 160
    %v943 = vld [vmem:[%s942] sm:%s784]
    %v944 = vpack.c.bf16 0.0, %v943
    %s945 = sshll.u32 1, %s785
    %s946 = ssub.s32 %s945, 1
    %s947 = smul.addr 1, 20
    %s948 = scalar_lea.vmem %s1, %s947
    %949 = vst [vmem:[%s948] sm:%s946] %v944
    %s950 = scalar_lea.vmem [#allocation0], 168
    %v951 = vld [vmem:[%s950] sm:%s784]
    %v952 = vpack.c.bf16 0.0, %v951
    %s953 = sshll.u32 1, %s785
    %s954 = ssub.s32 %s953, 1
    %s955 = smul.addr 1, 21
    %s956 = scalar_lea.vmem %s1, %s955
    %957 = vst [vmem:[%s956] sm:%s954] %v952
    %s958 = scalar_lea.vmem [#allocation0], 176
    %v959 = vld [vmem:[%s958] sm:%s784]
    %v960 = vpack.c.bf16 0.0, %v959
    %s961 = sshll.u32 1, %s785
    %s962 = ssub.s32 %s961, 1
    %s963 = smul.addr 1, 22
    %s964 = scalar_lea.vmem %s1, %s963
    %965 = vst [vmem:[%s964] sm:%s962] %v960
    %s966 = scalar_lea.vmem [#allocation0], 184
    %v967 = vld [vmem:[%s966] sm:%s784]
    %v968 = vpack.c.bf16 0.0, %v967
    %s969 = sshll.u32 1, %s785
    %s970 = ssub.s32 %s969, 1
    %s971 = smul.addr 1, 23
    %s972 = scalar_lea.vmem %s1, %s971
    %973 = vst [vmem:[%s972] sm:%s970] %v968
    %s974 = scalar_lea.vmem [#allocation0], 192
    %v975 = vld [vmem:[%s974] sm:%s784]
    %v976 = vpack.c.bf16 0.0, %v975
    %s977 = sshll.u32 1, %s785
    %s978 = ssub.s32 %s977, 1
    %s979 = smul.addr 1, 24
    %s980 = scalar_lea.vmem %s1, %s979
    %981 = vst [vmem:[%s980] sm:%s978] %v976
    %s982 = scalar_lea.vmem [#allocation0], 200
    %v983 = vld [vmem:[%s982] sm:%s784]
    %v984 = vpack.c.bf16 0.0, %v983
    %s985 = sshll.u32 1, %s785
    %s986 = ssub.s32 %s985, 1
    %s987 = smul.addr 1, 25
    %s988 = scalar_lea.vmem %s1, %s987
    %989 = vst [vmem:[%s988] sm:%s986] %v984
    %s990 = scalar_lea.vmem [#allocation0], 208
    %v991 = vld [vmem:[%s990] sm:%s784]
    %v992 = vpack.c.bf16 0.0, %v991
    %s993 = sshll.u32 1, %s785
    %s994 = ssub.s32 %s993, 1
    %s995 = smul.addr 1, 26
    %s996 = scalar_lea.vmem %s1, %s995
    %997 = vst [vmem:[%s996] sm:%s994] %v992
    %s998 = scalar_lea.vmem [#allocation0], 216
    %v999 = vld [vmem:[%s998] sm:%s784]
    %v1000 = vpack.c.bf16 0.0, %v999
    %s1001 = sshll.u32 1, %s785
    %s1002 = ssub.s32 %s1001, 1
    %s1003 = smul.addr 1, 27
    %s1004 = scalar_lea.vmem %s1, %s1003
    %1005 = vst [vmem:[%s1004] sm:%s1002] %v1000
    %s1006 = scalar_lea.vmem [#allocation0], 224
    %v1007 = vld [vmem:[%s1006] sm:%s784]
    %v1008 = vpack.c.bf16 0.0, %v1007
    %s1009 = sshll.u32 1, %s785
    %s1010 = ssub.s32 %s1009, 1
    %s1011 = smul.addr 1, 28
    %s1012 = scalar_lea.vmem %s1, %s1011
    %1013 = vst [vmem:[%s1012] sm:%s1010] %v1008
    %s1014 = scalar_lea.vmem [#allocation0], 232
    %v1015 = vld [vmem:[%s1014] sm:%s784]
    %v1016 = vpack.c.bf16 0.0, %v1015
    %s1017 = sshll.u32 1, %s785
    %s1018 = ssub.s32 %s1017, 1
    %s1019 = smul.addr 1, 29
    %s1020 = scalar_lea.vmem %s1, %s1019
    %1021 = vst [vmem:[%s1020] sm:%s1018] %v1016
    %s1022 = scalar_lea.vmem [#allocation0], 240
    %v1023 = vld [vmem:[%s1022] sm:%s784]
    %v1024 = vpack.c.bf16 0.0, %v1023
    %s1025 = sshll.u32 1, %s785
    %s1026 = ssub.s32 %s1025, 1
    %s1027 = smul.addr 1, 30
    %s1028 = scalar_lea.vmem %s1, %s1027
    %1029 = vst [vmem:[%s1028] sm:%s1026] %v1024
    %s1030 = scalar_lea.vmem [#allocation0], 248
    %v1031 = vld [vmem:[%s1030] sm:%s784]
    %v1032 = vpack.c.bf16 0.0, %v1031
    %s1033 = sshll.u32 1, %s785
    %s1034 = ssub.s32 %s1033, 1
    %s1035 = smul.addr 1, 31
    %s1036 = scalar_lea.vmem %s1, %s1035
    %1037 = vst [vmem:[%s1036] sm:%s1034] %v1032
    %s1038 = scalar_lea.vmem [#allocation0], 256
    %v1039 = vld [vmem:[%s1038] sm:%s784]
    %v1040 = vpack.c.bf16 0.0, %v1039
    %s1041 = sshll.u32 1, %s785
    %s1042 = ssub.s32 %s1041, 1
    %s1043 = smul.addr 1, 32
    %s1044 = scalar_lea.vmem %s1, %s1043
    %1045 = vst [vmem:[%s1044] sm:%s1042] %v1040
    %s1046 = scalar_lea.vmem [#allocation0], 264
    %v1047 = vld [vmem:[%s1046] sm:%s784]
    %v1048 = vpack.c.bf16 0.0, %v1047
    %s1049 = sshll.u32 1, %s785
    %s1050 = ssub.s32 %s1049, 1
    %s1051 = smul.addr 1, 33
    %s1052 = scalar_lea.vmem %s1, %s1051
    %1053 = vst [vmem:[%s1052] sm:%s1050] %v1048
    %s1054 = scalar_lea.vmem [#allocation0], 272
    %v1055 = vld [vmem:[%s1054] sm:%s784]
    %v1056 = vpack.c.bf16 0.0, %v1055
    %s1057 = sshll.u32 1, %s785
    %s1058 = ssub.s32 %s1057, 1
    %s1059 = smul.addr 1, 34
    %s1060 = scalar_lea.vmem %s1, %s1059
    %1061 = vst [vmem:[%s1060] sm:%s1058] %v1056
    %s1062 = scalar_lea.vmem [#allocation0], 280
    %v1063 = vld [vmem:[%s1062] sm:%s784]
    %v1064 = vpack.c.bf16 0.0, %v1063
    %s1065 = sshll.u32 1, %s785
    %s1066 = ssub.s32 %s1065, 1
    %s1067 = smul.addr 1, 35
    %s1068 = scalar_lea.vmem %s1, %s1067
    %1069 = vst [vmem:[%s1068] sm:%s1066] %v1064
    %s1070 = scalar_lea.vmem [#allocation0], 288
    %v1071 = vld [vmem:[%s1070] sm:%s784]
    %v1072 = vpack.c.bf16 0.0, %v1071
    %s1073 = sshll.u32 1, %s785
    %s1074 = ssub.s32 %s1073, 1
    %s1075 = smul.addr 1, 36
    %s1076 = scalar_lea.vmem %s1, %s1075
    %1077 = vst [vmem:[%s1076] sm:%s1074] %v1072
    %s1078 = scalar_lea.vmem [#allocation0], 296
    %v1079 = vld [vmem:[%s1078] sm:%s784]
    %v1080 = vpack.c.bf16 0.0, %v1079
    %s1081 = sshll.u32 1, %s785
    %s1082 = ssub.s32 %s1081, 1
    %s1083 = smul.addr 1, 37
    %s1084 = scalar_lea.vmem %s1, %s1083
    %1085 = vst [vmem:[%s1084] sm:%s1082] %v1080
    %s1086 = scalar_lea.vmem [#allocation0], 304
    %v1087 = vld [vmem:[%s1086] sm:%s784]
    %v1088 = vpack.c.bf16 0.0, %v1087
    %s1089 = sshll.u32 1, %s785
    %s1090 = ssub.s32 %s1089, 1
    %s1091 = smul.addr 1, 38
    %s1092 = scalar_lea.vmem %s1, %s1091
    %1093 = vst [vmem:[%s1092] sm:%s1090] %v1088
    %s1094 = scalar_lea.vmem [#allocation0], 312
    %v1095 = vld [vmem:[%s1094] sm:%s784]
    %v1096 = vpack.c.bf16 0.0, %v1095
    %s1097 = sshll.u32 1, %s785
    %s1098 = ssub.s32 %s1097, 1
    %s1099 = smul.addr 1, 39
    %s1100 = scalar_lea.vmem %s1, %s1099
    %1101 = vst [vmem:[%s1100] sm:%s1098] %v1096
    %s1102 = scalar_lea.vmem [#allocation0], 320
    %v1103 = vld [vmem:[%s1102] sm:%s784]
    %v1104 = vpack.c.bf16 0.0, %v1103
    %s1105 = sshll.u32 1, %s785
    %s1106 = ssub.s32 %s1105, 1
    %s1107 = smul.addr 1, 40
    %s1108 = scalar_lea.vmem %s1, %s1107
    %1109 = vst [vmem:[%s1108] sm:%s1106] %v1104
    %s1110 = scalar_lea.vmem [#allocation0], 328
    %v1111 = vld [vmem:[%s1110] sm:%s784]
    %v1112 = vpack.c.bf16 0.0, %v1111
    %s1113 = sshll.u32 1, %s785
    %s1114 = ssub.s32 %s1113, 1
    %s1115 = smul.addr 1, 41
    %s1116 = scalar_lea.vmem %s1, %s1115
    %1117 = vst [vmem:[%s1116] sm:%s1114] %v1112
    %s1118 = scalar_lea.vmem [#allocation0], 336
    %v1119 = vld [vmem:[%s1118] sm:%s784]
    %v1120 = vpack.c.bf16 0.0, %v1119
    %s1121 = sshll.u32 1, %s785
    %s1122 = ssub.s32 %s1121, 1
    %s1123 = smul.addr 1, 42
    %s1124 = scalar_lea.vmem %s1, %s1123
    %1125 = vst [vmem:[%s1124] sm:%s1122] %v1120
    %s1126 = scalar_lea.vmem [#allocation0], 344
    %v1127 = vld [vmem:[%s1126] sm:%s784]
    %v1128 = vpack.c.bf16 0.0, %v1127
    %s1129 = sshll.u32 1, %s785
    %s1130 = ssub.s32 %s1129, 1
    %s1131 = smul.addr 1, 43
    %s1132 = scalar_lea.vmem %s1, %s1131
    %1133 = vst [vmem:[%s1132] sm:%s1130] %v1128
    %s1134 = scalar_lea.vmem [#allocation0], 352
    %v1135 = vld [vmem:[%s1134] sm:%s784]
    %v1136 = vpack.c.bf16 0.0, %v1135
    %s1137 = sshll.u32 1, %s785
    %s1138 = ssub.s32 %s1137, 1
    %s1139 = smul.addr 1, 44
    %s1140 = scalar_lea.vmem %s1, %s1139
    %1141 = vst [vmem:[%s1140] sm:%s1138] %v1136
    %s1142 = scalar_lea.vmem [#allocation0], 360
    %v1143 = vld [vmem:[%s1142] sm:%s784]
    %v1144 = vpack.c.bf16 0.0, %v1143
    %s1145 = sshll.u32 1, %s785
    %s1146 = ssub.s32 %s1145, 1
    %s1147 = smul.addr 1, 45
    %s1148 = scalar_lea.vmem %s1, %s1147
    %1149 = vst [vmem:[%s1148] sm:%s1146] %v1144
    %s1150 = scalar_lea.vmem [#allocation0], 368
    %v1151 = vld [vmem:[%s1150] sm:%s784]
    %v1152 = vpack.c.bf16 0.0, %v1151
    %s1153 = sshll.u32 1, %s785
    %s1154 = ssub.s32 %s1153, 1
    %s1155 = smul.addr 1, 46
    %s1156 = scalar_lea.vmem %s1, %s1155
    %1157 = vst [vmem:[%s1156] sm:%s1154] %v1152
    %s1158 = scalar_lea.vmem [#allocation0], 376
    %v1159 = vld [vmem:[%s1158] sm:%s784]
    %v1160 = vpack.c.bf16 0.0, %v1159
    %s1161 = sshll.u32 1, %s785
    %s1162 = ssub.s32 %s1161, 1
    %s1163 = smul.addr 1, 47
    %s1164 = scalar_lea.vmem %s1, %s1163
    %1165 = vst [vmem:[%s1164] sm:%s1162] %v1160
    %s1166 = scalar_lea.vmem [#allocation0], 384
    %v1167 = vld [vmem:[%s1166] sm:%s784]
    %v1168 = vpack.c.bf16 0.0, %v1167
    %s1169 = sshll.u32 1, %s785
    %s1170 = ssub.s32 %s1169, 1
    %s1171 = smul.addr 1, 48
    %s1172 = scalar_lea.vmem %s1, %s1171
    %1173 = vst [vmem:[%s1172] sm:%s1170] %v1168
    %s1174 = scalar_lea.vmem [#allocation0], 392
    %v1175 = vld [vmem:[%s1174] sm:%s784]
    %v1176 = vpack.c.bf16 0.0, %v1175
    %s1177 = sshll.u32 1, %s785
    %s1178 = ssub.s32 %s1177, 1
    %s1179 = smul.addr 1, 49
    %s1180 = scalar_lea.vmem %s1, %s1179
    %1181 = vst [vmem:[%s1180] sm:%s1178] %v1176
    %s1182 = scalar_lea.vmem [#allocation0], 400
    %v1183 = vld [vmem:[%s1182] sm:%s784]
    %v1184 = vpack.c.bf16 0.0, %v1183
    %s1185 = sshll.u32 1, %s785
    %s1186 = ssub.s32 %s1185, 1
    %s1187 = smul.addr 1, 50
    %s1188 = scalar_lea.vmem %s1, %s1187
    %1189 = vst [vmem:[%s1188] sm:%s1186] %v1184
    %s1190 = scalar_lea.vmem [#allocation0], 408
    %v1191 = vld [vmem:[%s1190] sm:%s784]
    %v1192 = vpack.c.bf16 0.0, %v1191
    %s1193 = sshll.u32 1, %s785
    %s1194 = ssub.s32 %s1193, 1
    %s1195 = smul.addr 1, 51
    %s1196 = scalar_lea.vmem %s1, %s1195
    %1197 = vst [vmem:[%s1196] sm:%s1194] %v1192
    %s1198 = scalar_lea.vmem [#allocation0], 416
    %v1199 = vld [vmem:[%s1198] sm:%s784]
    %v1200 = vpack.c.bf16 0.0, %v1199
    %s1201 = sshll.u32 1, %s785
    %s1202 = ssub.s32 %s1201, 1
    %s1203 = smul.addr 1, 52
    %s1204 = scalar_lea.vmem %s1, %s1203
    %1205 = vst [vmem:[%s1204] sm:%s1202] %v1200
    %s1206 = scalar_lea.vmem [#allocation0], 424
    %v1207 = vld [vmem:[%s1206] sm:%s784]
    %v1208 = vpack.c.bf16 0.0, %v1207
    %s1209 = sshll.u32 1, %s785
    %s1210 = ssub.s32 %s1209, 1
    %s1211 = smul.addr 1, 53
    %s1212 = scalar_lea.vmem %s1, %s1211
    %1213 = vst [vmem:[%s1212] sm:%s1210] %v1208
    %s1214 = scalar_lea.vmem [#allocation0], 432
    %v1215 = vld [vmem:[%s1214] sm:%s784]
    %v1216 = vpack.c.bf16 0.0, %v1215
    %s1217 = sshll.u32 1, %s785
    %s1218 = ssub.s32 %s1217, 1
    %s1219 = smul.addr 1, 54
    %s1220 = scalar_lea.vmem %s1, %s1219
    %1221 = vst [vmem:[%s1220] sm:%s1218] %v1216
    %s1222 = scalar_lea.vmem [#allocation0], 440
    %v1223 = vld [vmem:[%s1222] sm:%s784]
    %v1224 = vpack.c.bf16 0.0, %v1223
    %s1225 = sshll.u32 1, %s785
    %s1226 = ssub.s32 %s1225, 1
    %s1227 = smul.addr 1, 55
    %s1228 = scalar_lea.vmem %s1, %s1227
    %1229 = vst [vmem:[%s1228] sm:%s1226] %v1224
    %s1230 = scalar_lea.vmem [#allocation0], 448
    %v1231 = vld [vmem:[%s1230] sm:%s784]
    %v1232 = vpack.c.bf16 0.0, %v1231
    %s1233 = sshll.u32 1, %s785
    %s1234 = ssub.s32 %s1233, 1
    %s1235 = smul.addr 1, 56
    %s1236 = scalar_lea.vmem %s1, %s1235
    %1237 = vst [vmem:[%s1236] sm:%s1234] %v1232
    %s1238 = scalar_lea.vmem [#allocation0], 456
    %v1239 = vld [vmem:[%s1238] sm:%s784]
    %v1240 = vpack.c.bf16 0.0, %v1239
    %s1241 = sshll.u32 1, %s785
    %s1242 = ssub.s32 %s1241, 1
    %s1243 = smul.addr 1, 57
    %s1244 = scalar_lea.vmem %s1, %s1243
    %1245 = vst [vmem:[%s1244] sm:%s1242] %v1240
    %s1246 = scalar_lea.vmem [#allocation0], 464
    %v1247 = vld [vmem:[%s1246] sm:%s784]
    %v1248 = vpack.c.bf16 0.0, %v1247
    %s1249 = sshll.u32 1, %s785
    %s1250 = ssub.s32 %s1249, 1
    %s1251 = smul.addr 1, 58
    %s1252 = scalar_lea.vmem %s1, %s1251
    %1253 = vst [vmem:[%s1252] sm:%s1250] %v1248
    %s1254 = scalar_lea.vmem [#allocation0], 472
    %v1255 = vld [vmem:[%s1254] sm:%s784]
    %v1256 = vpack.c.bf16 0.0, %v1255
    %s1257 = sshll.u32 1, %s785
    %s1258 = ssub.s32 %s1257, 1
    %s1259 = smul.addr 1, 59
    %s1260 = scalar_lea.vmem %s1, %s1259
    %1261 = vst [vmem:[%s1260] sm:%s1258] %v1256
    %s1262 = scalar_lea.vmem [#allocation0], 480
    %v1263 = vld [vmem:[%s1262] sm:%s784]
    %v1264 = vpack.c.bf16 0.0, %v1263
    %s1265 = sshll.u32 1, %s785
    %s1266 = ssub.s32 %s1265, 1
    %s1267 = smul.addr 1, 60
    %s1268 = scalar_lea.vmem %s1, %s1267
    %1269 = vst [vmem:[%s1268] sm:%s1266] %v1264
    %s1270 = scalar_lea.vmem [#allocation0], 488
    %v1271 = vld [vmem:[%s1270] sm:%s784]
    %v1272 = vpack.c.bf16 0.0, %v1271
    %s1273 = sshll.u32 1, %s785
    %s1274 = ssub.s32 %s1273, 1
    %s1275 = smul.addr 1, 61
    %s1276 = scalar_lea.vmem %s1, %s1275
    %1277 = vst [vmem:[%s1276] sm:%s1274] %v1272
    %s1278 = scalar_lea.vmem [#allocation0], 496
    %v1279 = vld [vmem:[%s1278] sm:%s784]
    %v1280 = vpack.c.bf16 0.0, %v1279
    %s1281 = sshll.u32 1, %s785
    %s1282 = ssub.s32 %s1281, 1
    %s1283 = smul.addr 1, 62
    %s1284 = scalar_lea.vmem %s1, %s1283
    %1285 = vst [vmem:[%s1284] sm:%s1282] %v1280
    %s1286 = scalar_lea.vmem [#allocation0], 504
    %v1287 = vld [vmem:[%s1286] sm:%s784]
    %v1288 = vpack.c.bf16 0.0, %v1287
    %s1289 = sshll.u32 1, %s785
    %s1290 = ssub.s32 %s1289, 1
    %s1291 = smul.addr 1, 63
    %s1292 = scalar_lea.vmem %s1, %s1291
    %1293 = vst [vmem:[%s1292] sm:%s1290] %v1288
    %s1294 = scalar_lea.vmem [#allocation0], 512
    %v1295 = vld [vmem:[%s1294] sm:%s784]
    %v1296 = vpack.c.bf16 0.0, %v1295
    %s1297 = sshll.u32 1, %s785
    %s1298 = ssub.s32 %s1297, 1
    %s1299 = smul.addr 1, 64
    %s1300 = scalar_lea.vmem %s1, %s1299
    %1301 = vst [vmem:[%s1300] sm:%s1298] %v1296
    %s1302 = scalar_lea.vmem [#allocation0], 520
    %v1303 = vld [vmem:[%s1302] sm:%s784]
    %v1304 = vpack.c.bf16 0.0, %v1303
    %s1305 = sshll.u32 1, %s785
    %s1306 = ssub.s32 %s1305, 1
    %s1307 = smul.addr 1, 65
    %s1308 = scalar_lea.vmem %s1, %s1307
    %1309 = vst [vmem:[%s1308] sm:%s1306] %v1304
    %s1310 = scalar_lea.vmem [#allocation0], 528
    %v1311 = vld [vmem:[%s1310] sm:%s784]
    %v1312 = vpack.c.bf16 0.0, %v1311
    %s1313 = sshll.u32 1, %s785
    %s1314 = ssub.s32 %s1313, 1
    %s1315 = smul.addr 1, 66
    %s1316 = scalar_lea.vmem %s1, %s1315
    %1317 = vst [vmem:[%s1316] sm:%s1314] %v1312
    %s1318 = scalar_lea.vmem [#allocation0], 536
    %v1319 = vld [vmem:[%s1318] sm:%s784]
    %v1320 = vpack.c.bf16 0.0, %v1319
    %s1321 = sshll.u32 1, %s785
    %s1322 = ssub.s32 %s1321, 1
    %s1323 = smul.addr 1, 67
    %s1324 = scalar_lea.vmem %s1, %s1323
    %1325 = vst [vmem:[%s1324] sm:%s1322] %v1320
    %s1326 = scalar_lea.vmem [#allocation0], 544
    %v1327 = vld [vmem:[%s1326] sm:%s784]
    %v1328 = vpack.c.bf16 0.0, %v1327
    %s1329 = sshll.u32 1, %s785
    %s1330 = ssub.s32 %s1329, 1
    %s1331 = smul.addr 1, 68
    %s1332 = scalar_lea.vmem %s1, %s1331
    %1333 = vst [vmem:[%s1332] sm:%s1330] %v1328
    %s1334 = scalar_lea.vmem [#allocation0], 552
    %v1335 = vld [vmem:[%s1334] sm:%s784]
    %v1336 = vpack.c.bf16 0.0, %v1335
    %s1337 = sshll.u32 1, %s785
    %s1338 = ssub.s32 %s1337, 1
    %s1339 = smul.addr 1, 69
    %s1340 = scalar_lea.vmem %s1, %s1339
    %1341 = vst [vmem:[%s1340] sm:%s1338] %v1336
    %s1342 = scalar_lea.vmem [#allocation0], 560
    %v1343 = vld [vmem:[%s1342] sm:%s784]
    %v1344 = vpack.c.bf16 0.0, %v1343
    %s1345 = sshll.u32 1, %s785
    %s1346 = ssub.s32 %s1345, 1
    %s1347 = smul.addr 1, 70
    %s1348 = scalar_lea.vmem %s1, %s1347
    %1349 = vst [vmem:[%s1348] sm:%s1346] %v1344
    %s1350 = scalar_lea.vmem [#allocation0], 568
    %v1351 = vld [vmem:[%s1350] sm:%s784]
    %v1352 = vpack.c.bf16 0.0, %v1351
    %s1353 = sshll.u32 1, %s785
    %s1354 = ssub.s32 %s1353, 1
    %s1355 = smul.addr 1, 71
    %s1356 = scalar_lea.vmem %s1, %s1355
    %1357 = vst [vmem:[%s1356] sm:%s1354] %v1352
    %s1358 = scalar_lea.vmem [#allocation0], 576
    %v1359 = vld [vmem:[%s1358] sm:%s784]
    %v1360 = vpack.c.bf16 0.0, %v1359
    %s1361 = sshll.u32 1, %s785
    %s1362 = ssub.s32 %s1361, 1
    %s1363 = smul.addr 1, 72
    %s1364 = scalar_lea.vmem %s1, %s1363
    %1365 = vst [vmem:[%s1364] sm:%s1362] %v1360
    %s1366 = scalar_lea.vmem [#allocation0], 584
    %v1367 = vld [vmem:[%s1366] sm:%s784]
    %v1368 = vpack.c.bf16 0.0, %v1367
    %s1369 = sshll.u32 1, %s785
    %s1370 = ssub.s32 %s1369, 1
    %s1371 = smul.addr 1, 73
    %s1372 = scalar_lea.vmem %s1, %s1371
    %1373 = vst [vmem:[%s1372] sm:%s1370] %v1368
    %s1374 = scalar_lea.vmem [#allocation0], 592
    %v1375 = vld [vmem:[%s1374] sm:%s784]
    %v1376 = vpack.c.bf16 0.0, %v1375
    %s1377 = sshll.u32 1, %s785
    %s1378 = ssub.s32 %s1377, 1
    %s1379 = smul.addr 1, 74
    %s1380 = scalar_lea.vmem %s1, %s1379
    %1381 = vst [vmem:[%s1380] sm:%s1378] %v1376
    %s1382 = scalar_lea.vmem [#allocation0], 600
    %v1383 = vld [vmem:[%s1382] sm:%s784]
    %v1384 = vpack.c.bf16 0.0, %v1383
    %s1385 = sshll.u32 1, %s785
    %s1386 = ssub.s32 %s1385, 1
    %s1387 = smul.addr 1, 75
    %s1388 = scalar_lea.vmem %s1, %s1387
    %1389 = vst [vmem:[%s1388] sm:%s1386] %v1384
    %s1390 = scalar_lea.vmem [#allocation0], 608
    %v1391 = vld [vmem:[%s1390] sm:%s784]
    %v1392 = vpack.c.bf16 0.0, %v1391
    %s1393 = sshll.u32 1, %s785
    %s1394 = ssub.s32 %s1393, 1
    %s1395 = smul.addr 1, 76
    %s1396 = scalar_lea.vmem %s1, %s1395
    %1397 = vst [vmem:[%s1396] sm:%s1394] %v1392
    %s1398 = scalar_lea.vmem [#allocation0], 616
    %v1399 = vld [vmem:[%s1398] sm:%s784]
    %v1400 = vpack.c.bf16 0.0, %v1399
    %s1401 = sshll.u32 1, %s785
    %s1402 = ssub.s32 %s1401, 1
    %s1403 = smul.addr 1, 77
    %s1404 = scalar_lea.vmem %s1, %s1403
    %1405 = vst [vmem:[%s1404] sm:%s1402] %v1400
    %s1406 = scalar_lea.vmem [#allocation0], 624
    %v1407 = vld [vmem:[%s1406] sm:%s784]
    %v1408 = vpack.c.bf16 0.0, %v1407
    %s1409 = sshll.u32 1, %s785
    %s1410 = ssub.s32 %s1409, 1
    %s1411 = smul.addr 1, 78
    %s1412 = scalar_lea.vmem %s1, %s1411
    %1413 = vst [vmem:[%s1412] sm:%s1410] %v1408
    %s1414 = scalar_lea.vmem [#allocation0], 632
    %v1415 = vld [vmem:[%s1414] sm:%s784]
    %v1416 = vpack.c.bf16 0.0, %v1415
    %s1417 = sshll.u32 1, %s785
    %s1418 = ssub.s32 %s1417, 1
    %s1419 = smul.addr 1, 79
    %s1420 = scalar_lea.vmem %s1, %s1419
    %1421 = vst [vmem:[%s1420] sm:%s1418] %v1416
    %s1422 = scalar_lea.vmem [#allocation0], 640
    %v1423 = vld [vmem:[%s1422] sm:%s784]
    %v1424 = vpack.c.bf16 0.0, %v1423
    %s1425 = sshll.u32 1, %s785
    %s1426 = ssub.s32 %s1425, 1
    %s1427 = smul.addr 1, 80
    %s1428 = scalar_lea.vmem %s1, %s1427
    %1429 = vst [vmem:[%s1428] sm:%s1426] %v1424
    %s1430 = scalar_lea.vmem [#allocation0], 648
    %v1431 = vld [vmem:[%s1430] sm:%s784]
    %v1432 = vpack.c.bf16 0.0, %v1431
    %s1433 = sshll.u32 1, %s785
    %s1434 = ssub.s32 %s1433, 1
    %s1435 = smul.addr 1, 81
    %s1436 = scalar_lea.vmem %s1, %s1435
    %1437 = vst [vmem:[%s1436] sm:%s1434] %v1432
    %s1438 = scalar_lea.vmem [#allocation0], 656
    %v1439 = vld [vmem:[%s1438] sm:%s784]
    %v1440 = vpack.c.bf16 0.0, %v1439
    %s1441 = sshll.u32 1, %s785
    %s1442 = ssub.s32 %s1441, 1
    %s1443 = smul.addr 1, 82
    %s1444 = scalar_lea.vmem %s1, %s1443
    %1445 = vst [vmem:[%s1444] sm:%s1442] %v1440
    %s1446 = scalar_lea.vmem [#allocation0], 664
    %v1447 = vld [vmem:[%s1446] sm:%s784]
    %v1448 = vpack.c.bf16 0.0, %v1447
    %s1449 = sshll.u32 1, %s785
    %s1450 = ssub.s32 %s1449, 1
    %s1451 = smul.addr 1, 83
    %s1452 = scalar_lea.vmem %s1, %s1451
    %1453 = vst [vmem:[%s1452] sm:%s1450] %v1448
    %s1454 = scalar_lea.vmem [#allocation0], 672
    %v1455 = vld [vmem:[%s1454] sm:%s784]
    %v1456 = vpack.c.bf16 0.0, %v1455
    %s1457 = sshll.u32 1, %s785
    %s1458 = ssub.s32 %s1457, 1
    %s1459 = smul.addr 1, 84
    %s1460 = scalar_lea.vmem %s1, %s1459
    %1461 = vst [vmem:[%s1460] sm:%s1458] %v1456
    %s1462 = scalar_lea.vmem [#allocation0], 680
    %v1463 = vld [vmem:[%s1462] sm:%s784]
    %v1464 = vpack.c.bf16 0.0, %v1463
    %s1465 = sshll.u32 1, %s785
    %s1466 = ssub.s32 %s1465, 1
    %s1467 = smul.addr 1, 85
    %s1468 = scalar_lea.vmem %s1, %s1467
    %1469 = vst [vmem:[%s1468] sm:%s1466] %v1464
    %s1470 = scalar_lea.vmem [#allocation0], 688
    %v1471 = vld [vmem:[%s1470] sm:%s784]
    %v1472 = vpack.c.bf16 0.0, %v1471
    %s1473 = sshll.u32 1, %s785
    %s1474 = ssub.s32 %s1473, 1
    %s1475 = smul.addr 1, 86
    %s1476 = scalar_lea.vmem %s1, %s1475
    %1477 = vst [vmem:[%s1476] sm:%s1474] %v1472
    %s1478 = scalar_lea.vmem [#allocation0], 696
    %v1479 = vld [vmem:[%s1478] sm:%s784]
    %v1480 = vpack.c.bf16 0.0, %v1479
    %s1481 = sshll.u32 1, %s785
    %s1482 = ssub.s32 %s1481, 1
    %s1483 = smul.addr 1, 87
    %s1484 = scalar_lea.vmem %s1, %s1483
    %1485 = vst [vmem:[%s1484] sm:%s1482] %v1480
    %s1486 = scalar_lea.vmem [#allocation0], 704
    %v1487 = vld [vmem:[%s1486] sm:%s784]
    %v1488 = vpack.c.bf16 0.0, %v1487
    %s1489 = sshll.u32 1, %s785
    %s1490 = ssub.s32 %s1489, 1
    %s1491 = smul.addr 1, 88
    %s1492 = scalar_lea.vmem %s1, %s1491
    %1493 = vst [vmem:[%s1492] sm:%s1490] %v1488
    %s1494 = scalar_lea.vmem [#allocation0], 712
    %v1495 = vld [vmem:[%s1494] sm:%s784]
    %v1496 = vpack.c.bf16 0.0, %v1495
    %s1497 = sshll.u32 1, %s785
    %s1498 = ssub.s32 %s1497, 1
    %s1499 = smul.addr 1, 89
    %s1500 = scalar_lea.vmem %s1, %s1499
    %1501 = vst [vmem:[%s1500] sm:%s1498] %v1496
    %s1502 = scalar_lea.vmem [#allocation0], 720
    %v1503 = vld [vmem:[%s1502] sm:%s784]
    %v1504 = vpack.c.bf16 0.0, %v1503
    %s1505 = sshll.u32 1, %s785
    %s1506 = ssub.s32 %s1505, 1
    %s1507 = smul.addr 1, 90
    %s1508 = scalar_lea.vmem %s1, %s1507
    %1509 = vst [vmem:[%s1508] sm:%s1506] %v1504
    %s1510 = scalar_lea.vmem [#allocation0], 728
    %v1511 = vld [vmem:[%s1510] sm:%s784]
    %v1512 = vpack.c.bf16 0.0, %v1511
    %s1513 = sshll.u32 1, %s785
    %s1514 = ssub.s32 %s1513, 1
    %s1515 = smul.addr 1, 91
    %s1516 = scalar_lea.vmem %s1, %s1515
    %1517 = vst [vmem:[%s1516] sm:%s1514] %v1512
    %s1518 = scalar_lea.vmem [#allocation0], 736
    %v1519 = vld [vmem:[%s1518] sm:%s784]
    %v1520 = vpack.c.bf16 0.0, %v1519
    %s1521 = sshll.u32 1, %s785
    %s1522 = ssub.s32 %s1521, 1
    %s1523 = smul.addr 1, 92
    %s1524 = scalar_lea.vmem %s1, %s1523
    %1525 = vst [vmem:[%s1524] sm:%s1522] %v1520
    %s1526 = scalar_lea.vmem [#allocation0], 744
    %v1527 = vld [vmem:[%s1526] sm:%s784]
    %v1528 = vpack.c.bf16 0.0, %v1527
    %s1529 = sshll.u32 1, %s785
    %s1530 = ssub.s32 %s1529, 1
    %s1531 = smul.addr 1, 93
    %s1532 = scalar_lea.vmem %s1, %s1531
    %1533 = vst [vmem:[%s1532] sm:%s1530] %v1528
    %s1534 = scalar_lea.vmem [#allocation0], 752
    %v1535 = vld [vmem:[%s1534] sm:%s784]
    %v1536 = vpack.c.bf16 0.0, %v1535
    %s1537 = sshll.u32 1, %s785
    %s1538 = ssub.s32 %s1537, 1
    %s1539 = smul.addr 1, 94
    %s1540 = scalar_lea.vmem %s1, %s1539
    %1541 = vst [vmem:[%s1540] sm:%s1538] %v1536
    %s1542 = scalar_lea.vmem [#allocation0], 760
    %v1543 = vld [vmem:[%s1542] sm:%s784]
    %v1544 = vpack.c.bf16 0.0, %v1543
    %s1545 = sshll.u32 1, %s785
    %s1546 = ssub.s32 %s1545, 1
    %s1547 = smul.addr 1, 95
    %s1548 = scalar_lea.vmem %s1, %s1547
    %1549 = vst [vmem:[%s1548] sm:%s1546] %v1544
    %s1550 = scalar_lea.vmem [#allocation0], 768
    %v1551 = vld [vmem:[%s1550] sm:%s784]
    %v1552 = vpack.c.bf16 0.0, %v1551
    %s1553 = sshll.u32 1, %s785
    %s1554 = ssub.s32 %s1553, 1
    %s1555 = smul.addr 1, 96
    %s1556 = scalar_lea.vmem %s1, %s1555
    %1557 = vst [vmem:[%s1556] sm:%s1554] %v1552
    %s1558 = scalar_lea.vmem [#allocation0], 776
    %v1559 = vld [vmem:[%s1558] sm:%s784]
    %v1560 = vpack.c.bf16 0.0, %v1559
    %s1561 = sshll.u32 1, %s785
    %s1562 = ssub.s32 %s1561, 1
    %s1563 = smul.addr 1, 97
    %s1564 = scalar_lea.vmem %s1, %s1563
    %1565 = vst [vmem:[%s1564] sm:%s1562] %v1560
    %s1566 = scalar_lea.vmem [#allocation0], 784
    %v1567 = vld [vmem:[%s1566] sm:%s784]
    %v1568 = vpack.c.bf16 0.0, %v1567
    %s1569 = sshll.u32 1, %s785
    %s1570 = ssub.s32 %s1569, 1
    %s1571 = smul.addr 1, 98
    %s1572 = scalar_lea.vmem %s1, %s1571
    %1573 = vst [vmem:[%s1572] sm:%s1570] %v1568
    %s1574 = scalar_lea.vmem [#allocation0], 792
    %v1575 = vld [vmem:[%s1574] sm:%s784]
    %v1576 = vpack.c.bf16 0.0, %v1575
    %s1577 = sshll.u32 1, %s785
    %s1578 = ssub.s32 %s1577, 1
    %s1579 = smul.addr 1, 99
    %s1580 = scalar_lea.vmem %s1, %s1579
    %1581 = vst [vmem:[%s1580] sm:%s1578] %v1576
    %s1582 = scalar_lea.vmem [#allocation0], 800
    %v1583 = vld [vmem:[%s1582] sm:%s784]
    %v1584 = vpack.c.bf16 0.0, %v1583
    %s1585 = sshll.u32 1, %s785
    %s1586 = ssub.s32 %s1585, 1
    %s1587 = smul.addr 1, 100
    %s1588 = scalar_lea.vmem %s1, %s1587
    %1589 = vst [vmem:[%s1588] sm:%s1586] %v1584
    %s1590 = scalar_lea.vmem [#allocation0], 808
    %v1591 = vld [vmem:[%s1590] sm:%s784]
    %v1592 = vpack.c.bf16 0.0, %v1591
    %s1593 = sshll.u32 1, %s785
    %s1594 = ssub.s32 %s1593, 1
    %s1595 = smul.addr 1, 101
    %s1596 = scalar_lea.vmem %s1, %s1595
    %1597 = vst [vmem:[%s1596] sm:%s1594] %v1592
    %s1598 = scalar_lea.vmem [#allocation0], 816
    %v1599 = vld [vmem:[%s1598] sm:%s784]
    %v1600 = vpack.c.bf16 0.0, %v1599
    %s1601 = sshll.u32 1, %s785
    %s1602 = ssub.s32 %s1601, 1
    %s1603 = smul.addr 1, 102
    %s1604 = scalar_lea.vmem %s1, %s1603
    %1605 = vst [vmem:[%s1604] sm:%s1602] %v1600
    %s1606 = scalar_lea.vmem [#allocation0], 824
    %v1607 = vld [vmem:[%s1606] sm:%s784]
    %v1608 = vpack.c.bf16 0.0, %v1607
    %s1609 = sshll.u32 1, %s785
    %s1610 = ssub.s32 %s1609, 1
    %s1611 = smul.addr 1, 103
    %s1612 = scalar_lea.vmem %s1, %s1611
    %1613 = vst [vmem:[%s1612] sm:%s1610] %v1608
    %s1614 = scalar_lea.vmem [#allocation0], 832
    %v1615 = vld [vmem:[%s1614] sm:%s784]
    %v1616 = vpack.c.bf16 0.0, %v1615
    %s1617 = sshll.u32 1, %s785
    %s1618 = ssub.s32 %s1617, 1
    %s1619 = smul.addr 1, 104
    %s1620 = scalar_lea.vmem %s1, %s1619
    %1621 = vst [vmem:[%s1620] sm:%s1618] %v1616
    %s1622 = scalar_lea.vmem [#allocation0], 840
    %v1623 = vld [vmem:[%s1622] sm:%s784]
    %v1624 = vpack.c.bf16 0.0, %v1623
    %s1625 = sshll.u32 1, %s785
    %s1626 = ssub.s32 %s1625, 1
    %s1627 = smul.addr 1, 105
    %s1628 = scalar_lea.vmem %s1, %s1627
    %1629 = vst [vmem:[%s1628] sm:%s1626] %v1624
    %s1630 = scalar_lea.vmem [#allocation0], 848
    %v1631 = vld [vmem:[%s1630] sm:%s784]
    %v1632 = vpack.c.bf16 0.0, %v1631
    %s1633 = sshll.u32 1, %s785
    %s1634 = ssub.s32 %s1633, 1
    %s1635 = smul.addr 1, 106
    %s1636 = scalar_lea.vmem %s1, %s1635
    %1637 = vst [vmem:[%s1636] sm:%s1634] %v1632
    %s1638 = scalar_lea.vmem [#allocation0], 856
    %v1639 = vld [vmem:[%s1638] sm:%s784]
    %v1640 = vpack.c.bf16 0.0, %v1639
    %s1641 = sshll.u32 1, %s785
    %s1642 = ssub.s32 %s1641, 1
    %s1643 = smul.addr 1, 107
    %s1644 = scalar_lea.vmem %s1, %s1643
    %1645 = vst [vmem:[%s1644] sm:%s1642] %v1640
    %s1646 = scalar_lea.vmem [#allocation0], 864
    %v1647 = vld [vmem:[%s1646] sm:%s784]
    %v1648 = vpack.c.bf16 0.0, %v1647
    %s1649 = sshll.u32 1, %s785
    %s1650 = ssub.s32 %s1649, 1
    %s1651 = smul.addr 1, 108
    %s1652 = scalar_lea.vmem %s1, %s1651
    %1653 = vst [vmem:[%s1652] sm:%s1650] %v1648
    %s1654 = scalar_lea.vmem [#allocation0], 872
    %v1655 = vld [vmem:[%s1654] sm:%s784]
    %v1656 = vpack.c.bf16 0.0, %v1655
    %s1657 = sshll.u32 1, %s785
    %s1658 = ssub.s32 %s1657, 1
    %s1659 = smul.addr 1, 109
    %s1660 = scalar_lea.vmem %s1, %s1659
    %1661 = vst [vmem:[%s1660] sm:%s1658] %v1656
    %s1662 = scalar_lea.vmem [#allocation0], 880
    %v1663 = vld [vmem:[%s1662] sm:%s784]
    %v1664 = vpack.c.bf16 0.0, %v1663
    %s1665 = sshll.u32 1, %s785
    %s1666 = ssub.s32 %s1665, 1
    %s1667 = smul.addr 1, 110
    %s1668 = scalar_lea.vmem %s1, %s1667
    %1669 = vst [vmem:[%s1668] sm:%s1666] %v1664
    %s1670 = scalar_lea.vmem [#allocation0], 888
    %v1671 = vld [vmem:[%s1670] sm:%s784]
    %v1672 = vpack.c.bf16 0.0, %v1671
    %s1673 = sshll.u32 1, %s785
    %s1674 = ssub.s32 %s1673, 1
    %s1675 = smul.addr 1, 111
    %s1676 = scalar_lea.vmem %s1, %s1675
    %1677 = vst [vmem:[%s1676] sm:%s1674] %v1672
    %s1678 = scalar_lea.vmem [#allocation0], 896
    %v1679 = vld [vmem:[%s1678] sm:%s784]
    %v1680 = vpack.c.bf16 0.0, %v1679
    %s1681 = sshll.u32 1, %s785
    %s1682 = ssub.s32 %s1681, 1
    %s1683 = smul.addr 1, 112
    %s1684 = scalar_lea.vmem %s1, %s1683
    %1685 = vst [vmem:[%s1684] sm:%s1682] %v1680
    %s1686 = scalar_lea.vmem [#allocation0], 904
    %v1687 = vld [vmem:[%s1686] sm:%s784]
    %v1688 = vpack.c.bf16 0.0, %v1687
    %s1689 = sshll.u32 1, %s785
    %s1690 = ssub.s32 %s1689, 1
    %s1691 = smul.addr 1, 113
    %s1692 = scalar_lea.vmem %s1, %s1691
    %1693 = vst [vmem:[%s1692] sm:%s1690] %v1688
    %s1694 = scalar_lea.vmem [#allocation0], 912
    %v1695 = vld [vmem:[%s1694] sm:%s784]
    %v1696 = vpack.c.bf16 0.0, %v1695
    %s1697 = sshll.u32 1, %s785
    %s1698 = ssub.s32 %s1697, 1
    %s1699 = smul.addr 1, 114
    %s1700 = scalar_lea.vmem %s1, %s1699
    %1701 = vst [vmem:[%s1700] sm:%s1698] %v1696
    %s1702 = scalar_lea.vmem [#allocation0], 920
    %v1703 = vld [vmem:[%s1702] sm:%s784]
    %v1704 = vpack.c.bf16 0.0, %v1703
    %s1705 = sshll.u32 1, %s785
    %s1706 = ssub.s32 %s1705, 1
    %s1707 = smul.addr 1, 115
    %s1708 = scalar_lea.vmem %s1, %s1707
    %1709 = vst [vmem:[%s1708] sm:%s1706] %v1704
    %s1710 = scalar_lea.vmem [#allocation0], 928
    %v1711 = vld [vmem:[%s1710] sm:%s784]
    %v1712 = vpack.c.bf16 0.0, %v1711
    %s1713 = sshll.u32 1, %s785
    %s1714 = ssub.s32 %s1713, 1
    %s1715 = smul.addr 1, 116
    %s1716 = scalar_lea.vmem %s1, %s1715
    %1717 = vst [vmem:[%s1716] sm:%s1714] %v1712
    %s1718 = scalar_lea.vmem [#allocation0], 936
    %v1719 = vld [vmem:[%s1718] sm:%s784]
    %v1720 = vpack.c.bf16 0.0, %v1719
    %s1721 = sshll.u32 1, %s785
    %s1722 = ssub.s32 %s1721, 1
    %s1723 = smul.addr 1, 117
    %s1724 = scalar_lea.vmem %s1, %s1723
    %1725 = vst [vmem:[%s1724] sm:%s1722] %v1720
    %s1726 = scalar_lea.vmem [#allocation0], 944
    %v1727 = vld [vmem:[%s1726] sm:%s784]
    %v1728 = vpack.c.bf16 0.0, %v1727
    %s1729 = sshll.u32 1, %s785
    %s1730 = ssub.s32 %s1729, 1
    %s1731 = smul.addr 1, 118
    %s1732 = scalar_lea.vmem %s1, %s1731
    %1733 = vst [vmem:[%s1732] sm:%s1730] %v1728
    %s1734 = scalar_lea.vmem [#allocation0], 952
    %v1735 = vld [vmem:[%s1734] sm:%s784]
    %v1736 = vpack.c.bf16 0.0, %v1735
    %s1737 = sshll.u32 1, %s785
    %s1738 = ssub.s32 %s1737, 1
    %s1739 = smul.addr 1, 119
    %s1740 = scalar_lea.vmem %s1, %s1739
    %1741 = vst [vmem:[%s1740] sm:%s1738] %v1736
    %s1742 = scalar_lea.vmem [#allocation0], 960
    %v1743 = vld [vmem:[%s1742] sm:%s784]
    %v1744 = vpack.c.bf16 0.0, %v1743
    %s1745 = sshll.u32 1, %s785
    %s1746 = ssub.s32 %s1745, 1
    %s1747 = smul.addr 1, 120
    %s1748 = scalar_lea.vmem %s1, %s1747
    %1749 = vst [vmem:[%s1748] sm:%s1746] %v1744
    %s1750 = scalar_lea.vmem [#allocation0], 968
    %v1751 = vld [vmem:[%s1750] sm:%s784]
    %v1752 = vpack.c.bf16 0.0, %v1751
    %s1753 = sshll.u32 1, %s785
    %s1754 = ssub.s32 %s1753, 1
    %s1755 = smul.addr 1, 121
    %s1756 = scalar_lea.vmem %s1, %s1755
    %1757 = vst [vmem:[%s1756] sm:%s1754] %v1752
    %s1758 = scalar_lea.vmem [#allocation0], 976
    %v1759 = vld [vmem:[%s1758] sm:%s784]
    %v1760 = vpack.c.bf16 0.0, %v1759
    %s1761 = sshll.u32 1, %s785
    %s1762 = ssub.s32 %s1761, 1
    %s1763 = smul.addr 1, 122
    %s1764 = scalar_lea.vmem %s1, %s1763
    %1765 = vst [vmem:[%s1764] sm:%s1762] %v1760
    %s1766 = scalar_lea.vmem [#allocation0], 984
    %v1767 = vld [vmem:[%s1766] sm:%s784]
    %v1768 = vpack.c.bf16 0.0, %v1767
    %s1769 = sshll.u32 1, %s785
    %s1770 = ssub.s32 %s1769, 1
    %s1771 = smul.addr 1, 123
    %s1772 = scalar_lea.vmem %s1, %s1771
    %1773 = vst [vmem:[%s1772] sm:%s1770] %v1768
    %s1774 = scalar_lea.vmem [#allocation0], 992
    %v1775 = vld [vmem:[%s1774] sm:%s784]
    %v1776 = vpack.c.bf16 0.0, %v1775
    %s1777 = sshll.u32 1, %s785
    %s1778 = ssub.s32 %s1777, 1
    %s1779 = smul.addr 1, 124
    %s1780 = scalar_lea.vmem %s1, %s1779
    %1781 = vst [vmem:[%s1780] sm:%s1778] %v1776
    %s1782 = scalar_lea.vmem [#allocation0], 1000
    %v1783 = vld [vmem:[%s1782] sm:%s784]
    %v1784 = vpack.c.bf16 0.0, %v1783
    %s1785 = sshll.u32 1, %s785
    %s1786 = ssub.s32 %s1785, 1
    %s1787 = smul.addr 1, 125
    %s1788 = scalar_lea.vmem %s1, %s1787
    %1789 = vst [vmem:[%s1788] sm:%s1786] %v1784
    %s1790 = scalar_lea.vmem [#allocation0], 1008
    %v1791 = vld [vmem:[%s1790] sm:%s784]
    %v1792 = vpack.c.bf16 0.0, %v1791
    %s1793 = sshll.u32 1, %s785
    %s1794 = ssub.s32 %s1793, 1
    %s1795 = smul.addr 1, 126
    %s1796 = scalar_lea.vmem %s1, %s1795
    %1797 = vst [vmem:[%s1796] sm:%s1794] %v1792
    %s1798 = scalar_lea.vmem [#allocation0], 1016
    %v1799 = vld [vmem:[%s1798] sm:%s784]
    %v1800 = vpack.c.bf16 0.0, %v1799
    %s1801 = sshll.u32 1, %s785
    %s1802 = ssub.s32 %s1801, 1
    %s1803 = smul.addr 1, 127
    %s1804 = scalar_lea.vmem %s1, %s1803
    %1805 = vst [vmem:[%s1804] sm:%s1802] %v1800
    %s1806 = scalar_lea.vmem [#allocation0], 1024
    %v1807 = vld [vmem:[%s1806] sm:%s784]
    %v1808 = vpack.c.bf16 0.0, %v1807
    %s1809 = sshll.u32 1, %s785
    %s1810 = ssub.s32 %s1809, 1
    %s1811 = smul.addr 1, 128
    %s1812 = scalar_lea.vmem %s1, %s1811
    %1813 = vst [vmem:[%s1812] sm:%s1810] %v1808
    %s1814 = scalar_lea.vmem [#allocation0], 1032
    %v1815 = vld [vmem:[%s1814] sm:%s784]
    %v1816 = vpack.c.bf16 0.0, %v1815
    %s1817 = sshll.u32 1, %s785
    %s1818 = ssub.s32 %s1817, 1
    %s1819 = smul.addr 1, 129
    %s1820 = scalar_lea.vmem %s1, %s1819
    %1821 = vst [vmem:[%s1820] sm:%s1818] %v1816
    %s1822 = scalar_lea.vmem [#allocation0], 1040
    %v1823 = vld [vmem:[%s1822] sm:%s784]
    %v1824 = vpack.c.bf16 0.0, %v1823
    %s1825 = sshll.u32 1, %s785
    %s1826 = ssub.s32 %s1825, 1
    %s1827 = smul.addr 1, 130
    %s1828 = scalar_lea.vmem %s1, %s1827
    %1829 = vst [vmem:[%s1828] sm:%s1826] %v1824
    %s1830 = scalar_lea.vmem [#allocation0], 1048
    %v1831 = vld [vmem:[%s1830] sm:%s784]
    %v1832 = vpack.c.bf16 0.0, %v1831
    %s1833 = sshll.u32 1, %s785
    %s1834 = ssub.s32 %s1833, 1
    %s1835 = smul.addr 1, 131
    %s1836 = scalar_lea.vmem %s1, %s1835
    %1837 = vst [vmem:[%s1836] sm:%s1834] %v1832
    %s1838 = scalar_lea.vmem [#allocation0], 1056
    %v1839 = vld [vmem:[%s1838] sm:%s784]
    %v1840 = vpack.c.bf16 0.0, %v1839
    %s1841 = sshll.u32 1, %s785
    %s1842 = ssub.s32 %s1841, 1
    %s1843 = smul.addr 1, 132
    %s1844 = scalar_lea.vmem %s1, %s1843
    %1845 = vst [vmem:[%s1844] sm:%s1842] %v1840
    %s1846 = scalar_lea.vmem [#allocation0], 1064
    %v1847 = vld [vmem:[%s1846] sm:%s784]
    %v1848 = vpack.c.bf16 0.0, %v1847
    %s1849 = sshll.u32 1, %s785
    %s1850 = ssub.s32 %s1849, 1
    %s1851 = smul.addr 1, 133
    %s1852 = scalar_lea.vmem %s1, %s1851
    %1853 = vst [vmem:[%s1852] sm:%s1850] %v1848
    %s1854 = scalar_lea.vmem [#allocation0], 1072
    %v1855 = vld [vmem:[%s1854] sm:%s784]
    %v1856 = vpack.c.bf16 0.0, %v1855
    %s1857 = sshll.u32 1, %s785
    %s1858 = ssub.s32 %s1857, 1
    %s1859 = smul.addr 1, 134
    %s1860 = scalar_lea.vmem %s1, %s1859
    %1861 = vst [vmem:[%s1860] sm:%s1858] %v1856
    %s1862 = scalar_lea.vmem [#allocation0], 1080
    %v1863 = vld [vmem:[%s1862] sm:%s784]
    %v1864 = vpack.c.bf16 0.0, %v1863
    %s1865 = sshll.u32 1, %s785
    %s1866 = ssub.s32 %s1865, 1
    %s1867 = smul.addr 1, 135
    %s1868 = scalar_lea.vmem %s1, %s1867
    %1869 = vst [vmem:[%s1868] sm:%s1866] %v1864
    %s1870 = scalar_lea.vmem [#allocation0], 1088
    %v1871 = vld [vmem:[%s1870] sm:%s784]
    %v1872 = vpack.c.bf16 0.0, %v1871
    %s1873 = sshll.u32 1, %s785
    %s1874 = ssub.s32 %s1873, 1
    %s1875 = smul.addr 1, 136
    %s1876 = scalar_lea.vmem %s1, %s1875
    %1877 = vst [vmem:[%s1876] sm:%s1874] %v1872
    %s1878 = scalar_lea.vmem [#allocation0], 1096
    %v1879 = vld [vmem:[%s1878] sm:%s784]
    %v1880 = vpack.c.bf16 0.0, %v1879
    %s1881 = sshll.u32 1, %s785
    %s1882 = ssub.s32 %s1881, 1
    %s1883 = smul.addr 1, 137
    %s1884 = scalar_lea.vmem %s1, %s1883
    %1885 = vst [vmem:[%s1884] sm:%s1882] %v1880
    %s1886 = scalar_lea.vmem [#allocation0], 1104
    %v1887 = vld [vmem:[%s1886] sm:%s784]
    %v1888 = vpack.c.bf16 0.0, %v1887
    %s1889 = sshll.u32 1, %s785
    %s1890 = ssub.s32 %s1889, 1
    %s1891 = smul.addr 1, 138
    %s1892 = scalar_lea.vmem %s1, %s1891
    %1893 = vst [vmem:[%s1892] sm:%s1890] %v1888
    %s1894 = scalar_lea.vmem [#allocation0], 1112
    %v1895 = vld [vmem:[%s1894] sm:%s784]
    %v1896 = vpack.c.bf16 0.0, %v1895
    %s1897 = sshll.u32 1, %s785
    %s1898 = ssub.s32 %s1897, 1
    %s1899 = smul.addr 1, 139
    %s1900 = scalar_lea.vmem %s1, %s1899
    %1901 = vst [vmem:[%s1900] sm:%s1898] %v1896
    %s1902 = scalar_lea.vmem [#allocation0], 1120
    %v1903 = vld [vmem:[%s1902] sm:%s784]
    %v1904 = vpack.c.bf16 0.0, %v1903
    %s1905 = sshll.u32 1, %s785
    %s1906 = ssub.s32 %s1905, 1
    %s1907 = smul.addr 1, 140
    %s1908 = scalar_lea.vmem %s1, %s1907
    %1909 = vst [vmem:[%s1908] sm:%s1906] %v1904
    %s1910 = scalar_lea.vmem [#allocation0], 1128
    %v1911 = vld [vmem:[%s1910] sm:%s784]
    %v1912 = vpack.c.bf16 0.0, %v1911
    %s1913 = sshll.u32 1, %s785
    %s1914 = ssub.s32 %s1913, 1
    %s1915 = smul.addr 1, 141
    %s1916 = scalar_lea.vmem %s1, %s1915
    %1917 = vst [vmem:[%s1916] sm:%s1914] %v1912
    %s1918 = scalar_lea.vmem [#allocation0], 1136
    %v1919 = vld [vmem:[%s1918] sm:%s784]
    %v1920 = vpack.c.bf16 0.0, %v1919
    %s1921 = sshll.u32 1, %s785
    %s1922 = ssub.s32 %s1921, 1
    %s1923 = smul.addr 1, 142
    %s1924 = scalar_lea.vmem %s1, %s1923
    %1925 = vst [vmem:[%s1924] sm:%s1922] %v1920
    %s1926 = scalar_lea.vmem [#allocation0], 1144
    %v1927 = vld [vmem:[%s1926] sm:%s784]
    %v1928 = vpack.c.bf16 0.0, %v1927
    %s1929 = sshll.u32 1, %s785
    %s1930 = ssub.s32 %s1929, 1
    %s1931 = smul.addr 1, 143
    %s1932 = scalar_lea.vmem %s1, %s1931
    %1933 = vst [vmem:[%s1932] sm:%s1930] %v1928
    %s1934 = scalar_lea.vmem [#allocation0], 1152
    %v1935 = vld [vmem:[%s1934] sm:%s784]
    %v1936 = vpack.c.bf16 0.0, %v1935
    %s1937 = sshll.u32 1, %s785
    %s1938 = ssub.s32 %s1937, 1
    %s1939 = smul.addr 1, 144
    %s1940 = scalar_lea.vmem %s1, %s1939
    %1941 = vst [vmem:[%s1940] sm:%s1938] %v1936
    %s1942 = scalar_lea.vmem [#allocation0], 1160
    %v1943 = vld [vmem:[%s1942] sm:%s784]
    %v1944 = vpack.c.bf16 0.0, %v1943
    %s1945 = sshll.u32 1, %s785
    %s1946 = ssub.s32 %s1945, 1
    %s1947 = smul.addr 1, 145
    %s1948 = scalar_lea.vmem %s1, %s1947
    %1949 = vst [vmem:[%s1948] sm:%s1946] %v1944
    %s1950 = scalar_lea.vmem [#allocation0], 1168
    %v1951 = vld [vmem:[%s1950] sm:%s784]
    %v1952 = vpack.c.bf16 0.0, %v1951
    %s1953 = sshll.u32 1, %s785
    %s1954 = ssub.s32 %s1953, 1
    %s1955 = smul.addr 1, 146
    %s1956 = scalar_lea.vmem %s1, %s1955
    %1957 = vst [vmem:[%s1956] sm:%s1954] %v1952
    %s1958 = scalar_lea.vmem [#allocation0], 1176
    %v1959 = vld [vmem:[%s1958] sm:%s784]
    %v1960 = vpack.c.bf16 0.0, %v1959
    %s1961 = sshll.u32 1, %s785
    %s1962 = ssub.s32 %s1961, 1
    %s1963 = smul.addr 1, 147
    %s1964 = scalar_lea.vmem %s1, %s1963
    %1965 = vst [vmem:[%s1964] sm:%s1962] %v1960
    %s1966 = scalar_lea.vmem [#allocation0], 1184
    %v1967 = vld [vmem:[%s1966] sm:%s784]
    %v1968 = vpack.c.bf16 0.0, %v1967
    %s1969 = sshll.u32 1, %s785
    %s1970 = ssub.s32 %s1969, 1
    %s1971 = smul.addr 1, 148
    %s1972 = scalar_lea.vmem %s1, %s1971
    %1973 = vst [vmem:[%s1972] sm:%s1970] %v1968
    %s1974 = scalar_lea.vmem [#allocation0], 1192
    %v1975 = vld [vmem:[%s1974] sm:%s784]
    %v1976 = vpack.c.bf16 0.0, %v1975
    %s1977 = sshll.u32 1, %s785
    %s1978 = ssub.s32 %s1977, 1
    %s1979 = smul.addr 1, 149
    %s1980 = scalar_lea.vmem %s1, %s1979
    %1981 = vst [vmem:[%s1980] sm:%s1978] %v1976
    %s1982 = scalar_lea.vmem [#allocation0], 1200
    %v1983 = vld [vmem:[%s1982] sm:%s784]
    %v1984 = vpack.c.bf16 0.0, %v1983
    %s1985 = sshll.u32 1, %s785
    %s1986 = ssub.s32 %s1985, 1
    %s1987 = smul.addr 1, 150
    %s1988 = scalar_lea.vmem %s1, %s1987
    %1989 = vst [vmem:[%s1988] sm:%s1986] %v1984
    %s1990 = scalar_lea.vmem [#allocation0], 1208
    %v1991 = vld [vmem:[%s1990] sm:%s784]
    %v1992 = vpack.c.bf16 0.0, %v1991
    %s1993 = sshll.u32 1, %s785
    %s1994 = ssub.s32 %s1993, 1
    %s1995 = smul.addr 1, 151
    %s1996 = scalar_lea.vmem %s1, %s1995
    %1997 = vst [vmem:[%s1996] sm:%s1994] %v1992
    %s1998 = scalar_lea.vmem [#allocation0], 1216
    %v1999 = vld [vmem:[%s1998] sm:%s784]
    %v2000 = vpack.c.bf16 0.0, %v1999
    %s2001 = sshll.u32 1, %s785
    %s2002 = ssub.s32 %s2001, 1
    %s2003 = smul.addr 1, 152
    %s2004 = scalar_lea.vmem %s1, %s2003
    %2005 = vst [vmem:[%s2004] sm:%s2002] %v2000
    %s2006 = scalar_lea.vmem [#allocation0], 1224
    %v2007 = vld [vmem:[%s2006] sm:%s784]
    %v2008 = vpack.c.bf16 0.0, %v2007
    %s2009 = sshll.u32 1, %s785
    %s2010 = ssub.s32 %s2009, 1
    %s2011 = smul.addr 1, 153
    %s2012 = scalar_lea.vmem %s1, %s2011
    %2013 = vst [vmem:[%s2012] sm:%s2010] %v2008
    %s2014 = scalar_lea.vmem [#allocation0], 1232
    %v2015 = vld [vmem:[%s2014] sm:%s784]
    %v2016 = vpack.c.bf16 0.0, %v2015
    %s2017 = sshll.u32 1, %s785
    %s2018 = ssub.s32 %s2017, 1
    %s2019 = smul.addr 1, 154
    %s2020 = scalar_lea.vmem %s1, %s2019
    %2021 = vst [vmem:[%s2020] sm:%s2018] %v2016
    %s2022 = scalar_lea.vmem [#allocation0], 1240
    %v2023 = vld [vmem:[%s2022] sm:%s784]
    %v2024 = vpack.c.bf16 0.0, %v2023
    %s2025 = sshll.u32 1, %s785
    %s2026 = ssub.s32 %s2025, 1
    %s2027 = smul.addr 1, 155
    %s2028 = scalar_lea.vmem %s1, %s2027
    %2029 = vst [vmem:[%s2028] sm:%s2026] %v2024
    %s2030 = scalar_lea.vmem [#allocation0], 1248
    %v2031 = vld [vmem:[%s2030] sm:%s784]
    %v2032 = vpack.c.bf16 0.0, %v2031
    %s2033 = sshll.u32 1, %s785
    %s2034 = ssub.s32 %s2033, 1
    %s2035 = smul.addr 1, 156
    %s2036 = scalar_lea.vmem %s1, %s2035
    %2037 = vst [vmem:[%s2036] sm:%s2034] %v2032
    %s2038 = scalar_lea.vmem [#allocation0], 1256
    %v2039 = vld [vmem:[%s2038] sm:%s784]
    %v2040 = vpack.c.bf16 0.0, %v2039
    %s2041 = sshll.u32 1, %s785
    %s2042 = ssub.s32 %s2041, 1
    %s2043 = smul.addr 1, 157
    %s2044 = scalar_lea.vmem %s1, %s2043
    %2045 = vst [vmem:[%s2044] sm:%s2042] %v2040
    %s2046 = scalar_lea.vmem [#allocation0], 1264
    %v2047 = vld [vmem:[%s2046] sm:%s784]
    %v2048 = vpack.c.bf16 0.0, %v2047
    %s2049 = sshll.u32 1, %s785
    %s2050 = ssub.s32 %s2049, 1
    %s2051 = smul.addr 1, 158
    %s2052 = scalar_lea.vmem %s1, %s2051
    %2053 = vst [vmem:[%s2052] sm:%s2050] %v2048
    %s2054 = scalar_lea.vmem [#allocation0], 1272
    %v2055 = vld [vmem:[%s2054] sm:%s784]
    %v2056 = vpack.c.bf16 0.0, %v2055
    %s2057 = sshll.u32 1, %s785
    %s2058 = ssub.s32 %s2057, 1
    %s2059 = smul.addr 1, 159
    %s2060 = scalar_lea.vmem %s1, %s2059
    %2061 = vst [vmem:[%s2060] sm:%s2058] %v2056
    %s2062 = scalar_lea.vmem [#allocation0], 1280
    %v2063 = vld [vmem:[%s2062] sm:%s784]
    %v2064 = vpack.c.bf16 0.0, %v2063
    %s2065 = sshll.u32 1, %s785
    %s2066 = ssub.s32 %s2065, 1
    %s2067 = smul.addr 1, 160
    %s2068 = scalar_lea.vmem %s1, %s2067
    %2069 = vst [vmem:[%s2068] sm:%s2066] %v2064
    %s2070 = scalar_lea.vmem [#allocation0], 1288
    %v2071 = vld [vmem:[%s2070] sm:%s784]
    %v2072 = vpack.c.bf16 0.0, %v2071
    %s2073 = sshll.u32 1, %s785
    %s2074 = ssub.s32 %s2073, 1
    %s2075 = smul.addr 1, 161
    %s2076 = scalar_lea.vmem %s1, %s2075
    %2077 = vst [vmem:[%s2076] sm:%s2074] %v2072
    %s2078 = scalar_lea.vmem [#allocation0], 1296
    %v2079 = vld [vmem:[%s2078] sm:%s784]
    %v2080 = vpack.c.bf16 0.0, %v2079
    %s2081 = sshll.u32 1, %s785
    %s2082 = ssub.s32 %s2081, 1
    %s2083 = smul.addr 1, 162
    %s2084 = scalar_lea.vmem %s1, %s2083
    %2085 = vst [vmem:[%s2084] sm:%s2082] %v2080
    %s2086 = scalar_lea.vmem [#allocation0], 1304
    %v2087 = vld [vmem:[%s2086] sm:%s784]
    %v2088 = vpack.c.bf16 0.0, %v2087
    %s2089 = sshll.u32 1, %s785
    %s2090 = ssub.s32 %s2089, 1
    %s2091 = smul.addr 1, 163
    %s2092 = scalar_lea.vmem %s1, %s2091
    %2093 = vst [vmem:[%s2092] sm:%s2090] %v2088
    %s2094 = scalar_lea.vmem [#allocation0], 1312
    %v2095 = vld [vmem:[%s2094] sm:%s784]
    %v2096 = vpack.c.bf16 0.0, %v2095
    %s2097 = sshll.u32 1, %s785
    %s2098 = ssub.s32 %s2097, 1
    %s2099 = smul.addr 1, 164
    %s2100 = scalar_lea.vmem %s1, %s2099
    %2101 = vst [vmem:[%s2100] sm:%s2098] %v2096
    %s2102 = scalar_lea.vmem [#allocation0], 1320
    %v2103 = vld [vmem:[%s2102] sm:%s784]
    %v2104 = vpack.c.bf16 0.0, %v2103
    %s2105 = sshll.u32 1, %s785
    %s2106 = ssub.s32 %s2105, 1
    %s2107 = smul.addr 1, 165
    %s2108 = scalar_lea.vmem %s1, %s2107
    %2109 = vst [vmem:[%s2108] sm:%s2106] %v2104
    %s2110 = scalar_lea.vmem [#allocation0], 1328
    %v2111 = vld [vmem:[%s2110] sm:%s784]
    %v2112 = vpack.c.bf16 0.0, %v2111
    %s2113 = sshll.u32 1, %s785
    %s2114 = ssub.s32 %s2113, 1
    %s2115 = smul.addr 1, 166
    %s2116 = scalar_lea.vmem %s1, %s2115
    %2117 = vst [vmem:[%s2116] sm:%s2114] %v2112
    %s2118 = scalar_lea.vmem [#allocation0], 1336
    %v2119 = vld [vmem:[%s2118] sm:%s784]
    %v2120 = vpack.c.bf16 0.0, %v2119
    %s2121 = sshll.u32 1, %s785
    %s2122 = ssub.s32 %s2121, 1
    %s2123 = smul.addr 1, 167
    %s2124 = scalar_lea.vmem %s1, %s2123
    %2125 = vst [vmem:[%s2124] sm:%s2122] %v2120
    %s2126 = scalar_lea.vmem [#allocation0], 1344
    %v2127 = vld [vmem:[%s2126] sm:%s784]
    %v2128 = vpack.c.bf16 0.0, %v2127
    %s2129 = sshll.u32 1, %s785
    %s2130 = ssub.s32 %s2129, 1
    %s2131 = smul.addr 1, 168
    %s2132 = scalar_lea.vmem %s1, %s2131
    %2133 = vst [vmem:[%s2132] sm:%s2130] %v2128
    %s2134 = scalar_lea.vmem [#allocation0], 1352
    %v2135 = vld [vmem:[%s2134] sm:%s784]
    %v2136 = vpack.c.bf16 0.0, %v2135
    %s2137 = sshll.u32 1, %s785
    %s2138 = ssub.s32 %s2137, 1
    %s2139 = smul.addr 1, 169
    %s2140 = scalar_lea.vmem %s1, %s2139
    %2141 = vst [vmem:[%s2140] sm:%s2138] %v2136
    %s2142 = scalar_lea.vmem [#allocation0], 1360
    %v2143 = vld [vmem:[%s2142] sm:%s784]
    %v2144 = vpack.c.bf16 0.0, %v2143
    %s2145 = sshll.u32 1, %s785
    %s2146 = ssub.s32 %s2145, 1
    %s2147 = smul.addr 1, 170
    %s2148 = scalar_lea.vmem %s1, %s2147
    %2149 = vst [vmem:[%s2148] sm:%s2146] %v2144
    %s2150 = scalar_lea.vmem [#allocation0], 1368
    %v2151 = vld [vmem:[%s2150] sm:%s784]
    %v2152 = vpack.c.bf16 0.0, %v2151
    %s2153 = sshll.u32 1, %s785
    %s2154 = ssub.s32 %s2153, 1
    %s2155 = smul.addr 1, 171
    %s2156 = scalar_lea.vmem %s1, %s2155
    %2157 = vst [vmem:[%s2156] sm:%s2154] %v2152
    %s2158 = scalar_lea.vmem [#allocation0], 1376
    %v2159 = vld [vmem:[%s2158] sm:%s784]
    %v2160 = vpack.c.bf16 0.0, %v2159
    %s2161 = sshll.u32 1, %s785
    %s2162 = ssub.s32 %s2161, 1
    %s2163 = smul.addr 1, 172
    %s2164 = scalar_lea.vmem %s1, %s2163
    %2165 = vst [vmem:[%s2164] sm:%s2162] %v2160
    %s2166 = scalar_lea.vmem [#allocation0], 1384
    %v2167 = vld [vmem:[%s2166] sm:%s784]
    %v2168 = vpack.c.bf16 0.0, %v2167
    %s2169 = sshll.u32 1, %s785
    %s2170 = ssub.s32 %s2169, 1
    %s2171 = smul.addr 1, 173
    %s2172 = scalar_lea.vmem %s1, %s2171
    %2173 = vst [vmem:[%s2172] sm:%s2170] %v2168
    %s2174 = scalar_lea.vmem [#allocation0], 1392
    %v2175 = vld [vmem:[%s2174] sm:%s784]
    %v2176 = vpack.c.bf16 0.0, %v2175
    %s2177 = sshll.u32 1, %s785
    %s2178 = ssub.s32 %s2177, 1
    %s2179 = smul.addr 1, 174
    %s2180 = scalar_lea.vmem %s1, %s2179
    %2181 = vst [vmem:[%s2180] sm:%s2178] %v2176
    %s2182 = scalar_lea.vmem [#allocation0], 1400
    %v2183 = vld [vmem:[%s2182] sm:%s784]
    %v2184 = vpack.c.bf16 0.0, %v2183
    %s2185 = sshll.u32 1, %s785
    %s2186 = ssub.s32 %s2185, 1
    %s2187 = smul.addr 1, 175
    %s2188 = scalar_lea.vmem %s1, %s2187
    %2189 = vst [vmem:[%s2188] sm:%s2186] %v2184
    %s2190 = scalar_lea.vmem [#allocation0], 1408
    %v2191 = vld [vmem:[%s2190] sm:%s784]
    %v2192 = vpack.c.bf16 0.0, %v2191
    %s2193 = sshll.u32 1, %s785
    %s2194 = ssub.s32 %s2193, 1
    %s2195 = smul.addr 1, 176
    %s2196 = scalar_lea.vmem %s1, %s2195
    %2197 = vst [vmem:[%s2196] sm:%s2194] %v2192
    %s2198 = scalar_lea.vmem [#allocation0], 1416
    %v2199 = vld [vmem:[%s2198] sm:%s784]
    %v2200 = vpack.c.bf16 0.0, %v2199
    %s2201 = sshll.u32 1, %s785
    %s2202 = ssub.s32 %s2201, 1
    %s2203 = smul.addr 1, 177
    %s2204 = scalar_lea.vmem %s1, %s2203
    %2205 = vst [vmem:[%s2204] sm:%s2202] %v2200
    %s2206 = scalar_lea.vmem [#allocation0], 1424
    %v2207 = vld [vmem:[%s2206] sm:%s784]
    %v2208 = vpack.c.bf16 0.0, %v2207
    %s2209 = sshll.u32 1, %s785
    %s2210 = ssub.s32 %s2209, 1
    %s2211 = smul.addr 1, 178
    %s2212 = scalar_lea.vmem %s1, %s2211
    %2213 = vst [vmem:[%s2212] sm:%s2210] %v2208
    %s2214 = scalar_lea.vmem [#allocation0], 1432
    %v2215 = vld [vmem:[%s2214] sm:%s784]
    %v2216 = vpack.c.bf16 0.0, %v2215
    %s2217 = sshll.u32 1, %s785
    %s2218 = ssub.s32 %s2217, 1
    %s2219 = smul.addr 1, 179
    %s2220 = scalar_lea.vmem %s1, %s2219
    %2221 = vst [vmem:[%s2220] sm:%s2218] %v2216
    %s2222 = scalar_lea.vmem [#allocation0], 1440
    %v2223 = vld [vmem:[%s2222] sm:%s784]
    %v2224 = vpack.c.bf16 0.0, %v2223
    %s2225 = sshll.u32 1, %s785
    %s2226 = ssub.s32 %s2225, 1
    %s2227 = smul.addr 1, 180
    %s2228 = scalar_lea.vmem %s1, %s2227
    %2229 = vst [vmem:[%s2228] sm:%s2226] %v2224
    %s2230 = scalar_lea.vmem [#allocation0], 1448
    %v2231 = vld [vmem:[%s2230] sm:%s784]
    %v2232 = vpack.c.bf16 0.0, %v2231
    %s2233 = sshll.u32 1, %s785
    %s2234 = ssub.s32 %s2233, 1
    %s2235 = smul.addr 1, 181
    %s2236 = scalar_lea.vmem %s1, %s2235
    %2237 = vst [vmem:[%s2236] sm:%s2234] %v2232
    %s2238 = scalar_lea.vmem [#allocation0], 1456
    %v2239 = vld [vmem:[%s2238] sm:%s784]
    %v2240 = vpack.c.bf16 0.0, %v2239
    %s2241 = sshll.u32 1, %s785
    %s2242 = ssub.s32 %s2241, 1
    %s2243 = smul.addr 1, 182
    %s2244 = scalar_lea.vmem %s1, %s2243
    %2245 = vst [vmem:[%s2244] sm:%s2242] %v2240
    %s2246 = scalar_lea.vmem [#allocation0], 1464
    %v2247 = vld [vmem:[%s2246] sm:%s784]
    %v2248 = vpack.c.bf16 0.0, %v2247
    %s2249 = sshll.u32 1, %s785
    %s2250 = ssub.s32 %s2249, 1
    %s2251 = smul.addr 1, 183
    %s2252 = scalar_lea.vmem %s1, %s2251
    %2253 = vst [vmem:[%s2252] sm:%s2250] %v2248
    %s2254 = scalar_lea.vmem [#allocation0], 1472
    %v2255 = vld [vmem:[%s2254] sm:%s784]
    %v2256 = vpack.c.bf16 0.0, %v2255
    %s2257 = sshll.u32 1, %s785
    %s2258 = ssub.s32 %s2257, 1
    %s2259 = smul.addr 1, 184
    %s2260 = scalar_lea.vmem %s1, %s2259
    %2261 = vst [vmem:[%s2260] sm:%s2258] %v2256
    %s2262 = scalar_lea.vmem [#allocation0], 1480
    %v2263 = vld [vmem:[%s2262] sm:%s784]
    %v2264 = vpack.c.bf16 0.0, %v2263
    %s2265 = sshll.u32 1, %s785
    %s2266 = ssub.s32 %s2265, 1
    %s2267 = smul.addr 1, 185
    %s2268 = scalar_lea.vmem %s1, %s2267
    %2269 = vst [vmem:[%s2268] sm:%s2266] %v2264
    %s2270 = scalar_lea.vmem [#allocation0], 1488
    %v2271 = vld [vmem:[%s2270] sm:%s784]
    %v2272 = vpack.c.bf16 0.0, %v2271
    %s2273 = sshll.u32 1, %s785
    %s2274 = ssub.s32 %s2273, 1
    %s2275 = smul.addr 1, 186
    %s2276 = scalar_lea.vmem %s1, %s2275
    %2277 = vst [vmem:[%s2276] sm:%s2274] %v2272
    %s2278 = scalar_lea.vmem [#allocation0], 1496
    %v2279 = vld [vmem:[%s2278] sm:%s784]
    %v2280 = vpack.c.bf16 0.0, %v2279
    %s2281 = sshll.u32 1, %s785
    %s2282 = ssub.s32 %s2281, 1
    %s2283 = smul.addr 1, 187
    %s2284 = scalar_lea.vmem %s1, %s2283
    %2285 = vst [vmem:[%s2284] sm:%s2282] %v2280
    %s2286 = scalar_lea.vmem [#allocation0], 1504
    %v2287 = vld [vmem:[%s2286] sm:%s784]
    %v2288 = vpack.c.bf16 0.0, %v2287
    %s2289 = sshll.u32 1, %s785
    %s2290 = ssub.s32 %s2289, 1
    %s2291 = smul.addr 1, 188
    %s2292 = scalar_lea.vmem %s1, %s2291
    %2293 = vst [vmem:[%s2292] sm:%s2290] %v2288
    %s2294 = scalar_lea.vmem [#allocation0], 1512
    %v2295 = vld [vmem:[%s2294] sm:%s784]
    %v2296 = vpack.c.bf16 0.0, %v2295
    %s2297 = sshll.u32 1, %s785
    %s2298 = ssub.s32 %s2297, 1
    %s2299 = smul.addr 1, 189
    %s2300 = scalar_lea.vmem %s1, %s2299
    %2301 = vst [vmem:[%s2300] sm:%s2298] %v2296
    %s2302 = scalar_lea.vmem [#allocation0], 1520
    %v2303 = vld [vmem:[%s2302] sm:%s784]
    %v2304 = vpack.c.bf16 0.0, %v2303
    %s2305 = sshll.u32 1, %s785
    %s2306 = ssub.s32 %s2305, 1
    %s2307 = smul.addr 1, 190
    %s2308 = scalar_lea.vmem %s1, %s2307
    %2309 = vst [vmem:[%s2308] sm:%s2306] %v2304
    %s2310 = scalar_lea.vmem [#allocation0], 1528
    %v2311 = vld [vmem:[%s2310] sm:%s784]
    %v2312 = vpack.c.bf16 0.0, %v2311
    %s2313 = sshll.u32 1, %s785
    %s2314 = ssub.s32 %s2313, 1
    %s2315 = smul.addr 1, 191
    %s2316 = scalar_lea.vmem %s1, %s2315
    %2317 = vst [vmem:[%s2316] sm:%s2314] %v2312
    %s2318 = scalar_lea.vmem [#allocation0], 1536
    %v2319 = vld [vmem:[%s2318] sm:%s784]
    %v2320 = vpack.c.bf16 0.0, %v2319
    %s2321 = sshll.u32 1, %s785
    %s2322 = ssub.s32 %s2321, 1
    %s2323 = smul.addr 1, 192
    %s2324 = scalar_lea.vmem %s1, %s2323
    %2325 = vst [vmem:[%s2324] sm:%s2322] %v2320
    %s2326 = scalar_lea.vmem [#allocation0], 1544
    %v2327 = vld [vmem:[%s2326] sm:%s784]
    %v2328 = vpack.c.bf16 0.0, %v2327
    %s2329 = sshll.u32 1, %s785
    %s2330 = ssub.s32 %s2329, 1
    %s2331 = smul.addr 1, 193
    %s2332 = scalar_lea.vmem %s1, %s2331
    %2333 = vst [vmem:[%s2332] sm:%s2330] %v2328
    %s2334 = scalar_lea.vmem [#allocation0], 1552
    %v2335 = vld [vmem:[%s2334] sm:%s784]
    %v2336 = vpack.c.bf16 0.0, %v2335
    %s2337 = sshll.u32 1, %s785
    %s2338 = ssub.s32 %s2337, 1
    %s2339 = smul.addr 1, 194
    %s2340 = scalar_lea.vmem %s1, %s2339
    %2341 = vst [vmem:[%s2340] sm:%s2338] %v2336
    %s2342 = scalar_lea.vmem [#allocation0], 1560
    %v2343 = vld [vmem:[%s2342] sm:%s784]
    %v2344 = vpack.c.bf16 0.0, %v2343
    %s2345 = sshll.u32 1, %s785
    %s2346 = ssub.s32 %s2345, 1
    %s2347 = smul.addr 1, 195
    %s2348 = scalar_lea.vmem %s1, %s2347
    %2349 = vst [vmem:[%s2348] sm:%s2346] %v2344
    %s2350 = scalar_lea.vmem [#allocation0], 1568
    %v2351 = vld [vmem:[%s2350] sm:%s784]
    %v2352 = vpack.c.bf16 0.0, %v2351
    %s2353 = sshll.u32 1, %s785
    %s2354 = ssub.s32 %s2353, 1
    %s2355 = smul.addr 1, 196
    %s2356 = scalar_lea.vmem %s1, %s2355
    %2357 = vst [vmem:[%s2356] sm:%s2354] %v2352
    %s2358 = scalar_lea.vmem [#allocation0], 1576
    %v2359 = vld [vmem:[%s2358] sm:%s784]
    %v2360 = vpack.c.bf16 0.0, %v2359
    %s2361 = sshll.u32 1, %s785
    %s2362 = ssub.s32 %s2361, 1
    %s2363 = smul.addr 1, 197
    %s2364 = scalar_lea.vmem %s1, %s2363
    %2365 = vst [vmem:[%s2364] sm:%s2362] %v2360
    %s2366 = scalar_lea.vmem [#allocation0], 1584
    %v2367 = vld [vmem:[%s2366] sm:%s784]
    %v2368 = vpack.c.bf16 0.0, %v2367
    %s2369 = sshll.u32 1, %s785
    %s2370 = ssub.s32 %s2369, 1
    %s2371 = smul.addr 1, 198
    %s2372 = scalar_lea.vmem %s1, %s2371
    %2373 = vst [vmem:[%s2372] sm:%s2370] %v2368
    %s2374 = scalar_lea.vmem [#allocation0], 1592
    %v2375 = vld [vmem:[%s2374] sm:%s784]
    %v2376 = vpack.c.bf16 0.0, %v2375
    %s2377 = sshll.u32 1, %s785
    %s2378 = ssub.s32 %s2377, 1
    %s2379 = smul.addr 1, 199
    %s2380 = scalar_lea.vmem %s1, %s2379
    %2381 = vst [vmem:[%s2380] sm:%s2378] %v2376
    %s2382 = scalar_lea.vmem [#allocation0], 1600
    %v2383 = vld [vmem:[%s2382] sm:%s784]
    %v2384 = vpack.c.bf16 0.0, %v2383
    %s2385 = sshll.u32 1, %s785
    %s2386 = ssub.s32 %s2385, 1
    %s2387 = smul.addr 1, 200
    %s2388 = scalar_lea.vmem %s1, %s2387
    %2389 = vst [vmem:[%s2388] sm:%s2386] %v2384
    %s2390 = scalar_lea.vmem [#allocation0], 1608
    %v2391 = vld [vmem:[%s2390] sm:%s784]
    %v2392 = vpack.c.bf16 0.0, %v2391
    %s2393 = sshll.u32 1, %s785
    %s2394 = ssub.s32 %s2393, 1
    %s2395 = smul.addr 1, 201
    %s2396 = scalar_lea.vmem %s1, %s2395
    %2397 = vst [vmem:[%s2396] sm:%s2394] %v2392
    %s2398 = scalar_lea.vmem [#allocation0], 1616
    %v2399 = vld [vmem:[%s2398] sm:%s784]
    %v2400 = vpack.c.bf16 0.0, %v2399
    %s2401 = sshll.u32 1, %s785
    %s2402 = ssub.s32 %s2401, 1
    %s2403 = smul.addr 1, 202
    %s2404 = scalar_lea.vmem %s1, %s2403
    %2405 = vst [vmem:[%s2404] sm:%s2402] %v2400
    %s2406 = scalar_lea.vmem [#allocation0], 1624
    %v2407 = vld [vmem:[%s2406] sm:%s784]
    %v2408 = vpack.c.bf16 0.0, %v2407
    %s2409 = sshll.u32 1, %s785
    %s2410 = ssub.s32 %s2409, 1
    %s2411 = smul.addr 1, 203
    %s2412 = scalar_lea.vmem %s1, %s2411
    %2413 = vst [vmem:[%s2412] sm:%s2410] %v2408
    %s2414 = scalar_lea.vmem [#allocation0], 1632
    %v2415 = vld [vmem:[%s2414] sm:%s784]
    %v2416 = vpack.c.bf16 0.0, %v2415
    %s2417 = sshll.u32 1, %s785
    %s2418 = ssub.s32 %s2417, 1
    %s2419 = smul.addr 1, 204
    %s2420 = scalar_lea.vmem %s1, %s2419
    %2421 = vst [vmem:[%s2420] sm:%s2418] %v2416
    %s2422 = scalar_lea.vmem [#allocation0], 1640
    %v2423 = vld [vmem:[%s2422] sm:%s784]
    %v2424 = vpack.c.bf16 0.0, %v2423
    %s2425 = sshll.u32 1, %s785
    %s2426 = ssub.s32 %s2425, 1
    %s2427 = smul.addr 1, 205
    %s2428 = scalar_lea.vmem %s1, %s2427
    %2429 = vst [vmem:[%s2428] sm:%s2426] %v2424
    %s2430 = scalar_lea.vmem [#allocation0], 1648
    %v2431 = vld [vmem:[%s2430] sm:%s784]
    %v2432 = vpack.c.bf16 0.0, %v2431
    %s2433 = sshll.u32 1, %s785
    %s2434 = ssub.s32 %s2433, 1
    %s2435 = smul.addr 1, 206
    %s2436 = scalar_lea.vmem %s1, %s2435
    %2437 = vst [vmem:[%s2436] sm:%s2434] %v2432
    %s2438 = scalar_lea.vmem [#allocation0], 1656
    %v2439 = vld [vmem:[%s2438] sm:%s784]
    %v2440 = vpack.c.bf16 0.0, %v2439
    %s2441 = sshll.u32 1, %s785
    %s2442 = ssub.s32 %s2441, 1
    %s2443 = smul.addr 1, 207
    %s2444 = scalar_lea.vmem %s1, %s2443
    %2445 = vst [vmem:[%s2444] sm:%s2442] %v2440
    %s2446 = scalar_lea.vmem [#allocation0], 1664
    %v2447 = vld [vmem:[%s2446] sm:%s784]
    %v2448 = vpack.c.bf16 0.0, %v2447
    %s2449 = sshll.u32 1, %s785
    %s2450 = ssub.s32 %s2449, 1
    %s2451 = smul.addr 1, 208
    %s2452 = scalar_lea.vmem %s1, %s2451
    %2453 = vst [vmem:[%s2452] sm:%s2450] %v2448
    %s2454 = scalar_lea.vmem [#allocation0], 1672
    %v2455 = vld [vmem:[%s2454] sm:%s784]
    %v2456 = vpack.c.bf16 0.0, %v2455
    %s2457 = sshll.u32 1, %s785
    %s2458 = ssub.s32 %s2457, 1
    %s2459 = smul.addr 1, 209
    %s2460 = scalar_lea.vmem %s1, %s2459
    %2461 = vst [vmem:[%s2460] sm:%s2458] %v2456
    %s2462 = scalar_lea.vmem [#allocation0], 1680
    %v2463 = vld [vmem:[%s2462] sm:%s784]
    %v2464 = vpack.c.bf16 0.0, %v2463
    %s2465 = sshll.u32 1, %s785
    %s2466 = ssub.s32 %s2465, 1
    %s2467 = smul.addr 1, 210
    %s2468 = scalar_lea.vmem %s1, %s2467
    %2469 = vst [vmem:[%s2468] sm:%s2466] %v2464
    %s2470 = scalar_lea.vmem [#allocation0], 1688
    %v2471 = vld [vmem:[%s2470] sm:%s784]
    %v2472 = vpack.c.bf16 0.0, %v2471
    %s2473 = sshll.u32 1, %s785
    %s2474 = ssub.s32 %s2473, 1
    %s2475 = smul.addr 1, 211
    %s2476 = scalar_lea.vmem %s1, %s2475
    %2477 = vst [vmem:[%s2476] sm:%s2474] %v2472
    %s2478 = scalar_lea.vmem [#allocation0], 1696
    %v2479 = vld [vmem:[%s2478] sm:%s784]
    %v2480 = vpack.c.bf16 0.0, %v2479
    %s2481 = sshll.u32 1, %s785
    %s2482 = ssub.s32 %s2481, 1
    %s2483 = smul.addr 1, 212
    %s2484 = scalar_lea.vmem %s1, %s2483
    %2485 = vst [vmem:[%s2484] sm:%s2482] %v2480
    %s2486 = scalar_lea.vmem [#allocation0], 1704
    %v2487 = vld [vmem:[%s2486] sm:%s784]
    %v2488 = vpack.c.bf16 0.0, %v2487
    %s2489 = sshll.u32 1, %s785
    %s2490 = ssub.s32 %s2489, 1
    %s2491 = smul.addr 1, 213
    %s2492 = scalar_lea.vmem %s1, %s2491
    %2493 = vst [vmem:[%s2492] sm:%s2490] %v2488
    %s2494 = scalar_lea.vmem [#allocation0], 1712
    %v2495 = vld [vmem:[%s2494] sm:%s784]
    %v2496 = vpack.c.bf16 0.0, %v2495
    %s2497 = sshll.u32 1, %s785
    %s2498 = ssub.s32 %s2497, 1
    %s2499 = smul.addr 1, 214
    %s2500 = scalar_lea.vmem %s1, %s2499
    %2501 = vst [vmem:[%s2500] sm:%s2498] %v2496
    %s2502 = scalar_lea.vmem [#allocation0], 1720
    %v2503 = vld [vmem:[%s2502] sm:%s784]
    %v2504 = vpack.c.bf16 0.0, %v2503
    %s2505 = sshll.u32 1, %s785
    %s2506 = ssub.s32 %s2505, 1
    %s2507 = smul.addr 1, 215
    %s2508 = scalar_lea.vmem %s1, %s2507
    %2509 = vst [vmem:[%s2508] sm:%s2506] %v2504
    %s2510 = scalar_lea.vmem [#allocation0], 1728
    %v2511 = vld [vmem:[%s2510] sm:%s784]
    %v2512 = vpack.c.bf16 0.0, %v2511
    %s2513 = sshll.u32 1, %s785
    %s2514 = ssub.s32 %s2513, 1
    %s2515 = smul.addr 1, 216
    %s2516 = scalar_lea.vmem %s1, %s2515
    %2517 = vst [vmem:[%s2516] sm:%s2514] %v2512
    %s2518 = scalar_lea.vmem [#allocation0], 1736
    %v2519 = vld [vmem:[%s2518] sm:%s784]
    %v2520 = vpack.c.bf16 0.0, %v2519
    %s2521 = sshll.u32 1, %s785
    %s2522 = ssub.s32 %s2521, 1
    %s2523 = smul.addr 1, 217
    %s2524 = scalar_lea.vmem %s1, %s2523
    %2525 = vst [vmem:[%s2524] sm:%s2522] %v2520
    %s2526 = scalar_lea.vmem [#allocation0], 1744
    %v2527 = vld [vmem:[%s2526] sm:%s784]
    %v2528 = vpack.c.bf16 0.0, %v2527
    %s2529 = sshll.u32 1, %s785
    %s2530 = ssub.s32 %s2529, 1
    %s2531 = smul.addr 1, 218
    %s2532 = scalar_lea.vmem %s1, %s2531
    %2533 = vst [vmem:[%s2532] sm:%s2530] %v2528
    %s2534 = scalar_lea.vmem [#allocation0], 1752
    %v2535 = vld [vmem:[%s2534] sm:%s784]
    %v2536 = vpack.c.bf16 0.0, %v2535
    %s2537 = sshll.u32 1, %s785
    %s2538 = ssub.s32 %s2537, 1
    %s2539 = smul.addr 1, 219
    %s2540 = scalar_lea.vmem %s1, %s2539
    %2541 = vst [vmem:[%s2540] sm:%s2538] %v2536
    %s2542 = scalar_lea.vmem [#allocation0], 1760
    %v2543 = vld [vmem:[%s2542] sm:%s784]
    %v2544 = vpack.c.bf16 0.0, %v2543
    %s2545 = sshll.u32 1, %s785
    %s2546 = ssub.s32 %s2545, 1
    %s2547 = smul.addr 1, 220
    %s2548 = scalar_lea.vmem %s1, %s2547
    %2549 = vst [vmem:[%s2548] sm:%s2546] %v2544
    %s2550 = scalar_lea.vmem [#allocation0], 1768
    %v2551 = vld [vmem:[%s2550] sm:%s784]
    %v2552 = vpack.c.bf16 0.0, %v2551
    %s2553 = sshll.u32 1, %s785
    %s2554 = ssub.s32 %s2553, 1
    %s2555 = smul.addr 1, 221
    %s2556 = scalar_lea.vmem %s1, %s2555
    %2557 = vst [vmem:[%s2556] sm:%s2554] %v2552
    %s2558 = scalar_lea.vmem [#allocation0], 1776
    %v2559 = vld [vmem:[%s2558] sm:%s784]
    %v2560 = vpack.c.bf16 0.0, %v2559
    %s2561 = sshll.u32 1, %s785
    %s2562 = ssub.s32 %s2561, 1
    %s2563 = smul.addr 1, 222
    %s2564 = scalar_lea.vmem %s1, %s2563
    %2565 = vst [vmem:[%s2564] sm:%s2562] %v2560
    %s2566 = scalar_lea.vmem [#allocation0], 1784
    %v2567 = vld [vmem:[%s2566] sm:%s784]
    %v2568 = vpack.c.bf16 0.0, %v2567
    %s2569 = sshll.u32 1, %s785
    %s2570 = ssub.s32 %s2569, 1
    %s2571 = smul.addr 1, 223
    %s2572 = scalar_lea.vmem %s1, %s2571
    %2573 = vst [vmem:[%s2572] sm:%s2570] %v2568
    %s2574 = scalar_lea.vmem [#allocation0], 1792
    %v2575 = vld [vmem:[%s2574] sm:%s784]
    %v2576 = vpack.c.bf16 0.0, %v2575
    %s2577 = sshll.u32 1, %s785
    %s2578 = ssub.s32 %s2577, 1
    %s2579 = smul.addr 1, 224
    %s2580 = scalar_lea.vmem %s1, %s2579
    %2581 = vst [vmem:[%s2580] sm:%s2578] %v2576
    %s2582 = scalar_lea.vmem [#allocation0], 1800
    %v2583 = vld [vmem:[%s2582] sm:%s784]
    %v2584 = vpack.c.bf16 0.0, %v2583
    %s2585 = sshll.u32 1, %s785
    %s2586 = ssub.s32 %s2585, 1
    %s2587 = smul.addr 1, 225
    %s2588 = scalar_lea.vmem %s1, %s2587
    %2589 = vst [vmem:[%s2588] sm:%s2586] %v2584
    %s2590 = scalar_lea.vmem [#allocation0], 1808
    %v2591 = vld [vmem:[%s2590] sm:%s784]
    %v2592 = vpack.c.bf16 0.0, %v2591
    %s2593 = sshll.u32 1, %s785
    %s2594 = ssub.s32 %s2593, 1
    %s2595 = smul.addr 1, 226
    %s2596 = scalar_lea.vmem %s1, %s2595
    %2597 = vst [vmem:[%s2596] sm:%s2594] %v2592
    %s2598 = scalar_lea.vmem [#allocation0], 1816
    %v2599 = vld [vmem:[%s2598] sm:%s784]
    %v2600 = vpack.c.bf16 0.0, %v2599
    %s2601 = sshll.u32 1, %s785
    %s2602 = ssub.s32 %s2601, 1
    %s2603 = smul.addr 1, 227
    %s2604 = scalar_lea.vmem %s1, %s2603
    %2605 = vst [vmem:[%s2604] sm:%s2602] %v2600
    %s2606 = scalar_lea.vmem [#allocation0], 1824
    %v2607 = vld [vmem:[%s2606] sm:%s784]
    %v2608 = vpack.c.bf16 0.0, %v2607
    %s2609 = sshll.u32 1, %s785
    %s2610 = ssub.s32 %s2609, 1
    %s2611 = smul.addr 1, 228
    %s2612 = scalar_lea.vmem %s1, %s2611
    %2613 = vst [vmem:[%s2612] sm:%s2610] %v2608
    %s2614 = scalar_lea.vmem [#allocation0], 1832
    %v2615 = vld [vmem:[%s2614] sm:%s784]
    %v2616 = vpack.c.bf16 0.0, %v2615
    %s2617 = sshll.u32 1, %s785
    %s2618 = ssub.s32 %s2617, 1
    %s2619 = smul.addr 1, 229
    %s2620 = scalar_lea.vmem %s1, %s2619
    %2621 = vst [vmem:[%s2620] sm:%s2618] %v2616
    %s2622 = scalar_lea.vmem [#allocation0], 1840
    %v2623 = vld [vmem:[%s2622] sm:%s784]
    %v2624 = vpack.c.bf16 0.0, %v2623
    %s2625 = sshll.u32 1, %s785
    %s2626 = ssub.s32 %s2625, 1
    %s2627 = smul.addr 1, 230
    %s2628 = scalar_lea.vmem %s1, %s2627
    %2629 = vst [vmem:[%s2628] sm:%s2626] %v2624
    %s2630 = scalar_lea.vmem [#allocation0], 1848
    %v2631 = vld [vmem:[%s2630] sm:%s784]
    %v2632 = vpack.c.bf16 0.0, %v2631
    %s2633 = sshll.u32 1, %s785
    %s2634 = ssub.s32 %s2633, 1
    %s2635 = smul.addr 1, 231
    %s2636 = scalar_lea.vmem %s1, %s2635
    %2637 = vst [vmem:[%s2636] sm:%s2634] %v2632
    %s2638 = scalar_lea.vmem [#allocation0], 1856
    %v2639 = vld [vmem:[%s2638] sm:%s784]
    %v2640 = vpack.c.bf16 0.0, %v2639
    %s2641 = sshll.u32 1, %s785
    %s2642 = ssub.s32 %s2641, 1
    %s2643 = smul.addr 1, 232
    %s2644 = scalar_lea.vmem %s1, %s2643
    %2645 = vst [vmem:[%s2644] sm:%s2642] %v2640
    %s2646 = scalar_lea.vmem [#allocation0], 1864
    %v2647 = vld [vmem:[%s2646] sm:%s784]
    %v2648 = vpack.c.bf16 0.0, %v2647
    %s2649 = sshll.u32 1, %s785
    %s2650 = ssub.s32 %s2649, 1
    %s2651 = smul.addr 1, 233
    %s2652 = scalar_lea.vmem %s1, %s2651
    %2653 = vst [vmem:[%s2652] sm:%s2650] %v2648
    %s2654 = scalar_lea.vmem [#allocation0], 1872
    %v2655 = vld [vmem:[%s2654] sm:%s784]
    %v2656 = vpack.c.bf16 0.0, %v2655
    %s2657 = sshll.u32 1, %s785
    %s2658 = ssub.s32 %s2657, 1
    %s2659 = smul.addr 1, 234
    %s2660 = scalar_lea.vmem %s1, %s2659
    %2661 = vst [vmem:[%s2660] sm:%s2658] %v2656
    %s2662 = scalar_lea.vmem [#allocation0], 1880
    %v2663 = vld [vmem:[%s2662] sm:%s784]
    %v2664 = vpack.c.bf16 0.0, %v2663
    %s2665 = sshll.u32 1, %s785
    %s2666 = ssub.s32 %s2665, 1
    %s2667 = smul.addr 1, 235
    %s2668 = scalar_lea.vmem %s1, %s2667
    %2669 = vst [vmem:[%s2668] sm:%s2666] %v2664
    %s2670 = scalar_lea.vmem [#allocation0], 1888
    %v2671 = vld [vmem:[%s2670] sm:%s784]
    %v2672 = vpack.c.bf16 0.0, %v2671
    %s2673 = sshll.u32 1, %s785
    %s2674 = ssub.s32 %s2673, 1
    %s2675 = smul.addr 1, 236
    %s2676 = scalar_lea.vmem %s1, %s2675
    %2677 = vst [vmem:[%s2676] sm:%s2674] %v2672
    %s2678 = scalar_lea.vmem [#allocation0], 1896
    %v2679 = vld [vmem:[%s2678] sm:%s784]
    %v2680 = vpack.c.bf16 0.0, %v2679
    %s2681 = sshll.u32 1, %s785
    %s2682 = ssub.s32 %s2681, 1
    %s2683 = smul.addr 1, 237
    %s2684 = scalar_lea.vmem %s1, %s2683
    %2685 = vst [vmem:[%s2684] sm:%s2682] %v2680
    %s2686 = scalar_lea.vmem [#allocation0], 1904
    %v2687 = vld [vmem:[%s2686] sm:%s784]
    %v2688 = vpack.c.bf16 0.0, %v2687
    %s2689 = sshll.u32 1, %s785
    %s2690 = ssub.s32 %s2689, 1
    %s2691 = smul.addr 1, 238
    %s2692 = scalar_lea.vmem %s1, %s2691
    %2693 = vst [vmem:[%s2692] sm:%s2690] %v2688
    %s2694 = scalar_lea.vmem [#allocation0], 1912
    %v2695 = vld [vmem:[%s2694] sm:%s784]
    %v2696 = vpack.c.bf16 0.0, %v2695
    %s2697 = sshll.u32 1, %s785
    %s2698 = ssub.s32 %s2697, 1
    %s2699 = smul.addr 1, 239
    %s2700 = scalar_lea.vmem %s1, %s2699
    %2701 = vst [vmem:[%s2700] sm:%s2698] %v2696
    %s2702 = scalar_lea.vmem [#allocation0], 1920
    %v2703 = vld [vmem:[%s2702] sm:%s784]
    %v2704 = vpack.c.bf16 0.0, %v2703
    %s2705 = sshll.u32 1, %s785
    %s2706 = ssub.s32 %s2705, 1
    %s2707 = smul.addr 1, 240
    %s2708 = scalar_lea.vmem %s1, %s2707
    %2709 = vst [vmem:[%s2708] sm:%s2706] %v2704
    %s2710 = scalar_lea.vmem [#allocation0], 1928
    %v2711 = vld [vmem:[%s2710] sm:%s784]
    %v2712 = vpack.c.bf16 0.0, %v2711
    %s2713 = sshll.u32 1, %s785
    %s2714 = ssub.s32 %s2713, 1
    %s2715 = smul.addr 1, 241
    %s2716 = scalar_lea.vmem %s1, %s2715
    %2717 = vst [vmem:[%s2716] sm:%s2714] %v2712
    %s2718 = scalar_lea.vmem [#allocation0], 1936
    %v2719 = vld [vmem:[%s2718] sm:%s784]
    %v2720 = vpack.c.bf16 0.0, %v2719
    %s2721 = sshll.u32 1, %s785
    %s2722 = ssub.s32 %s2721, 1
    %s2723 = smul.addr 1, 242
    %s2724 = scalar_lea.vmem %s1, %s2723
    %2725 = vst [vmem:[%s2724] sm:%s2722] %v2720
    %s2726 = scalar_lea.vmem [#allocation0], 1944
    %v2727 = vld [vmem:[%s2726] sm:%s784]
    %v2728 = vpack.c.bf16 0.0, %v2727
    %s2729 = sshll.u32 1, %s785
    %s2730 = ssub.s32 %s2729, 1
    %s2731 = smul.addr 1, 243
    %s2732 = scalar_lea.vmem %s1, %s2731
    %2733 = vst [vmem:[%s2732] sm:%s2730] %v2728
    %s2734 = scalar_lea.vmem [#allocation0], 1952
    %v2735 = vld [vmem:[%s2734] sm:%s784]
    %v2736 = vpack.c.bf16 0.0, %v2735
    %s2737 = sshll.u32 1, %s785
    %s2738 = ssub.s32 %s2737, 1
    %s2739 = smul.addr 1, 244
    %s2740 = scalar_lea.vmem %s1, %s2739
    %2741 = vst [vmem:[%s2740] sm:%s2738] %v2736
    %s2742 = scalar_lea.vmem [#allocation0], 1960
    %v2743 = vld [vmem:[%s2742] sm:%s784]
    %v2744 = vpack.c.bf16 0.0, %v2743
    %s2745 = sshll.u32 1, %s785
    %s2746 = ssub.s32 %s2745, 1
    %s2747 = smul.addr 1, 245
    %s2748 = scalar_lea.vmem %s1, %s2747
    %2749 = vst [vmem:[%s2748] sm:%s2746] %v2744
    %s2750 = scalar_lea.vmem [#allocation0], 1968
    %v2751 = vld [vmem:[%s2750] sm:%s784]
    %v2752 = vpack.c.bf16 0.0, %v2751
    %s2753 = sshll.u32 1, %s785
    %s2754 = ssub.s32 %s2753, 1
    %s2755 = smul.addr 1, 246
    %s2756 = scalar_lea.vmem %s1, %s2755
    %2757 = vst [vmem:[%s2756] sm:%s2754] %v2752
    %s2758 = scalar_lea.vmem [#allocation0], 1976
    %v2759 = vld [vmem:[%s2758] sm:%s784]
    %v2760 = vpack.c.bf16 0.0, %v2759
    %s2761 = sshll.u32 1, %s785
    %s2762 = ssub.s32 %s2761, 1
    %s2763 = smul.addr 1, 247
    %s2764 = scalar_lea.vmem %s1, %s2763
    %2765 = vst [vmem:[%s2764] sm:%s2762] %v2760
    %s2766 = scalar_lea.vmem [#allocation0], 1984
    %v2767 = vld [vmem:[%s2766] sm:%s784]
    %v2768 = vpack.c.bf16 0.0, %v2767
    %s2769 = sshll.u32 1, %s785
    %s2770 = ssub.s32 %s2769, 1
    %s2771 = smul.addr 1, 248
    %s2772 = scalar_lea.vmem %s1, %s2771
    %2773 = vst [vmem:[%s2772] sm:%s2770] %v2768
    %s2774 = scalar_lea.vmem [#allocation0], 1992
    %v2775 = vld [vmem:[%s2774] sm:%s784]
    %v2776 = vpack.c.bf16 0.0, %v2775
    %s2777 = sshll.u32 1, %s785
    %s2778 = ssub.s32 %s2777, 1
    %s2779 = smul.addr 1, 249
    %s2780 = scalar_lea.vmem %s1, %s2779
    %2781 = vst [vmem:[%s2780] sm:%s2778] %v2776
    %s2782 = scalar_lea.vmem [#allocation0], 2000
    %v2783 = vld [vmem:[%s2782] sm:%s784]
    %v2784 = vpack.c.bf16 0.0, %v2783
    %s2785 = sshll.u32 1, %s785
    %s2786 = ssub.s32 %s2785, 1
    %s2787 = smul.addr 1, 250
    %s2788 = scalar_lea.vmem %s1, %s2787
    %2789 = vst [vmem:[%s2788] sm:%s2786] %v2784
    %s2790 = scalar_lea.vmem [#allocation0], 2008
    %v2791 = vld [vmem:[%s2790] sm:%s784]
    %v2792 = vpack.c.bf16 0.0, %v2791
    %s2793 = sshll.u32 1, %s785
    %s2794 = ssub.s32 %s2793, 1
    %s2795 = smul.addr 1, 251
    %s2796 = scalar_lea.vmem %s1, %s2795
    %2797 = vst [vmem:[%s2796] sm:%s2794] %v2792
    %s2798 = scalar_lea.vmem [#allocation0], 2016
    %v2799 = vld [vmem:[%s2798] sm:%s784]
    %v2800 = vpack.c.bf16 0.0, %v2799
    %s2801 = sshll.u32 1, %s785
    %s2802 = ssub.s32 %s2801, 1
    %s2803 = smul.addr 1, 252
    %s2804 = scalar_lea.vmem %s1, %s2803
    %2805 = vst [vmem:[%s2804] sm:%s2802] %v2800
    %s2806 = scalar_lea.vmem [#allocation0], 2024
    %v2807 = vld [vmem:[%s2806] sm:%s784]
    %v2808 = vpack.c.bf16 0.0, %v2807
    %s2809 = sshll.u32 1, %s785
    %s2810 = ssub.s32 %s2809, 1
    %s2811 = smul.addr 1, 253
    %s2812 = scalar_lea.vmem %s1, %s2811
    %2813 = vst [vmem:[%s2812] sm:%s2810] %v2808
    %s2814 = scalar_lea.vmem [#allocation0], 2032
    %v2815 = vld [vmem:[%s2814] sm:%s784]
    %v2816 = vpack.c.bf16 0.0, %v2815
    %s2817 = sshll.u32 1, %s785
    %s2818 = ssub.s32 %s2817, 1
    %s2819 = smul.addr 1, 254
    %s2820 = scalar_lea.vmem %s1, %s2819
    %2821 = vst [vmem:[%s2820] sm:%s2818] %v2816
    %s2822 = scalar_lea.vmem [#allocation0], 2040
    %v2823 = vld [vmem:[%s2822] sm:%s784]
    %v2824 = vpack.c.bf16 0.0, %v2823
    %s2825 = sshll.u32 1, %s785
    %s2826 = ssub.s32 %s2825, 1
    %s2827 = smul.addr 1, 255
    %s2828 = scalar_lea.vmem %s1, %s2827
    %2829 = vst [vmem:[%s2828] sm:%s2826] %v2824

// kernel: encoder_rnn_forward.2
$region0: #{encoder_rnn_forward.2}
  #allocation0 [shape = 'u32[]', space=smem, size = 0x4, offset = 0x4, fixed_abs, tag = 'smem constant byte address 0x4 - core index']
  #allocation1 [shape = 'u32[144,128]{1,0:T(1,128)}', space=vmem, size = 0x12000, scoped, tag = 'internal scratch']
  %s0 = inlined_call_operand.vmem [shape: bf16[8,8,256], index: 0, kind: input, shape index: {}]
  %s1 = inlined_call_operand.vmem [shape: f32[64,256], index: 1, kind: input, shape index: {}]
  %s2 = inlined_call_operand.vmem [shape: s32[8,1], index: 2, kind: input, shape index: {}]
  %s3 = inlined_call_operand.vmem [shape: f32[8,8,64], index: 3, kind: output, shape index: {0}]
  %s4 = inlined_call_operand.vmem [shape: f32[8,64], index: 4, kind: output, shape index: {1}]
  %5 = xla_tuple %s3, %s4
  %s6 = sld [smem:[#allocation0]]
  $region30: #{encoder_rnn_forward.2} parent=0
    _
  %s8 = ssub.s32 1, %s6
  %s9 = scalar_select 0, %s8, %s6
  // Predicated region
  $region2: #{encoder_rnn_forward.2} parent=0 // pred_check
    _
  $region3: #{encoder_rnn_forward.2} parent=0 // pred_check_branch
    %11 = sbr.rel (0) target = $region5
  $region4: #{encoder_rnn_forward.2} parent=0 // pred_region
    _
  $region5: #{encoder_rnn_forward.2} parent=0 // pred_fallthru
    _
  // Predicated region
  $region6: #{encoder_rnn_forward.2} parent=0 // pred_check
    _
  $region7: #{encoder_rnn_forward.2} parent=0 // pred_check_branch
    %13 = sbr.rel (0) target = $region9
  $region8: #{encoder_rnn_forward.2} parent=0 // pred_region
    _
  $region9: #{encoder_rnn_forward.2} parent=0 // pred_fallthru
    _
  // Predicated region
  $region10: #{encoder_rnn_forward.2} parent=0 // pred_check
    _
  $region11: #{encoder_rnn_forward.2} parent=0 // pred_check_branch
    %15 = sbr.rel (0) target = $region13
  $region12: #{encoder_rnn_forward.2} parent=0 // pred_region
    _
  $region13: #{encoder_rnn_forward.2} parent=0 // pred_fallthru
    _
  %v16 = vld [vmem:[%s1] sm:$0xff]
  %v17 = vld [vmem:[%s1 + $0x8] sm:$0xff]
  %v18 = vld [vmem:[%s1 + $0x10] sm:$0xff]
  %v19 = vld [vmem:[%s1 + $0x18] sm:$0xff]
  %v20 = vld [vmem:[%s1 + $0x20] sm:$0xff]
  %v21 = vld [vmem:[%s1 + $0x28] sm:$0xff]
  %v22 = vld [vmem:[%s1 + $0x30] sm:$0xff]
  %v23 = vld [vmem:[%s1 + $0x38] sm:$0xff]
  %v24 = vld [vmem:[%s1 + $0x40] sm:$0xff]
  %v25 = vld [vmem:[%s1 + $0x48] sm:$0xff]
  %v26 = vld [vmem:[%s1 + $0x50] sm:$0xff]
  %v27 = vld [vmem:[%s1 + $0x58] sm:$0xff]
  %v28 = vld [vmem:[%s1 + $0x60] sm:$0xff]
  %v29 = vld [vmem:[%s1 + $0x68] sm:$0xff]
  %v30 = vld [vmem:[%s1 + $0x70] sm:$0xff]
  %v31 = vld [vmem:[%s1 + $0x78] sm:$0xff]
  %v32 = vld [vmem:[%s2] sm:$0xff]
  %v33 = vlaneseq
  %v34 = vand.u32 %v33, 127
  %vm35 = vcmp.ge.s32.totalorder %v34, 32
  %v36 = vld [vmem:[%s0] sm:$0xff]
  %v37 = vunpack.c.l.bf16 %v36
  %v38 = vunpack.c.h.bf16 %v36
  %vm39 = vcmask 523264
  %v41 = vsel %vm39, 0.0, 0
  %43 = vmatprep.subr.mxu0 0.0
  %44 = vmatpush1.msra.mxu0 0.0
  %45 = vmatprep.subr.mxu0 0.0
  %46 = vmatpush1.msra.mxu0 0.0
  %47 = vmatprep.subr.mxu0 0.0
  %48 = vmatpush1.msra.mxu0 0.0
  %49 = vmatprep.subr.mxu0 0.0
  %50 = vmatpush1.msra.mxu0 0.0
  %51 = vmatprep.subr.mxu0 0.0
  %52 = vmatpush1.msra.mxu0 0.0
  %53 = vmatprep.subr.mxu0 0.0
  %54 = vmatpush1.msra.mxu0 0.0
  %55 = vmatprep.subr.mxu0 0.0
  %56 = vmatpush1.msra.mxu0 0.0
  %57 = vmatprep.subr.mxu0 0.0
  %58 = vmatpush1.msra.mxu0 0.0
  %59 = vmatprep.subr.mxu0 %v31
  %60 = vmatpush1.msra.mxu0 %v30
  %61 = vmatprep.subr.mxu0 %v29
  %62 = vmatpush1.msra.mxu0 %v28
  %63 = vmatprep.subr.mxu0 %v27
  %64 = vmatpush1.msra.mxu0 %v26
  %65 = vmatprep.subr.mxu0 %v25
  %66 = vmatpush1.msra.mxu0 %v24
  %67 = vmatprep.subr.mxu0 %v23
  %68 = vmatpush1.msra.mxu0 %v22
  %69 = vmatprep.subr.mxu0 %v21
  %70 = vmatpush1.msra.mxu0 %v20
  %71 = vmatprep.subr.mxu0 %v19
  %72 = vmatpush1.msra.mxu0 %v18
  %73 = vmatprep.subr.mxu0 %v17
  %74 = vmatpush1.msra.mxu0 %v16
  %75 = vmatprep.subr.mxu0 0.0
  %76 = vmatpush2.msra.mxu0 0.0
  %77 = vmatprep.subr.mxu0 0.0
  %78 = vmatpush2.msra.mxu0 0.0
  %79 = vmatprep.subr.mxu0 0.0
  %80 = vmatpush2.msra.mxu0 0.0
  %81 = vmatprep.subr.mxu0 0.0
  %82 = vmatpush2.msra.mxu0 0.0
  %83 = vmatprep.subr.mxu0 0.0
  %84 = vmatpush2.msra.mxu0 0.0
  %85 = vmatprep.subr.mxu0 0.0
  %86 = vmatpush2.msra.mxu0 0.0
  %87 = vmatprep.subr.mxu0 0.0
  %88 = vmatpush2.msra.mxu0 0.0
  %89 = vmatprep.subr.mxu0 0.0
  %90 = vmatpush2.msra.mxu0 0.0
  %91 = vmatprep.subr.mxu0 0.0
  %92 = vmatpush2.msra.mxu0 0.0
  %93 = vmatprep.subr.mxu0 0.0
  %94 = vmatpush2.msra.mxu0 0.0
  %95 = vmatprep.subr.mxu0 0.0
  %96 = vmatpush2.msra.mxu0 0.0
  %97 = vmatprep.subr.mxu0 0.0
  %98 = vmatpush2.msra.mxu0 0.0
  %99 = vmatprep.subr.mxu0 0.0
  %100 = vmatpush2.msra.mxu0 0.0
  %101 = vmatprep.subr.mxu0 0.0
  %102 = vmatpush2.msra.mxu0 0.0
  %103 = vmatprep.subr.mxu0 0.0
  %104 = vmatpush2.msra.mxu0 0.0
  %105 = vmatprep.subr.mxu0 0.0
  %106 = vmatpush2.msra.mxu0 0.0
  %107 = vmatprep.mubr.f32.mxu0 0.0
  %108 = vmatmul.mubr.f32.gmra.mxu0 %v41
  %v109 = vpop.f32.mrf.mxu0
  %v110 = vadd.f32 0.0, %v109
  %v111 = vpop.f32.mrf.mxu0
  %v112 = vadd.f32 0.0, %v111
  %113 = vdwg.mxu0
  %v114 = vadd.f32 %v37, %v110
  %v115 = vadd.f32 %v38, %v112
  %v116 = vxor.u32 %v114, 2147483648
  %v117 = vxor.u32 %v115, 2147483648
  %v118 = vmul.f32 %v116, 1.442695
  %v119 = vpow.pop %v118
  %v120 = vmul.f32 %v117, 1.442695
  %v121 = vpow.pop %v120
  %v122 = vadd.f32 %v119, 1.0
  %v123 = vadd.f32 %v121, 1.0
  %v124 = vrcp.pop %v122
  %v125 = vmul.f32 1.0, %v124
  %v126 = vrcp.pop %v123
  %v127 = vmul.f32 1.0, %v126
  %v128 = vtanh.pop %v115
  %v129 = vmul.f32 %v125, 0.0
  %v130 = vmul.f32 %v125, %v128
  %132 = vrot.lane.b32.xlu0 %v130, 64
  %v133 = vpop.permute.xlu0 %132
  %v135 = vadd.f32 %v129, %v133
  %v136 = vtanh.pop %v135
  %v137 = vmul.f32 %v127, %v136
  %v138 = vsel %vm35, 7, 0
  %139 = vset.pattern.permute.xlu0 0
  %140 = vperm.xlu0 %139, %v32
  %v141 = vpop.permute.xlu0 %140
  %vm142 = vcmp.lt.s32.totalorder %v138, %v141
  %144 = vrot.lane.b32.xlu0 %v135, 64
  %v145 = vpop.permute.xlu0 %144
  %v147 = vsel %vm142, %v145, 0.0
  %149 = vrot.lane.b32.xlu0 %v137, 64
  %v150 = vpop.permute.xlu0 %149
  %v152 = vsel %vm142, %v150, 0.0
  %vm153 = vcmask 261120
  %154 = vst.msk [vmem:[%s3] sm:$0xff] %vm153, %v152
  %s155 = scalar_lea.vmem %s3, 56
  %vm156 = vcmask 523520
  %157 = vst.msk [vmem:[%s155] sm:$0xff] %vm156, %v152
  %s158 = scalar_lea.vmem %s0, 8
  %v159 = vld [vmem:[%s158] sm:$0xff]
  %v160 = vunpack.c.l.bf16 %v159
  %v161 = vunpack.c.h.bf16 %v159
  %v163 = vsel %vm39, %v152, 0
  %165 = vmatprep.subr.mxu0 0.0
  %166 = vmatpush1.msra.mxu0 0.0
  %167 = vmatprep.subr.mxu0 0.0
  %168 = vmatpush1.msra.mxu0 0.0
  %169 = vmatprep.subr.mxu0 0.0
  %170 = vmatpush1.msra.mxu0 0.0
  %171 = vmatprep.subr.mxu0 0.0
  %172 = vmatpush1.msra.mxu0 0.0
  %173 = vmatprep.subr.mxu0 0.0
  %174 = vmatpush1.msra.mxu0 0.0
  %175 = vmatprep.subr.mxu0 0.0
  %176 = vmatpush1.msra.mxu0 0.0
  %177 = vmatprep.subr.mxu0 0.0
  %178 = vmatpush1.msra.mxu0 0.0
  %179 = vmatprep.subr.mxu0 0.0
  %180 = vmatpush1.msra.mxu0 0.0
  %181 = vmatprep.subr.mxu0 %v31
  %182 = vmatpush1.msra.mxu0 %v30
  %183 = vmatprep.subr.mxu0 %v29
  %184 = vmatpush1.msra.mxu0 %v28
  %185 = vmatprep.subr.mxu0 %v27
  %186 = vmatpush1.msra.mxu0 %v26
  %187 = vmatprep.subr.mxu0 %v25
  %188 = vmatpush1.msra.mxu0 %v24
  %189 = vmatprep.subr.mxu0 %v23
  %190 = vmatpush1.msra.mxu0 %v22
  %191 = vmatprep.subr.mxu0 %v21
  %192 = vmatpush1.msra.mxu0 %v20
  %193 = vmatprep.subr.mxu0 %v19
  %194 = vmatpush1.msra.mxu0 %v18
  %195 = vmatprep.subr.mxu0 %v17
  %196 = vmatpush1.msra.mxu0 %v16
  %197 = vmatprep.subr.mxu0 0.0
  %198 = vmatpush2.msra.mxu0 0.0
  %199 = vmatprep.subr.mxu0 0.0
  %200 = vmatpush2.msra.mxu0 0.0
  %201 = vmatprep.subr.mxu0 0.0
  %202 = vmatpush2.msra.mxu0 0.0
  %203 = vmatprep.subr.mxu0 0.0
  %204 = vmatpush2.msra.mxu0 0.0
  %205 = vmatprep.subr.mxu0 0.0
  %206 = vmatpush2.msra.mxu0 0.0
  %207 = vmatprep.subr.mxu0 0.0
  %208 = vmatpush2.msra.mxu0 0.0
  %209 = vmatprep.subr.mxu0 0.0
  %210 = vmatpush2.msra.mxu0 0.0
  %211 = vmatprep.subr.mxu0 0.0
  %212 = vmatpush2.msra.mxu0 0.0
  %213 = vmatprep.subr.mxu0 0.0
  %214 = vmatpush2.msra.mxu0 0.0
  %215 = vmatprep.subr.mxu0 0.0
  %216 = vmatpush2.msra.mxu0 0.0
  %217 = vmatprep.subr.mxu0 0.0
  %218 = vmatpush2.msra.mxu0 0.0
  %219 = vmatprep.subr.mxu0 0.0
  %220 = vmatpush2.msra.mxu0 0.0
  %221 = vmatprep.subr.mxu0 0.0
  %222 = vmatpush2.msra.mxu0 0.0
  %223 = vmatprep.subr.mxu0 0.0
  %224 = vmatpush2.msra.mxu0 0.0
  %225 = vmatprep.subr.mxu0 0.0
  %226 = vmatpush2.msra.mxu0 0.0
  %227 = vmatprep.subr.mxu0 0.0
  %228 = vmatpush2.msra.mxu0 0.0
  %229 = vmatprep.mubr.f32.mxu0 0.0
  %230 = vmatmul.mubr.f32.gmra.mxu0 %v163
  %v231 = vpop.f32.mrf.mxu0
  %v232 = vadd.f32 0.0, %v231
  %v233 = vpop.f32.mrf.mxu0
  %v234 = vadd.f32 0.0, %v233
  %235 = vdwg.mxu0
  %v236 = vadd.f32 %v160, %v232
  %v237 = vadd.f32 %v161, %v234
  %v238 = vxor.u32 %v236, 2147483648
  %v239 = vxor.u32 %v237, 2147483648
  %v240 = vmul.f32 %v238, 1.442695
  %v241 = vpow.pop %v240
  %v242 = vmul.f32 %v239, 1.442695
  %v243 = vpow.pop %v242
  %v244 = vadd.f32 %v241, 1.0
  %v245 = vadd.f32 %v243, 1.0
  %v246 = vrcp.pop %v244
  %v247 = vmul.f32 1.0, %v246
  %v248 = vrcp.pop %v245
  %v249 = vmul.f32 1.0, %v248
  %v250 = vtanh.pop %v237
  %252 = vrot.lane.b32.xlu0 %v147, 64
  %v253 = vpop.permute.xlu0 %252
  %v255 = vmul.f32 %v247, %v253
  %v256 = vmul.f32 %v247, %v250
  %258 = vrot.lane.b32.xlu0 %v256, 64
  %v259 = vpop.permute.xlu0 %258
  %v261 = vadd.f32 %v255, %v259
  %v262 = vtanh.pop %v261
  %v263 = vmul.f32 %v249, %v262
  %v264 = vsel %vm35, 6, 1
  %vm265 = vcmp.lt.s32.totalorder %v264, %v141
  %267 = vrot.lane.b32.xlu0 %v261, 64
  %v268 = vpop.permute.xlu0 %267
  %v270 = vsel %vm265, %v268, %v147
  %272 = vrot.lane.b32.xlu0 %v263, 64
  %v273 = vpop.permute.xlu0 %272
  %v275 = vsel %vm265, %v273, %v152
  %v276 = vsel %vm265, %v273, 0.0
  %s277 = scalar_lea.vmem %s3, 8
  %278 = vst.msk [vmem:[%s277] sm:$0xff] %vm153, %v276
  %s279 = scalar_lea.vmem %s3, 48
  %280 = vst.msk [vmem:[%s279] sm:$0xff] %vm156, %v276
  %s281 = scalar_lea.vmem %s0, 16
  %v282 = vld [vmem:[%s281] sm:$0xff]
  %v283 = vunpack.c.l.bf16 %v282
  %v284 = vunpack.c.h.bf16 %v282
  %v286 = vsel %vm39, %v275, 0
  %288 = vmatprep.subr.mxu0 0.0
  %289 = vmatpush1.msra.mxu0 0.0
  %290 = vmatprep.subr.mxu0 0.0
  %291 = vmatpush1.msra.mxu0 0.0
  %292 = vmatprep.subr.mxu0 0.0
  %293 = vmatpush1.msra.mxu0 0.0
  %294 = vmatprep.subr.mxu0 0.0
  %295 = vmatpush1.msra.mxu0 0.0
  %296 = vmatprep.subr.mxu0 0.0
  %297 = vmatpush1.msra.mxu0 0.0
  %298 = vmatprep.subr.mxu0 0.0
  %299 = vmatpush1.msra.mxu0 0.0
  %300 = vmatprep.subr.mxu0 0.0
  %301 = vmatpush1.msra.mxu0 0.0
  %302 = vmatprep.subr.mxu0 0.0
  %303 = vmatpush1.msra.mxu0 0.0
  %304 = vmatprep.subr.mxu0 %v31
  %305 = vmatpush1.msra.mxu0 %v30
  %306 = vmatprep.subr.mxu0 %v29
  %307 = vmatpush1.msra.mxu0 %v28
  %308 = vmatprep.subr.mxu0 %v27
  %309 = vmatpush1.msra.mxu0 %v26
  %310 = vmatprep.subr.mxu0 %v25
  %311 = vmatpush1.msra.mxu0 %v24
  %312 = vmatprep.subr.mxu0 %v23
  %313 = vmatpush1.msra.mxu0 %v22
  %314 = vmatprep.subr.mxu0 %v21
  %315 = vmatpush1.msra.mxu0 %v20
  %316 = vmatprep.subr.mxu0 %v19
  %317 = vmatpush1.msra.mxu0 %v18
  %318 = vmatprep.subr.mxu0 %v17
  %319 = vmatpush1.msra.mxu0 %v16
  %320 = vmatprep.subr.mxu0 0.0
  %321 = vmatpush2.msra.mxu0 0.0
  %322 = vmatprep.subr.mxu0 0.0
  %323 = vmatpush2.msra.mxu0 0.0
  %324 = vmatprep.subr.mxu0 0.0
  %325 = vmatpush2.msra.mxu0 0.0
  %326 = vmatprep.subr.mxu0 0.0
  %327 = vmatpush2.msra.mxu0 0.0
  %328 = vmatprep.subr.mxu0 0.0
  %329 = vmatpush2.msra.mxu0 0.0
  %330 = vmatprep.subr.mxu0 0.0
  %331 = vmatpush2.msra.mxu0 0.0
  %332 = vmatprep.subr.mxu0 0.0
  %333 = vmatpush2.msra.mxu0 0.0
  %334 = vmatprep.subr.mxu0 0.0
  %335 = vmatpush2.msra.mxu0 0.0
  %336 = vmatprep.subr.mxu0 0.0
  %337 = vmatpush2.msra.mxu0 0.0
  %338 = vmatprep.subr.mxu0 0.0
  %339 = vmatpush2.msra.mxu0 0.0
  %340 = vmatprep.subr.mxu0 0.0
  %341 = vmatpush2.msra.mxu0 0.0
  %342 = vmatprep.subr.mxu0 0.0
  %343 = vmatpush2.msra.mxu0 0.0
  %344 = vmatprep.subr.mxu0 0.0
  %345 = vmatpush2.msra.mxu0 0.0
  %346 = vmatprep.subr.mxu0 0.0
  %347 = vmatpush2.msra.mxu0 0.0
  %348 = vmatprep.subr.mxu0 0.0
  %349 = vmatpush2.msra.mxu0 0.0
  %350 = vmatprep.subr.mxu0 0.0
  %351 = vmatpush2.msra.mxu0 0.0
  %352 = vmatprep.mubr.f32.mxu0 0.0
  %353 = vmatmul.mubr.f32.gmra.mxu0 %v286
  %v354 = vpop.f32.mrf.mxu0
  %v355 = vadd.f32 0.0, %v354
  %v356 = vpop.f32.mrf.mxu0
  %v357 = vadd.f32 0.0, %v356
  %358 = vdwg.mxu0
  %v359 = vadd.f32 %v283, %v355
  %v360 = vadd.f32 %v284, %v357
  %v361 = vxor.u32 %v359, 2147483648
  %v362 = vxor.u32 %v360, 2147483648
  %v363 = vmul.f32 %v361, 1.442695
  %v364 = vpow.pop %v363
  %v365 = vmul.f32 %v362, 1.442695
  %v366 = vpow.pop %v365
  %v367 = vadd.f32 %v364, 1.0
  %v368 = vadd.f32 %v366, 1.0
  %v369 = vrcp.pop %v367
  %v370 = vmul.f32 1.0, %v369
  %v371 = vrcp.pop %v368
  %v372 = vmul.f32 1.0, %v371
  %v373 = vtanh.pop %v360
  %375 = vrot.lane.b32.xlu0 %v270, 64
  %v376 = vpop.permute.xlu0 %375
  %v378 = vmul.f32 %v370, %v376
  %v379 = vmul.f32 %v370, %v373
  %381 = vrot.lane.b32.xlu0 %v379, 64
  %v382 = vpop.permute.xlu0 %381
  %v384 = vadd.f32 %v378, %v382
  %v385 = vtanh.pop %v384
  %v386 = vmul.f32 %v372, %v385
  %v387 = vsel %vm35, 5, 2
  %vm388 = vcmp.lt.s32.totalorder %v387, %v141
  %390 = vrot.lane.b32.xlu0 %v384, 64
  %v391 = vpop.permute.xlu0 %390
  %v393 = vsel %vm388, %v391, %v270
  %395 = vrot.lane.b32.xlu0 %v386, 64
  %v396 = vpop.permute.xlu0 %395
  %v398 = vsel %vm388, %v396, %v275
  %v399 = vsel %vm388, %v396, 0.0
  %s400 = scalar_lea.vmem %s3, 16
  %401 = vst.msk [vmem:[%s400] sm:$0xff] %vm153, %v399
  %s402 = scalar_lea.vmem %s3, 40
  %403 = vst.msk [vmem:[%s402] sm:$0xff] %vm156, %v399
  %s404 = scalar_lea.vmem %s0, 24
  %v405 = vld [vmem:[%s404] sm:$0xff]
  %v406 = vunpack.c.l.bf16 %v405
  %v407 = vunpack.c.h.bf16 %v405
  %v409 = vsel %vm39, %v398, 0
  %411 = vmatprep.subr.mxu0 0.0
  %412 = vmatpush1.msra.mxu0 0.0
  %413 = vmatprep.subr.mxu0 0.0
  %414 = vmatpush1.msra.mxu0 0.0
  %415 = vmatprep.subr.mxu0 0.0
  %416 = vmatpush1.msra.mxu0 0.0
  %417 = vmatprep.subr.mxu0 0.0
  %418 = vmatpush1.msra.mxu0 0.0
  %419 = vmatprep.subr.mxu0 0.0
  %420 = vmatpush1.msra.mxu0 0.0
  %421 = vmatprep.subr.mxu0 0.0
  %422 = vmatpush1.msra.mxu0 0.0
  %423 = vmatprep.subr.mxu0 0.0
  %424 = vmatpush1.msra.mxu0 0.0
  %425 = vmatprep.subr.mxu0 0.0
  %426 = vmatpush1.msra.mxu0 0.0
  %427 = vmatprep.subr.mxu0 %v31
  %428 = vmatpush1.msra.mxu0 %v30
  %429 = vmatprep.subr.mxu0 %v29
  %430 = vmatpush1.msra.mxu0 %v28
  %431 = vmatprep.subr.mxu0 %v27
  %432 = vmatpush1.msra.mxu0 %v26
  %433 = vmatprep.subr.mxu0 %v25
  %434 = vmatpush1.msra.mxu0 %v24
  %435 = vmatprep.subr.mxu0 %v23
  %436 = vmatpush1.msra.mxu0 %v22
  %437 = vmatprep.subr.mxu0 %v21
  %438 = vmatpush1.msra.mxu0 %v20
  %439 = vmatprep.subr.mxu0 %v19
  %440 = vmatpush1.msra.mxu0 %v18
  %441 = vmatprep.subr.mxu0 %v17
  %442 = vmatpush1.msra.mxu0 %v16
  %443 = vmatprep.subr.mxu0 0.0
  %444 = vmatpush2.msra.mxu0 0.0
  %445 = vmatprep.subr.mxu0 0.0
  %446 = vmatpush2.msra.mxu0 0.0
  %447 = vmatprep.subr.mxu0 0.0
  %448 = vmatpush2.msra.mxu0 0.0
  %449 = vmatprep.subr.mxu0 0.0
  %450 = vmatpush2.msra.mxu0 0.0
  %451 = vmatprep.subr.mxu0 0.0
  %452 = vmatpush2.msra.mxu0 0.0
  %453 = vmatprep.subr.mxu0 0.0
  %454 = vmatpush2.msra.mxu0 0.0
  %455 = vmatprep.subr.mxu0 0.0
  %456 = vmatpush2.msra.mxu0 0.0
  %457 = vmatprep.subr.mxu0 0.0
  %458 = vmatpush2.msra.mxu0 0.0
  %459 = vmatprep.subr.mxu0 0.0
  %460 = vmatpush2.msra.mxu0 0.0
  %461 = vmatprep.subr.mxu0 0.0
  %462 = vmatpush2.msra.mxu0 0.0
  %463 = vmatprep.subr.mxu0 0.0
  %464 = vmatpush2.msra.mxu0 0.0
  %465 = vmatprep.subr.mxu0 0.0
  %466 = vmatpush2.msra.mxu0 0.0
  %467 = vmatprep.subr.mxu0 0.0
  %468 = vmatpush2.msra.mxu0 0.0
  %469 = vmatprep.subr.mxu0 0.0
  %470 = vmatpush2.msra.mxu0 0.0
  %471 = vmatprep.subr.mxu0 0.0
  %472 = vmatpush2.msra.mxu0 0.0
  %473 = vmatprep.subr.mxu0 0.0
  %474 = vmatpush2.msra.mxu0 0.0
  %475 = vmatprep.mubr.f32.mxu0 0.0
  %476 = vmatmul.mubr.f32.gmra.mxu0 %v409
  %v477 = vpop.f32.mrf.mxu0
  %v478 = vadd.f32 0.0, %v477
  %v479 = vpop.f32.mrf.mxu0
  %v480 = vadd.f32 0.0, %v479
  %481 = vdwg.mxu0
  %v482 = vadd.f32 %v406, %v478
  %v483 = vadd.f32 %v407, %v480
  %v484 = vxor.u32 %v482, 2147483648
  %v485 = vxor.u32 %v483, 2147483648
  %v486 = vmul.f32 %v484, 1.442695
  %v487 = vpow.pop %v486
  %v488 = vmul.f32 %v485, 1.442695
  %v489 = vpow.pop %v488
  %v490 = vadd.f32 %v487, 1.0
  %v491 = vadd.f32 %v489, 1.0
  %v492 = vrcp.pop %v490
  %v493 = vmul.f32 1.0, %v492
  %v494 = vrcp.pop %v491
  %v495 = vmul.f32 1.0, %v494
  %v496 = vtanh.pop %v483
  %498 = vrot.lane.b32.xlu0 %v393, 64
  %v499 = vpop.permute.xlu0 %498
  %v501 = vmul.f32 %v493, %v499
  %v502 = vmul.f32 %v493, %v496
  %504 = vrot.lane.b32.xlu0 %v502, 64
  %v505 = vpop.permute.xlu0 %504
  %v507 = vadd.f32 %v501, %v505
  %v508 = vtanh.pop %v507
  %v509 = vmul.f32 %v495, %v508
  %v510 = vsel %vm35, 4, 3
  %vm511 = vcmp.lt.s32.totalorder %v510, %v141
  %513 = vrot.lane.b32.xlu0 %v507, 64
  %v514 = vpop.permute.xlu0 %513
  %v516 = vsel %vm511, %v514, %v393
  %518 = vrot.lane.b32.xlu0 %v509, 64
  %v519 = vpop.permute.xlu0 %518
  %v521 = vsel %vm511, %v519, %v398
  %v522 = vsel %vm511, %v519, 0.0
  %s523 = scalar_lea.vmem %s3, 24
  %524 = vst.msk [vmem:[%s523] sm:$0xff] %vm153, %v522
  %s525 = scalar_lea.vmem %s3, 32
  %526 = vst.msk [vmem:[%s525] sm:$0xff] %vm156, %v522
  %s527 = scalar_lea.vmem %s0, 32
  %v528 = vld [vmem:[%s527] sm:$0xff]
  %v529 = vunpack.c.l.bf16 %v528
  %v530 = vunpack.c.h.bf16 %v528
  %v532 = vsel %vm39, %v521, 0
  %534 = vmatprep.subr.mxu0 0.0
  %535 = vmatpush1.msra.mxu0 0.0
  %536 = vmatprep.subr.mxu0 0.0
  %537 = vmatpush1.msra.mxu0 0.0
  %538 = vmatprep.subr.mxu0 0.0
  %539 = vmatpush1.msra.mxu0 0.0
  %540 = vmatprep.subr.mxu0 0.0
  %541 = vmatpush1.msra.mxu0 0.0
  %542 = vmatprep.subr.mxu0 0.0
  %543 = vmatpush1.msra.mxu0 0.0
  %544 = vmatprep.subr.mxu0 0.0
  %545 = vmatpush1.msra.mxu0 0.0
  %546 = vmatprep.subr.mxu0 0.0
  %547 = vmatpush1.msra.mxu0 0.0
  %548 = vmatprep.subr.mxu0 0.0
  %549 = vmatpush1.msra.mxu0 0.0
  %550 = vmatprep.subr.mxu0 %v31
  %551 = vmatpush1.msra.mxu0 %v30
  %552 = vmatprep.subr.mxu0 %v29
  %553 = vmatpush1.msra.mxu0 %v28
  %554 = vmatprep.subr.mxu0 %v27
  %555 = vmatpush1.msra.mxu0 %v26
  %556 = vmatprep.subr.mxu0 %v25
  %557 = vmatpush1.msra.mxu0 %v24
  %558 = vmatprep.subr.mxu0 %v23
  %559 = vmatpush1.msra.mxu0 %v22
  %560 = vmatprep.subr.mxu0 %v21
  %561 = vmatpush1.msra.mxu0 %v20
  %562 = vmatprep.subr.mxu0 %v19
  %563 = vmatpush1.msra.mxu0 %v18
  %564 = vmatprep.subr.mxu0 %v17
  %565 = vmatpush1.msra.mxu0 %v16
  %566 = vmatprep.subr.mxu0 0.0
  %567 = vmatpush2.msra.mxu0 0.0
  %568 = vmatprep.subr.mxu0 0.0
  %569 = vmatpush2.msra.mxu0 0.0
  %570 = vmatprep.subr.mxu0 0.0
  %571 = vmatpush2.msra.mxu0 0.0
  %572 = vmatprep.subr.mxu0 0.0
  %573 = vmatpush2.msra.mxu0 0.0
  %574 = vmatprep.subr.mxu0 0.0
  %575 = vmatpush2.msra.mxu0 0.0
  %576 = vmatprep.subr.mxu0 0.0
  %577 = vmatpush2.msra.mxu0 0.0
  %578 = vmatprep.subr.mxu0 0.0
  %579 = vmatpush2.msra.mxu0 0.0
  %580 = vmatprep.subr.mxu0 0.0
  %581 = vmatpush2.msra.mxu0 0.0
  %582 = vmatprep.subr.mxu0 0.0
  %583 = vmatpush2.msra.mxu0 0.0
  %584 = vmatprep.subr.mxu0 0.0
  %585 = vmatpush2.msra.mxu0 0.0
  %586 = vmatprep.subr.mxu0 0.0
  %587 = vmatpush2.msra.mxu0 0.0
  %588 = vmatprep.subr.mxu0 0.0
  %589 = vmatpush2.msra.mxu0 0.0
  %590 = vmatprep.subr.mxu0 0.0
  %591 = vmatpush2.msra.mxu0 0.0
  %592 = vmatprep.subr.mxu0 0.0
  %593 = vmatpush2.msra.mxu0 0.0
  %594 = vmatprep.subr.mxu0 0.0
  %595 = vmatpush2.msra.mxu0 0.0
  %596 = vmatprep.subr.mxu0 0.0
  %597 = vmatpush2.msra.mxu0 0.0
  %598 = vmatprep.mubr.f32.mxu0 0.0
  %599 = vmatmul.mubr.f32.gmra.mxu0 %v532
  %v600 = vpop.f32.mrf.mxu0
  %v601 = vadd.f32 0.0, %v600
  %v602 = vpop.f32.mrf.mxu0
  %v603 = vadd.f32 0.0, %v602
  %604 = vdwg.mxu0
  %v605 = vadd.f32 %v529, %v601
  %v606 = vadd.f32 %v530, %v603
  %v607 = vxor.u32 %v605, 2147483648
  %v608 = vxor.u32 %v606, 2147483648
  %v609 = vmul.f32 %v607, 1.442695
  %v610 = vpow.pop %v609
  %v611 = vmul.f32 %v608, 1.442695
  %v612 = vpow.pop %v611
  %v613 = vadd.f32 %v610, 1.0
  %v614 = vadd.f32 %v612, 1.0
  %v615 = vrcp.pop %v613
  %v616 = vmul.f32 1.0, %v615
  %v617 = vrcp.pop %v614
  %v618 = vmul.f32 1.0, %v617
  %v619 = vtanh.pop %v606
  %621 = vrot.lane.b32.xlu0 %v516, 64
  %v622 = vpop.permute.xlu0 %621
  %v624 = vmul.f32 %v616, %v622
  %v625 = vmul.f32 %v616, %v619
  %627 = vrot.lane.b32.xlu0 %v625, 64
  %v628 = vpop.permute.xlu0 %627
  %v630 = vadd.f32 %v624, %v628
  %v631 = vtanh.pop %v630
  %v632 = vmul.f32 %v618, %v631
  %v633 = vsel %vm35, 3, 4
  %vm634 = vcmp.lt.s32.totalorder %v633, %v141
  %636 = vrot.lane.b32.xlu0 %v630, 64
  %v637 = vpop.permute.xlu0 %636
  %v639 = vsel %vm634, %v637, %v516
  %641 = vrot.lane.b32.xlu0 %v632, 64
  %v642 = vpop.permute.xlu0 %641
  %v644 = vsel %vm634, %v642, %v521
  %v645 = vsel %vm634, %v642, 0.0
  %646 = vst.msk [vmem:[%s525] sm:$0xff] %vm153, %v645
  %647 = vst.msk [vmem:[%s523] sm:$0xff] %vm156, %v645
  %s648 = scalar_lea.vmem %s0, 40
  %v649 = vld [vmem:[%s648] sm:$0xff]
  %v650 = vunpack.c.l.bf16 %v649
  %v651 = vunpack.c.h.bf16 %v649
  %v653 = vsel %vm39, %v644, 0
  %655 = vmatprep.subr.mxu0 0.0
  %656 = vmatpush1.msra.mxu0 0.0
  %657 = vmatprep.subr.mxu0 0.0
  %658 = vmatpush1.msra.mxu0 0.0
  %659 = vmatprep.subr.mxu0 0.0
  %660 = vmatpush1.msra.mxu0 0.0
  %661 = vmatprep.subr.mxu0 0.0
  %662 = vmatpush1.msra.mxu0 0.0
  %663 = vmatprep.subr.mxu0 0.0
  %664 = vmatpush1.msra.mxu0 0.0
  %665 = vmatprep.subr.mxu0 0.0
  %666 = vmatpush1.msra.mxu0 0.0
  %667 = vmatprep.subr.mxu0 0.0
  %668 = vmatpush1.msra.mxu0 0.0
  %669 = vmatprep.subr.mxu0 0.0
  %670 = vmatpush1.msra.mxu0 0.0
  %671 = vmatprep.subr.mxu0 %v31
  %672 = vmatpush1.msra.mxu0 %v30
  %673 = vmatprep.subr.mxu0 %v29
  %674 = vmatpush1.msra.mxu0 %v28
  %675 = vmatprep.subr.mxu0 %v27
  %676 = vmatpush1.msra.mxu0 %v26
  %677 = vmatprep.subr.mxu0 %v25
  %678 = vmatpush1.msra.mxu0 %v24
  %679 = vmatprep.subr.mxu0 %v23
  %680 = vmatpush1.msra.mxu0 %v22
  %681 = vmatprep.subr.mxu0 %v21
  %682 = vmatpush1.msra.mxu0 %v20
  %683 = vmatprep.subr.mxu0 %v19
  %684 = vmatpush1.msra.mxu0 %v18
  %685 = vmatprep.subr.mxu0 %v17
  %686 = vmatpush1.msra.mxu0 %v16
  %687 = vmatprep.subr.mxu0 0.0
  %688 = vmatpush2.msra.mxu0 0.0
  %689 = vmatprep.subr.mxu0 0.0
  %690 = vmatpush2.msra.mxu0 0.0
  %691 = vmatprep.subr.mxu0 0.0
  %692 = vmatpush2.msra.mxu0 0.0
  %693 = vmatprep.subr.mxu0 0.0
  %694 = vmatpush2.msra.mxu0 0.0
  %695 = vmatprep.subr.mxu0 0.0
  %696 = vmatpush2.msra.mxu0 0.0
  %697 = vmatprep.subr.mxu0 0.0
  %698 = vmatpush2.msra.mxu0 0.0
  %699 = vmatprep.subr.mxu0 0.0
  %700 = vmatpush2.msra.mxu0 0.0
  %701 = vmatprep.subr.mxu0 0.0
  %702 = vmatpush2.msra.mxu0 0.0
  %703 = vmatprep.subr.mxu0 0.0
  %704 = vmatpush2.msra.mxu0 0.0
  %705 = vmatprep.subr.mxu0 0.0
  %706 = vmatpush2.msra.mxu0 0.0
  %707 = vmatprep.subr.mxu0 0.0
  %708 = vmatpush2.msra.mxu0 0.0
  %709 = vmatprep.subr.mxu0 0.0
  %710 = vmatpush2.msra.mxu0 0.0
  %711 = vmatprep.subr.mxu0 0.0
  %712 = vmatpush2.msra.mxu0 0.0
  %713 = vmatprep.subr.mxu0 0.0
  %714 = vmatpush2.msra.mxu0 0.0
  %715 = vmatprep.subr.mxu0 0.0
  %716 = vmatpush2.msra.mxu0 0.0
  %717 = vmatprep.subr.mxu0 0.0
  %718 = vmatpush2.msra.mxu0 0.0
  %719 = vmatprep.mubr.f32.mxu0 0.0
  %720 = vmatmul.mubr.f32.gmra.mxu0 %v653
  %v721 = vpop.f32.mrf.mxu0
  %v722 = vadd.f32 0.0, %v721
  %v723 = vpop.f32.mrf.mxu0
  %v724 = vadd.f32 0.0, %v723
  %725 = vdwg.mxu0
  %v726 = vadd.f32 %v650, %v722
  %v727 = vadd.f32 %v651, %v724
  %v728 = vxor.u32 %v726, 2147483648
  %v729 = vxor.u32 %v727, 2147483648
  %v730 = vmul.f32 %v728, 1.442695
  %v731 = vpow.pop %v730
  %v732 = vmul.f32 %v729, 1.442695
  %v733 = vpow.pop %v732
  %v734 = vadd.f32 %v731, 1.0
  %v735 = vadd.f32 %v733, 1.0
  %v736 = vrcp.pop %v734
  %v737 = vmul.f32 1.0, %v736
  %v738 = vrcp.pop %v735
  %v739 = vmul.f32 1.0, %v738
  %v740 = vtanh.pop %v727
  %742 = vrot.lane.b32.xlu0 %v639, 64
  %v743 = vpop.permute.xlu0 %742
  %v745 = vmul.f32 %v737, %v743
  %v746 = vmul.f32 %v737, %v740
  %748 = vrot.lane.b32.xlu0 %v746, 64
  %v749 = vpop.permute.xlu0 %748
  %v751 = vadd.f32 %v745, %v749
  %v752 = vtanh.pop %v751
  %v753 = vmul.f32 %v739, %v752
  %v754 = vsel %vm35, 2, 5
  %vm755 = vcmp.lt.s32.totalorder %v754, %v141
  %757 = vrot.lane.b32.xlu0 %v751, 64
  %v758 = vpop.permute.xlu0 %757
  %v760 = vsel %vm755, %v758, %v639
  %762 = vrot.lane.b32.xlu0 %v753, 64
  %v763 = vpop.permute.xlu0 %762
  %v765 = vsel %vm755, %v763, %v644
  %v766 = vsel %vm755, %v763, 0.0
  %767 = vst.msk [vmem:[%s402] sm:$0xff] %vm153, %v766
  %768 = vst.msk [vmem:[%s400] sm:$0xff] %vm156, %v766
  %s769 = scalar_lea.vmem %s0, 48
  %v770 = vld [vmem:[%s769] sm:$0xff]
  %v771 = vunpack.c.l.bf16 %v770
  %v772 = vunpack.c.h.bf16 %v770
  %v774 = vsel %vm39, %v765, 0
  %776 = vmatprep.subr.mxu0 0.0
  %777 = vmatpush1.msra.mxu0 0.0
  %778 = vmatprep.subr.mxu0 0.0
  %779 = vmatpush1.msra.mxu0 0.0
  %780 = vmatprep.subr.mxu0 0.0
  %781 = vmatpush1.msra.mxu0 0.0
  %782 = vmatprep.subr.mxu0 0.0
  %783 = vmatpush1.msra.mxu0 0.0
  %784 = vmatprep.subr.mxu0 0.0
  %785 = vmatpush1.msra.mxu0 0.0
  %786 = vmatprep.subr.mxu0 0.0
  %787 = vmatpush1.msra.mxu0 0.0
  %788 = vmatprep.subr.mxu0 0.0
  %789 = vmatpush1.msra.mxu0 0.0
  %790 = vmatprep.subr.mxu0 0.0
  %791 = vmatpush1.msra.mxu0 0.0
  %792 = vmatprep.subr.mxu0 %v31
  %793 = vmatpush1.msra.mxu0 %v30
  %794 = vmatprep.subr.mxu0 %v29
  %795 = vmatpush1.msra.mxu0 %v28
  %796 = vmatprep.subr.mxu0 %v27
  %797 = vmatpush1.msra.mxu0 %v26
  %798 = vmatprep.subr.mxu0 %v25
  %799 = vmatpush1.msra.mxu0 %v24
  %800 = vmatprep.subr.mxu0 %v23
  %801 = vmatpush1.msra.mxu0 %v22
  %802 = vmatprep.subr.mxu0 %v21
  %803 = vmatpush1.msra.mxu0 %v20
  %804 = vmatprep.subr.mxu0 %v19
  %805 = vmatpush1.msra.mxu0 %v18
  %806 = vmatprep.subr.mxu0 %v17
  %807 = vmatpush1.msra.mxu0 %v16
  %808 = vmatprep.subr.mxu0 0.0
  %809 = vmatpush2.msra.mxu0 0.0
  %810 = vmatprep.subr.mxu0 0.0
  %811 = vmatpush2.msra.mxu0 0.0
  %812 = vmatprep.subr.mxu0 0.0
  %813 = vmatpush2.msra.mxu0 0.0
  %814 = vmatprep.subr.mxu0 0.0
  %815 = vmatpush2.msra.mxu0 0.0
  %816 = vmatprep.subr.mxu0 0.0
  %817 = vmatpush2.msra.mxu0 0.0
  %818 = vmatprep.subr.mxu0 0.0
  %819 = vmatpush2.msra.mxu0 0.0
  %820 = vmatprep.subr.mxu0 0.0
  %821 = vmatpush2.msra.mxu0 0.0
  %822 = vmatprep.subr.mxu0 0.0
  %823 = vmatpush2.msra.mxu0 0.0
  %824 = vmatprep.subr.mxu0 0.0
  %825 = vmatpush2.msra.mxu0 0.0
  %826 = vmatprep.subr.mxu0 0.0
  %827 = vmatpush2.msra.mxu0 0.0
  %828 = vmatprep.subr.mxu0 0.0
  %829 = vmatpush2.msra.mxu0 0.0
  %830 = vmatprep.subr.mxu0 0.0
  %831 = vmatpush2.msra.mxu0 0.0
  %832 = vmatprep.subr.mxu0 0.0
  %833 = vmatpush2.msra.mxu0 0.0
  %834 = vmatprep.subr.mxu0 0.0
  %835 = vmatpush2.msra.mxu0 0.0
  %836 = vmatprep.subr.mxu0 0.0
  %837 = vmatpush2.msra.mxu0 0.0
  %838 = vmatprep.subr.mxu0 0.0
  %839 = vmatpush2.msra.mxu0 0.0
  %840 = vmatprep.mubr.f32.mxu0 0.0
  %841 = vmatmul.mubr.f32.gmra.mxu0 %v774
  %v842 = vpop.f32.mrf.mxu0
  %v843 = vadd.f32 0.0, %v842
  %v844 = vpop.f32.mrf.mxu0
  %v845 = vadd.f32 0.0, %v844
  %846 = vdwg.mxu0
  %v847 = vadd.f32 %v771, %v843
  %v848 = vadd.f32 %v772, %v845
  %v849 = vxor.u32 %v847, 2147483648
  %v850 = vxor.u32 %v848, 2147483648
  %v851 = vmul.f32 %v849, 1.442695
  %v852 = vpow.pop %v851
  %v853 = vmul.f32 %v850, 1.442695
  %v854 = vpow.pop %v853
  %v855 = vadd.f32 %v852, 1.0
  %v856 = vadd.f32 %v854, 1.0
  %v857 = vrcp.pop %v855
  %v858 = vmul.f32 1.0, %v857
  %v859 = vrcp.pop %v856
  %v860 = vmul.f32 1.0, %v859
  %v861 = vtanh.pop %v848
  %863 = vrot.lane.b32.xlu0 %v760, 64
  %v864 = vpop.permute.xlu0 %863
  %v866 = vmul.f32 %v858, %v864
  %v867 = vmul.f32 %v858, %v861
  %869 = vrot.lane.b32.xlu0 %v867, 64
  %v870 = vpop.permute.xlu0 %869
  %v872 = vadd.f32 %v866, %v870
  %v873 = vtanh.pop %v872
  %v874 = vmul.f32 %v860, %v873
  %v875 = vsel %vm35, 1, 6
  %vm876 = vcmp.lt.s32.totalorder %v875, %v141
  %878 = vrot.lane.b32.xlu0 %v872, 64
  %v879 = vpop.permute.xlu0 %878
  %v881 = vsel %vm876, %v879, %v760
  %883 = vrot.lane.b32.xlu0 %v874, 64
  %v884 = vpop.permute.xlu0 %883
  %v886 = vsel %vm876, %v884, %v765
  %v887 = vsel %vm876, %v884, 0.0
  %888 = vst.msk [vmem:[%s279] sm:$0xff] %vm153, %v887
  %889 = vst.msk [vmem:[%s277] sm:$0xff] %vm156, %v887
  %s890 = scalar_lea.vmem %s0, 56
  %v891 = vld [vmem:[%s890] sm:$0xff]
  %v892 = vunpack.c.l.bf16 %v891
  %v893 = vunpack.c.h.bf16 %v891
  %v895 = vsel %vm39, %v886, 0
  %897 = vmatprep.subr.mxu0 0.0
  %898 = vmatpush1.msra.mxu0 0.0
  %899 = vmatprep.subr.mxu0 0.0
  %900 = vmatpush1.msra.mxu0 0.0
  %901 = vmatprep.subr.mxu0 0.0
  %902 = vmatpush1.msra.mxu0 0.0
  %903 = vmatprep.subr.mxu0 0.0
  %904 = vmatpush1.msra.mxu0 0.0
  %905 = vmatprep.subr.mxu0 0.0
  %906 = vmatpush1.msra.mxu0 0.0
  %907 = vmatprep.subr.mxu0 0.0
  %908 = vmatpush1.msra.mxu0 0.0
  %909 = vmatprep.subr.mxu0 0.0
  %910 = vmatpush1.msra.mxu0 0.0
  %911 = vmatprep.subr.mxu0 0.0
  %912 = vmatpush1.msra.mxu0 0.0
  %913 = vmatprep.subr.mxu0 %v31
  %914 = vmatpush1.msra.mxu0 %v30
  %915 = vmatprep.subr.mxu0 %v29
  %916 = vmatpush1.msra.mxu0 %v28
  %917 = vmatprep.subr.mxu0 %v27
  %918 = vmatpush1.msra.mxu0 %v26
  %919 = vmatprep.subr.mxu0 %v25
  %920 = vmatpush1.msra.mxu0 %v24
  %921 = vmatprep.subr.mxu0 %v23
  %922 = vmatpush1.msra.mxu0 %v22
  %923 = vmatprep.subr.mxu0 %v21
  %924 = vmatpush1.msra.mxu0 %v20
  %925 = vmatprep.subr.mxu0 %v19
  %926 = vmatpush1.msra.mxu0 %v18
  %927 = vmatprep.subr.mxu0 %v17
  %928 = vmatpush1.msra.mxu0 %v16
  %929 = vmatprep.subr.mxu0 0.0
  %930 = vmatpush2.msra.mxu0 0.0
  %931 = vmatprep.subr.mxu0 0.0
  %932 = vmatpush2.msra.mxu0 0.0
  %933 = vmatprep.subr.mxu0 0.0
  %934 = vmatpush2.msra.mxu0 0.0
  %935 = vmatprep.subr.mxu0 0.0
  %936 = vmatpush2.msra.mxu0 0.0
  %937 = vmatprep.subr.mxu0 0.0
  %938 = vmatpush2.msra.mxu0 0.0
  %939 = vmatprep.subr.mxu0 0.0
  %940 = vmatpush2.msra.mxu0 0.0
  %941 = vmatprep.subr.mxu0 0.0
  %942 = vmatpush2.msra.mxu0 0.0
  %943 = vmatprep.subr.mxu0 0.0
  %944 = vmatpush2.msra.mxu0 0.0
  %945 = vmatprep.subr.mxu0 0.0
  %946 = vmatpush2.msra.mxu0 0.0
  %947 = vmatprep.subr.mxu0 0.0
  %948 = vmatpush2.msra.mxu0 0.0
  %949 = vmatprep.subr.mxu0 0.0
  %950 = vmatpush2.msra.mxu0 0.0
  %951 = vmatprep.subr.mxu0 0.0
  %952 = vmatpush2.msra.mxu0 0.0
  %953 = vmatprep.subr.mxu0 0.0
  %954 = vmatpush2.msra.mxu0 0.0
  %955 = vmatprep.subr.mxu0 0.0
  %956 = vmatpush2.msra.mxu0 0.0
  %957 = vmatprep.subr.mxu0 0.0
  %958 = vmatpush2.msra.mxu0 0.0
  %959 = vmatprep.subr.mxu0 0.0
  %960 = vmatpush2.msra.mxu0 0.0
  %961 = vmatprep.mubr.f32.mxu0 0.0
  %962 = vmatmul.mubr.f32.gmra.mxu0 %v895
  %v963 = vpop.f32.mrf.mxu0
  %v964 = vadd.f32 0.0, %v963
  %v965 = vpop.f32.mrf.mxu0
  %v966 = vadd.f32 0.0, %v965
  %967 = vdwg.mxu0
  %v968 = vadd.f32 %v892, %v964
  %v969 = vadd.f32 %v893, %v966
  %v970 = vxor.u32 %v968, 2147483648
  %v971 = vxor.u32 %v969, 2147483648
  %v972 = vmul.f32 %v970, 1.442695
  %v973 = vpow.pop %v972
  %v974 = vmul.f32 %v971, 1.442695
  %v975 = vpow.pop %v974
  %v976 = vadd.f32 %v973, 1.0
  %v977 = vadd.f32 %v975, 1.0
  %v978 = vrcp.pop %v976
  %v979 = vmul.f32 1.0, %v978
  %v980 = vrcp.pop %v977
  %v981 = vmul.f32 1.0, %v980
  %v982 = vtanh.pop %v969
  %984 = vrot.lane.b32.xlu0 %v881, 64
  %v985 = vpop.permute.xlu0 %984
  %v987 = vmul.f32 %v979, %v985
  %v988 = vmul.f32 %v979, %v982
  %990 = vrot.lane.b32.xlu0 %v988, 64
  %v991 = vpop.permute.xlu0 %990
  %v993 = vadd.f32 %v987, %v991
  %v994 = vtanh.pop %v993
  %v995 = vmul.f32 %v981, %v994
  %v996 = vsel %vm35, 0, 7
  %vm997 = vcmp.lt.s32.totalorder %v996, %v141
  %999 = vrot.lane.b32.xlu0 %v993, 64
  %v1000 = vpop.permute.xlu0 %999
  %v1002 = vsel %vm997, %v1000, %v881
  %1004 = vrot.lane.b32.xlu0 %v995, 64
  %v1005 = vpop.permute.xlu0 %1004
  %v1007 = vsel %vm997, %v1005, 0.0
  %1008 = vst.msk [vmem:[%s155] sm:$0xff] %vm153, %v1007
  %1009 = vst.msk [vmem:[%s3] sm:$0xff] %vm156, %v1007
  %1010 = vst.msk [vmem:[%s4] sm:$0xff] %vm39, %v1002
  // Predicated region
  $region14: #{encoder_rnn_forward.2} parent=0 // pred_check
    _
  $region15: #{encoder_rnn_forward.2} parent=0 // pred_check_branch
    %1012 = sbr.rel (0) target = $region17
  $region16: #{encoder_rnn_forward.2} parent=0 // pred_region
    _
  $region17: #{encoder_rnn_forward.2} parent=0 // pred_fallthru
    _
  // Predicated region
  $region18: #{encoder_rnn_forward.2} parent=0 // pred_check
    _
  $region19: #{encoder_rnn_forward.2} parent=0 // pred_check_branch
    %1014 = sbr.rel (0) target = $region21
  $region20: #{encoder_rnn_forward.2} parent=0 // pred_region
    _
  $region21: #{encoder_rnn_forward.2} parent=0 // pred_fallthru
    _
  // Predicated region
  $region22: #{encoder_rnn_forward.2} parent=0 // pred_check
    _
  $region23: #{encoder_rnn_forward.2} parent=0 // pred_check_branch
    %1016 = sbr.rel (0) target = $region25
  $region24: #{encoder_rnn_forward.2} parent=0 // pred_region
    _
  $region25: #{encoder_rnn_forward.2} parent=0 // pred_fallthru
    _
  // Predicated region
  $region26: #{encoder_rnn_forward.2} parent=0 // pred_check
    _
  $region27: #{encoder_rnn_forward.2} parent=0 // pred_check_branch
    %1018 = sbr.rel (0) target = $region29
  $region28: #{encoder_rnn_forward.2} parent=0 // pred_region
    _
  $region29: #{encoder_rnn_forward.2} parent=0 // pred_fallthru
    _

</llo_original>
